<compile_context>
chip_gen: v5e
topology: v5e:2x2
jax: 0.10.0
libtpu: 0.0.40
codegen_flags: <defaults>
</compile_context>

<pallas_src>
import functools
import math

import jax
import jax.numpy as jnp
from jax.experimental import pallas as pl
from jax.experimental.pallas import tpu as pltpu

_MASK_BIG = 1e30  # additive key-mask bias; exp() underflows to exactly 0 for masked keys


# ----------------------------- in-kernel helpers -----------------------------

def _mm(x, w_bf16, b=None):
    """2-D matmul on the MXU: bf16 operands, f32 accumulation, optional f32 bias."""
    y = jnp.dot(x.astype(jnp.bfloat16), w_bf16, preferred_element_type=jnp.float32)
    if b is not None:
        y = y + b
    return y


def _softmax_lastdim(logits):
    """f32 softmax over the last dim; reciprocal on the EUP slot."""
    lmax = jnp.max(logits, axis=-1, keepdims=True)
    e = jnp.exp(logits - lmax)
    s = jnp.sum(e, axis=-1, keepdims=True)
    return e * pl.reciprocal(s, approx=True)


def _sigmoid(x):
    return 1.0 / (1.0 + jnp.exp(-x))


# ----------------------------- Pallas kernels -----------------------------

def _dual_linear_kernel(v_ref, q_ref, vw_ref, vb_ref, qw_ref, qb_ref, ov_ref, oq_ref):
    """Initial v_lin / q_lin projections fused into a single launch."""
    bb, Nv, Dv = v_ref.shape
    _, Nq, Dq = q_ref.shape
    Do = vw_ref.shape[1]
    ov_ref[...] = _mm(v_ref[...].reshape(bb * Nv, Dv), vw_ref[...], vb_ref[...]).reshape(bb, Nv, Do)
    oq_ref[...] = _mm(q_ref[...].reshape(bb * Nq, Dq), qw_ref[...], qb_ref[...]).reshape(bb, Nq, Do)


def _inter_kernel(src_ref, tgt_ref, sm_col_ref, sm_row_ref, tm_col_ref,
                  src_w_ref, src_b_ref, tgt_w_ref, tgt_b_ref,
                  out_wt_ref, out_wu_ref, out_b_ref,
                  o_ref, *, num_head, scale):
    """Fused OneSideInterModalityUpdate: projections + masks + MH attention + output proj."""
    bb, Ns, D = src_ref.shape
    _, Nt, _ = tgt_ref.shape
    dh = D // num_head

    src = src_ref[...]
    tgt = tgt_ref[...]

    # Projections (token-major 2-D matmuls) with the mask multiply fused as an epilogue.
    src_tr = _mm(src.reshape(bb * Ns, D), src_w_ref[...], src_b_ref[...])
    src_tr = src_tr.reshape(bb, Ns, 2 * D) * sm_col_ref[...]            # [bb, Ns, 2D]
    tgt_tr = _mm(tgt.reshape(bb * Nt, D), tgt_w_ref[...], tgt_b_ref[...])
    tgt_tr = tgt_tr.reshape(bb, Nt, D) * tm_col_ref[...]                # [bb, Nt, D]

    # Additive key-mask bias, hoisted out of the head loop.
    bias = (sm_row_ref[...] - 1.0) * _MASK_BIG                          # [bb, 1, Ns]

    # cat([tgt, tgt_update]) @ W_out + b == tgt @ W_out[:D] + sum_h head_h @ W_out[D:][h-slice] + b
    acc = _mm(tgt.reshape(bb * Nt, D), out_wt_ref[...], out_b_ref[...])  # [bb*Nt, D]

    q16 = tgt_tr.astype(jnp.bfloat16)
    k16 = src_tr[:, :, :D].astype(jnp.bfloat16)
    v16 = src_tr[:, :, D:].astype(jnp.bfloat16)
    w_upd = out_wu_ref[...]
    for h in range(num_head):                       # static unroll over contiguous head chunks
        sl = slice(h * dh, (h + 1) * dh)
        logits = jnp.einsum('btd,bsd->bts', q16[:, :, sl], k16[:, :, sl],
                            preferred_element_type=jnp.float32) * scale + bias
        p = _softmax_lastdim(logits)
        head = jnp.einsum('bts,bsd->btd', p.astype(jnp.bfloat16), v16[:, :, sl],
                          preferred_element_type=jnp.float32)           # [bb, Nt, dh]
        acc = acc + _mm(head.reshape(bb * Nt, dh), w_upd[sl, :])
    o_ref[...] = acc.reshape(bb, Nt, D)


def _intra_kernel(v_ref, q_ref, vm_col_ref, vm_row_ref, qm_col_ref, qm_row_ref,
                  v_inv_ref, q_inv_ref,
                  v4q_w_ref, v4q_b_ref, q4v_w_ref, q4v_b_ref,
                  v_w_ref, v_b_ref, q_w_ref, q_b_ref,
                  v_out_w_ref, v_out_b_ref, q_out_w_ref, q_out_b_ref,
                  ov_ref, oq_ref, *, num_head, scale):
    """Fused DyIntraModalityUpdate: masked means -> gates -> projections -> MH attn -> outputs."""
    bb, Nv, D = v_ref.shape
    _, Nq, _ = q_ref.shape
    dh = D // num_head

    v = v_ref[...]
    q = q_ref[...]
    vm_col = vm_col_ref[...]
    qm_col = qm_col_ref[...]

    # Masked means -> modality gates (f32 elementwise / EUP sigmoid).
    v_mean = jnp.sum(v * vm_col, axis=1) * v_inv_ref[...]               # [bb, D]
    q_mean = jnp.sum(q * qm_col, axis=1) * q_inv_ref[...]
    v4q_gate = _sigmoid(_mm(v_mean, v4q_w_ref[...], v4q_b_ref[...]))[:, None, :]  # [bb,1,D]
    q4v_gate = _sigmoid(_mm(q_mean, q4v_w_ref[...], q4v_b_ref[...]))[:, None, :]
    g_v = 1.0 + q4v_gate
    g_q = 1.0 + v4q_gate

    # 3D-wide projections with mask + gate epilogues kept in-register.
    v_tr = _mm(v.reshape(bb * Nv, D), v_w_ref[...], v_b_ref[...]).reshape(bb, Nv, 3 * D) * vm_col
    q_tr = _mm(q.reshape(bb * Nq, D), q_w_ref[...], q_b_ref[...]).reshape(bb, Nq, 3 * D) * qm_col
    v_key = (g_v * v_tr[:, :, :D]).astype(jnp.bfloat16)
    v_qry = (g_v * v_tr[:, :, D:2 * D]).astype(jnp.bfloat16)
    v_val = (g_v * v_tr[:, :, 2 * D:]).astype(jnp.bfloat16)
    q_key = (g_q * q_tr[:, :, :D]).astype(jnp.bfloat16)
    q_qry = (g_q * q_tr[:, :, D:2 * D]).astype(jnp.bfloat16)
    q_val = (g_q * q_tr[:, :, 2 * D:]).astype(jnp.bfloat16)

    v_bias = (vm_row_ref[...] - 1.0) * _MASK_BIG                        # [bb, 1, Nv]
    q_bias = (qm_row_ref[...] - 1.0) * _MASK_BIG                        # [bb, 1, Nq]

    # (x + x_update) @ W + b == x @ W + b + sum_h head_h @ W[h*dh:(h+1)*dh]
    v_out_w = v_out_w_ref[...]
    q_out_w = q_out_w_ref[...]
    acc_v = _mm(v.reshape(bb * Nv, D), v_out_w, v_out_b_ref[...])
    acc_q = _mm(q.reshape(bb * Nq, D), q_out_w, q_out_b_ref[...])
    for h in range(num_head):
        sl = slice(h * dh, (h + 1) * dh)
        v_log = jnp.einsum('btd,bsd->bts', v_qry[:, :, sl], v_key[:, :, sl],
                           preferred_element_type=jnp.float32) * scale + v_bias
        v_head = jnp.einsum('bts,bsd->btd', _softmax_lastdim(v_log).astype(jnp.bfloat16),
                            v_val[:, :, sl], preferred_element_type=jnp.float32)
        acc_v = acc_v + _mm(v_head.reshape(bb * Nv, dh), v_out_w[sl, :])

        q_log = jnp.einsum('btd,bsd->bts', q_qry[:, :, sl], q_key[:, :, sl],
                           preferred_element_type=jnp.float32) * scale + q_bias
        q_head = jnp.einsum('bts,bsd->btd', _softmax_lastdim(q_log).astype(jnp.bfloat16),
                            q_val[:, :, sl], preferred_element_type=jnp.float32)
        acc_q = acc_q + _mm(q_head.reshape(bb * Nq, dh), q_out_w[sl, :])
    ov_ref[...] = acc_v.reshape(bb, Nv, D)
    oq_ref[...] = acc_q.reshape(bb, Nq, D)


# ----------------------------- pallas_call plumbing -----------------------------

def _fused_call(kernel, *, batched_in, shared_in, out_shapes, batch):
    """Launch a fused kernel with a single 'parallel' grid axis over the batch dim.

    Batched operands are tiled only on the leading (batch) dim; all trailing dims are full
    blocks, so the (8,128) block constraint is trivially satisfied.  Shared operands
    (weights / biases) use a replicated index_map so they stay VMEM-resident across steps.
    The fused kernels use only a few hundred KiB of VMEM, well inside v7x's 64 MiB.
    """
    bb = batch if batch <= 8 else 8           # whole (tiny) batch per step; >=8 sublanes otherwise
    nb = pl.cdiv(batch, bb)

    def _bmap(nd):
        return lambda i, _nd=nd: (i,) + (0,) * (_nd - 1)

    def _smap(nd):
        return lambda i, _nd=nd: (0,) * _nd

    in_specs = ([pl.BlockSpec((bb,) + a.shape[1:], _bmap(a.ndim)) for a in batched_in] +
                [pl.BlockSpec(a.shape, _smap(a.ndim)) for a in shared_in])
    single = not isinstance(out_shapes, (tuple, list))
    outs = (out_shapes,) if single else tuple(out_shapes)
    out_specs = tuple(pl.BlockSpec((bb,) + s.shape[1:], _bmap(len(s.shape))) for s in outs)

    return pl.pallas_call(
        kernel,
        grid=(nb,),
        in_specs=in_specs,
        out_specs=out_specs[0] if single else out_specs,
        out_shape=outs[0] if single else outs,
        compiler_params=pltpu.CompilerParams(dimension_semantics=("parallel",)),
    )(*batched_in, *shared_in)


def input_projection(params, v, q):
    B = v.shape[0]
    vw, vb = params["v_lin"]
    qw, qb = params["q_lin"]
    D = vw.shape[1]
    out_shapes = (jax.ShapeDtypeStruct((B, v.shape[1], D), jnp.float32),
                  jax.ShapeDtypeStruct((B, q.shape[1], D), jnp.float32))
    return _fused_call(
        _dual_linear_kernel,
        batched_in=(v, q),
        shared_in=(vw.astype(jnp.bfloat16), vb.reshape(1, -1),
                   qw.astype(jnp.bfloat16), qb.reshape(1, -1)),
        out_shapes=out_shapes, batch=B)


def one_side_inter_update(p, src, tgt, src_mask, tgt_mask, num_head):
    B, Ns, D = src.shape
    _, Nt, _ = tgt.shape
    scale = 1.0 / math.sqrt(D // num_head)
    src_w, src_b = p["src_lin"]
    tgt_w, tgt_b = p["tgt_lin"]
    out_w, out_b = p["tgt_output"]
    kernel = functools.partial(_inter_kernel, num_head=num_head, scale=scale)
    return _fused_call(
        kernel,
        batched_in=(src, tgt,
                    src_mask[:, :, None], src_mask[:, None, :], tgt_mask[:, :, None]),
        shared_in=(src_w.astype(jnp.bfloat16), src_b.reshape(1, -1),
                   tgt_w.astype(jnp.bfloat16), tgt_b.reshape(1, -1),
                   out_w[:D].astype(jnp.bfloat16), out_w[D:].astype(jnp.bfloat16),
                   out_b.reshape(1, -1)),
        out_shapes=jax.ShapeDtypeStruct((B, Nt, D), jnp.float32), batch=B)


def dy_intra_update(p, v, q, v_mask, q_mask, num_head):
    B, Nv, D = v.shape
    _, Nq, _ = q.shape
    scale = 1.0 / math.sqrt(D // num_head)
    # Per-batch 1/sum(mask) (matches the reference; a fully padded row would give inf there too).
    v_inv = 1.0 / jnp.sum(v_mask, axis=1, keepdims=True)
    q_inv = 1.0 / jnp.sum(q_mask, axis=1, keepdims=True)
    kernel = functools.partial(_intra_kernel, num_head=num_head, scale=scale)
    bf = lambda w: w.astype(jnp.bfloat16)
    rb = lambda b: b.reshape(1, -1)
    return _fused_call(
        kernel,
        batched_in=(v, q,
                    v_mask[:, :, None], v_mask[:, None, :],
                    q_mask[:, :, None], q_mask[:, None, :],
                    v_inv, q_inv),
        shared_in=(bf(p["v4q_gate_lin"][0]), rb(p["v4q_gate_lin"][1]),
                   bf(p["q4v_gate_lin"][0]), rb(p["q4v_gate_lin"][1]),
                   bf(p["v_lin"][0]), rb(p["v_lin"][1]),
                   bf(p["q_lin"][0]), rb(p["q_lin"][1]),
                   bf(p["v_output"][0]), rb(p["v_output"][1]),
                   bf(p["q_output"][0]), rb(p["q_output"][1])),
        out_shapes=(jax.ShapeDtypeStruct((B, Nv, D), jnp.float32),
                    jax.ShapeDtypeStruct((B, Nq, D), jnp.float32)),
        batch=B)


# ----------------------------- parameter init -----------------------------

def _init_fc(key, din, dout, scale=0.1):
    # TODO(synk): FCNet wraps the Linear in weight_norm; at init (and with drop=0) that equals
    # a plain Linear.  Trained weight_norm params would need g * v / ||v|| recombination first.
    kw, kb = jax.random.split(key)
    w = scale * jax.random.normal(kw, (din, dout), jnp.float32)
    b = scale * jax.random.normal(kb, (dout,), jnp.float32)
    return (w, b)


def init_multiblock_params(key, num_block, v_size, q_size, D):
    keys = iter(jax.random.split(key, 2 + num_block * 12))
    params = {
        "v_lin": _init_fc(next(keys), v_size, D),
        "q_lin": _init_fc(next(keys), q_size, D),
        "blocks": [],
    }
    for _ in range(num_block):
        inter1 = {  # V -> Q
            "src_lin": _init_fc(next(keys), D, 2 * D),
            "tgt_lin": _init_fc(next(keys), D, D),
            "tgt_output": _init_fc(next(keys), 2 * D, D),
        }
        inter2 = {  # Q -> V
            "src_lin": _init_fc(next(keys), D, 2 * D),
            "tgt_lin": _init_fc(next(keys), D, D),
            "tgt_output": _init_fc(next(keys), 2 * D, D),
        }
        intra = {
            "v4q_gate_lin": _init_fc(next(keys), D, D),
            "q4v_gate_lin": _init_fc(next(keys), D, D),
            "v_lin": _init_fc(next(keys), D, 3 * D),
            "q_lin": _init_fc(next(keys), D, 3 * D),
            "v_output": _init_fc(next(keys), D, D),
            "q_output": _init_fc(next(keys), D, D),
        }
        params["blocks"].append((inter1, inter2, intra))
    return params


# ----------------------------- forward pass -----------------------------

def multiblock_forward(params, v, q, v_mask, q_mask, *, num_inter_head, num_intra_head):
    v, q = input_projection(params, v, q)
    v_container = [v]
    q_container = [q]
    result_v = [v]
    result_q = [q]
    for (inter1, inter2, intra) in params["blocks"]:
        q1 = one_side_inter_update(inter1, v_container[-1], q_container[-1],
                                   v_mask, q_mask, num_inter_head)
        q_container.append(q1)
        v1 = one_side_inter_update(inter2, q_container[-1] + q_container[-2], v_container[-1],
                                   q_mask, v_mask, num_inter_head)
        v_container.append(v1)
        v2, q2 = dy_intra_update(intra, v_container[-1] + v_container[-2],
                                 q_container[-1] + q_container[-2],
                                 v_mask, q_mask, num_intra_head)
        v_container.append(v2)
        q_container.append(q2)
        result_v += [v1, v2]
        result_q += [q1, q2]
        v_container.append(v_container[-1] + v_container[-2] + v_container[-3])
        q_container.append(q_container[-1] + q_container[-2] + q_container[-3])
    return sum(result_v), sum(result_q)


# ----------------------------------- main -----------------------------------

if __name__ == "__main__":
    B, num_obj, max_len = 2, 8, 6
    v_size = q_size = 32
    D = 32                       # output_size
    num_inter_head = 2
    num_intra_head = 2
    num_block = 2

    root = jax.random.PRNGKey(0)
    k_v, k_q, k_p = jax.random.split(root, 3)
    v = jax.random.normal(k_v, (B, num_obj, v_size), jnp.float32)
    q = jax.random.normal(k_q, (B, max_len, q_size), jnp.float32)
    # masks: mostly valid, a few padded positions (never a fully-masked row)
    v_mask = jnp.ones((B, num_obj), jnp.float32).at[1, 6:].set(0.0)
    q_mask = jnp.ones((B, max_len), jnp.float32).at[1, 5:].set(0.0)

    params = init_multiblock_params(k_p, num_block, v_size, q_size, D)

    fwd = jax.jit(functools.partial(multiblock_forward,
                                    num_inter_head=num_inter_head,
                                    num_intra_head=num_intra_head))
    out_v, out_q = fwd(params, v, q, v_mask, q_mask)
    jax.block_until_ready((out_v, out_q))

    assert out_v.shape == (B, num_obj, D), out_v.shape
    assert out_q.shape == (B, max_len, D), out_q.shape
    assert bool(jnp.all(jnp.isfinite(out_v))) and bool(jnp.all(jnp.isfinite(out_q)))
    print("KERNEL_OK")
</pallas_src>

<mosaic_0001>
module attributes {stable_mosaic.version = 11 : i64} {
  func.func @_dual_linear_kernel(%arg0: i32, %arg1: memref<2x8x32xf32, #tpu.memory_space<vmem>>, %arg2: memref<2x6x32xf32, #tpu.memory_space<vmem>>, %arg3: memref<32x32xbf16, #tpu.memory_space<vmem>>, %arg4: memref<1x32xf32, #tpu.memory_space<vmem>>, %arg5: memref<32x32xbf16, #tpu.memory_space<vmem>>, %arg6: memref<1x32xf32, #tpu.memory_space<vmem>>, %arg7: memref<2x8x32xf32, #tpu.memory_space<vmem>>, %arg8: memref<2x6x32xf32, #tpu.memory_space<vmem>>) attributes {dimension_semantics = [#tpu.dimension_semantics<parallel>], iteration_bounds = array<i64: 1>, scalar_prefetch = 0 : i64, scratch_operands = 0 : i64, tpu.core_type = #tpu.core_type<tc>, window_params = [{transform_indices = @transform_0, window_bounds = array<i64: 2, 8, 32>}, {transform_indices = @transform_1, window_bounds = array<i64: 2, 6, 32>}, {pipeline_mode = #tpu.pipeline_mode<synchronous>, transform_indices = @transform_2, window_bounds = array<i64: 32, 32>}, {pipeline_mode = #tpu.pipeline_mode<synchronous>, transform_indices = @transform_3, window_bounds = array<i64: 1, 32>}, {pipeline_mode = #tpu.pipeline_mode<synchronous>, transform_indices = @transform_4, window_bounds = array<i64: 32, 32>}, {pipeline_mode = #tpu.pipeline_mode<synchronous>, transform_indices = @transform_5, window_bounds = array<i64: 1, 32>}, {transform_indices = @transform_6, window_bounds = array<i64: 2, 8, 32>}, {transform_indices = @transform_7, window_bounds = array<i64: 2, 6, 32>}]} {
    %c0 = arith.constant 0 : index
    %c0_0 = arith.constant 0 : index
    %c0_1 = arith.constant 0 : index
    %0 = vector.load %arg1[%c0, %c0_0, %c0_1] : memref<2x8x32xf32, #tpu.memory_space<vmem>>, vector<2x8x32xf32>
    %1 = vector.shape_cast %0 : vector<2x8x32xf32> to vector<16x32xf32>
    %c0_2 = arith.constant 0 : index
    %c0_3 = arith.constant 0 : index
    %2 = vector.load %arg3[%c0_2, %c0_3] : memref<32x32xbf16, #tpu.memory_space<vmem>>, vector<32x32xbf16>
    %c0_4 = arith.constant 0 : index
    %c0_5 = arith.constant 0 : index
    %3 = vector.load %arg4[%c0_4, %c0_5] : memref<1x32xf32, #tpu.memory_space<vmem>>, vector<1x32xf32>
    %4 = arith.truncf %1 : vector<16x32xf32> to vector<16x32xbf16>
    %cst = arith.constant dense<0.000000e+00> : vector<16x32xf32>
    %5 = tpu.matmul %4, %2, %cst {dimension_numbers = #tpu.dot_dimension_numbers<[1], [0], [0], [1], [0, 0, 1, 1], [], []>} : vector<16x32xbf16>, vector<32x32xbf16>, vector<16x32xf32> -> vector<16x32xf32>
    %6 = vector.broadcast %3 : vector<1x32xf32> to vector<16x32xf32>
    %7 = arith.addf %5, %6 : vector<16x32xf32>
    %8 = vector.shape_cast %7 : vector<16x32xf32> to vector<2x8x32xf32>
    %c0_6 = arith.constant 0 : index
    %c0_7 = arith.constant 0 : index
    %c0_8 = arith.constant 0 : index
    %9 = vector.load %arg7[%c0_6, %c0_7, %c0_8] : memref<2x8x32xf32, #tpu.memory_space<vmem>>, vector<2x8x32xf32>
    tpu.vector_store %arg7[%c0_6, %c0_7, %c0_8], %8 {strides = array<i32>} : memref<2x8x32xf32, #tpu.memory_space<vmem>>, vector<2x8x32xf32>,
    %c0_9 = arith.constant 0 : index
    %c0_10 = arith.constant 0 : index
    %c0_11 = arith.constant 0 : index
    %10 = vector.load %arg2[%c0_9, %c0_10, %c0_11] : memref<2x6x32xf32, #tpu.memory_space<vmem>>, vector<2x6x32xf32>
    %11 = vector.shape_cast %10 : vector<2x6x32xf32> to vector<12x32xf32>
    %c0_12 = arith.constant 0 : index
    %c0_13 = arith.constant 0 : index
    %12 = vector.load %arg5[%c0_12, %c0_13] : memref<32x32xbf16, #tpu.memory_space<vmem>>, vector<32x32xbf16>
    %c0_14 = arith.constant 0 : index
    %c0_15 = arith.constant 0 : index
    %13 = vector.load %arg6[%c0_14, %c0_15] : memref<1x32xf32, #tpu.memory_space<vmem>>, vector<1x32xf32>
    %14 = arith.truncf %11 : vector<12x32xf32> to vector<12x32xbf16>
    %cst_16 = arith.constant dense<0.000000e+00> : vector<12x32xf32>
    %15 = tpu.matmul %14, %12, %cst_16 {dimension_numbers = #tpu.dot_dimension_numbers<[1], [0], [0], [1], [0, 0, 1, 1], [], []>} : vector<12x32xbf16>, vector<32x32xbf16>, vector<12x32xf32> -> vector<12x32xf32>
    %16 = vector.broadcast %13 : vector<1x32xf32> to vector<12x32xf32>
    %17 = arith.addf %15, %16 : vector<12x32xf32>
    %18 = vector.shape_cast %17 : vector<12x32xf32> to vector<2x6x32xf32>
    %c0_17 = arith.constant 0 : index
    %c0_18 = arith.constant 0 : index
    %c0_19 = arith.constant 0 : index
    %19 = vector.load %arg8[%c0_17, %c0_18, %c0_19] : memref<2x6x32xf32, #tpu.memory_space<vmem>>, vector<2x6x32xf32>
    tpu.vector_store %arg8[%c0_17, %c0_18, %c0_19], %18 {strides = array<i32>} : memref<2x6x32xf32, #tpu.memory_space<vmem>>, vector<2x6x32xf32>,
    return
  }
  func.func @transform_0(%arg0: i32) -> (i32, i32, i32) {
    %c0_i32 = arith.constant 0 : i32
    %c0_i32_0 = arith.constant 0 : i32
    %c0_i32_1 = arith.constant 0 : i32
    return %arg0, %c0_i32, %c0_i32_0 : i32, i32, i32
  }
  func.func @transform_1(%arg0: i32) -> (i32, i32, i32) {
    %c0_i32 = arith.constant 0 : i32
    %c0_i32_0 = arith.constant 0 : i32
    %c0_i32_1 = arith.constant 0 : i32
    return %arg0, %c0_i32, %c0_i32_0 : i32, i32, i32
  }
  func.func @transform_2(%arg0: i32) -> (i32, i32) {
    %c0_i32 = arith.constant 0 : i32
    %c0_i32_0 = arith.constant 0 : i32
    %c0_i32_1 = arith.constant 0 : i32
    return %c0_i32, %c0_i32_0 : i32, i32
  }
  func.func @transform_3(%arg0: i32) -> (i32, i32) {
    %c0_i32 = arith.constant 0 : i32
    %c0_i32_0 = arith.constant 0 : i32
    %c0_i32_1 = arith.constant 0 : i32
    return %c0_i32, %c0_i32_0 : i32, i32
  }
  func.func @transform_4(%arg0: i32) -> (i32, i32) {
    %c0_i32 = arith.constant 0 : i32
    %c0_i32_0 = arith.constant 0 : i32
    %c0_i32_1 = arith.constant 0 : i32
    return %c0_i32, %c0_i32_0 : i32, i32
  }
  func.func @transform_5(%arg0: i32) -> (i32, i32) {
    %c0_i32 = arith.constant 0 : i32
    %c0_i32_0 = arith.constant 0 : i32
    %c0_i32_1 = arith.constant 0 : i32
    return %c0_i32, %c0_i32_0 : i32, i32
  }
  func.func @transform_6(%arg0: i32) -> (i32, i32, i32) {
    %c0_i32 = arith.constant 0 : i32
    %c0_i32_0 = arith.constant 0 : i32
    %c0_i32_1 = arith.constant 0 : i32
    return %arg0, %c0_i32, %c0_i32_0 : i32, i32, i32
  }
  func.func @transform_7(%arg0: i32) -> (i32, i32, i32) {
    %c0_i32 = arith.constant 0 : i32
    %c0_i32_0 = arith.constant 0 : i32
    %c0_i32_1 = arith.constant 0 : i32
    return %arg0, %c0_i32, %c0_i32_0 : i32, i32, i32
  }
}

module attributes {stable_mosaic.version = 11 : i64} {
  func.func @_inter_kernel(%arg0: i32, %arg1: memref<2x8x32xf32, #tpu.memory_space<vmem>>, %arg2: memref<2x6x32xf32, #tpu.memory_space<vmem>>, %arg3: memref<2x8x1xf32, #tpu.memory_space<vmem>>, %arg4: memref<2x1x8xf32, #tpu.memory_space<vmem>>, %arg5: memref<2x6x1xf32, #tpu.memory_space<vmem>>, %arg6: memref<32x64xbf16, #tpu.memory_space<vmem>>, %arg7: memref<1x64xf32, #tpu.memory_space<vmem>>, %arg8: memref<32x32xbf16, #tpu.memory_space<vmem>>, %arg9: memref<1x32xf32, #tpu.memory_space<vmem>>, %arg10: memref<32x32xbf16, #tpu.memory_space<vmem>>, %arg11: memref<32x32xbf16, #tpu.memory_space<vmem>>, %arg12: memref<1x32xf32, #tpu.memory_space<vmem>>, %arg13: memref<2x6x32xf32, #tpu.memory_space<vmem>>) attributes {dimension_semantics = [#tpu.dimension_semantics<parallel>], iteration_bounds = array<i64: 1>, scalar_prefetch = 0 : i64, scratch_operands = 0 : i64, tpu.core_type = #tpu.core_type<tc>, window_params = [{transform_indices = @transform_0, window_bounds = array<i64: 2, 8, 32>}, {transform_indices = @transform_1, window_bounds = array<i64: 2, 6, 32>}, {transform_indices = @transform_2, window_bounds = array<i64: 2, 8, 1>}, {transform_indices = @transform_3, window_bounds = array<i64: 2, 1, 8>}, {transform_indices = @transform_4, window_bounds = array<i64: 2, 6, 1>}, {pipeline_mode = #tpu.pipeline_mode<synchronous>, transform_indices = @transform_5, window_bounds = array<i64: 32, 64>}, {pipeline_mode = #tpu.pipeline_mode<synchronous>, transform_indices = @transform_6, window_bounds = array<i64: 1, 64>}, {pipeline_mode = #tpu.pipeline_mode<synchronous>, transform_indices = @transform_7, window_bounds = array<i64: 32, 32>}, {pipeline_mode = #tpu.pipeline_mode<synchronous>, transform_indices = @transform_8, window_bounds = array<i64: 1, 32>}, {pipeline_mode = #tpu.pipeline_mode<synchronous>, transform_indices = @transform_9, window_bounds = array<i64: 32, 32>}, {pipeline_mode = #tpu.pipeline_mode<synchronous>, transform_indices = @transform_10, window_bounds = array<i64: 32, 32>}, {pipeline_mode = #tpu.pipeline_mode<synchronous>, transform_indices = @transform_11, window_bounds = array<i64: 1, 32>}, {transform_indices = @transform_12, window_bounds = array<i64: 2, 6, 32>}]} {
    %c0 = arith.constant 0 : index
    %c0_0 = arith.constant 0 : index
    %c0_1 = arith.constant 0 : index
    %0 = vector.load %arg1[%c0, %c0_0, %c0_1] : memref<2x8x32xf32, #tpu.memory_space<vmem>>, vector<2x8x32xf32>
    %c0_2 = arith.constant 0 : index
    %c0_3 = arith.constant 0 : index
    %c0_4 = arith.constant 0 : index
    %1 = vector.load %arg2[%c0_2, %c0_3, %c0_4] : memref<2x6x32xf32, #tpu.memory_space<vmem>>, vector<2x6x32xf32>
    %2 = vector.shape_cast %0 : vector<2x8x32xf32> to vector<16x32xf32>
    %c0_5 = arith.constant 0 : index
    %c0_6 = arith.constant 0 : index
    %3 = vector.load %arg6[%c0_5, %c0_6] : memref<32x64xbf16, #tpu.memory_space<vmem>>, vector<32x64xbf16>
    %c0_7 = arith.constant 0 : index
    %c0_8 = arith.constant 0 : index
    %4 = vector.load %arg7[%c0_7, %c0_8] : memref<1x64xf32, #tpu.memory_space<vmem>>, vector<1x64xf32>
    %5 = arith.truncf %2 : vector<16x32xf32> to vector<16x32xbf16>
    %cst = arith.constant dense<0.000000e+00> : vector<16x64xf32>
    %6 = tpu.matmul %5, %3, %cst {dimension_numbers = #tpu.dot_dimension_numbers<[1], [0], [0], [1], [0, 0, 1, 1], [], []>} : vector<16x32xbf16>, vector<32x64xbf16>, vector<16x64xf32> -> vector<16x64xf32>
    %7 = vector.broadcast %4 : vector<1x64xf32> to vector<16x64xf32>
    %8 = arith.addf %6, %7 : vector<16x64xf32>
    %9 = vector.shape_cast %8 : vector<16x64xf32> to vector<2x8x64xf32>
    %c0_9 = arith.constant 0 : index
    %c0_10 = arith.constant 0 : index
    %c0_11 = arith.constant 0 : index
    %10 = vector.load %arg3[%c0_9, %c0_10, %c0_11] : memref<2x8x1xf32, #tpu.memory_space<vmem>>, vector<2x8x1xf32>
    %11 = vector.broadcast %10 : vector<2x8x1xf32> to vector<2x8x64xf32>
    %12 = arith.mulf %9, %11 : vector<2x8x64xf32>
    %13 = vector.shape_cast %1 : vector<2x6x32xf32> to vector<12x32xf32>
    %c0_12 = arith.constant 0 : index
    %c0_13 = arith.constant 0 : index
    %14 = vector.load %arg8[%c0_12, %c0_13] : memref<32x32xbf16, #tpu.memory_space<vmem>>, vector<32x32xbf16>
    %c0_14 = arith.constant 0 : index
    %c0_15 = arith.constant 0 : index
    %15 = vector.load %arg9[%c0_14, %c0_15] : memref<1x32xf32, #tpu.memory_space<vmem>>, vector<1x32xf32>
    %16 = arith.truncf %13 : vector<12x32xf32> to vector<12x32xbf16>
    %cst_16 = arith.constant dense<0.000000e+00> : vector<12x32xf32>
    %17 = tpu.matmul %16, %14, %cst_16 {dimension_numbers = #tpu.dot_dimension_numbers<[1], [0], [0], [1], [0, 0, 1, 1], [], []>} : vector<12x32xbf16>, vector<32x32xbf16>, vector<12x32xf32> -> vector<12x32xf32>
    %18 = vector.broadcast %15 : vector<1x32xf32> to vector<12x32xf32>
    %19 = arith.addf %17, %18 : vector<12x32xf32>
    %20 = vector.shape_cast %19 : vector<12x32xf32> to vector<2x6x32xf32>
    %c0_17 = arith.constant 0 : index
    %c0_18 = arith.constant 0 : index
    %c0_19 = arith.constant 0 : index
    %21 = vector.load %arg5[%c0_17, %c0_18, %c0_19] : memref<2x6x1xf32, #tpu.memory_space<vmem>>, vector<2x6x1xf32>
    %22 = vector.broadcast %21 : vector<2x6x1xf32> to vector<2x6x32xf32>
    %23 = arith.mulf %20, %22 : vector<2x6x32xf32>
    %c0_20 = arith.constant 0 : index
    %c0_21 = arith.constant 0 : index
    %c0_22 = arith.constant 0 : index
    %24 = vector.load %arg4[%c0_20, %c0_21, %c0_22] : memref<2x1x8xf32, #tpu.memory_space<vmem>>, vector<2x1x8xf32>
    %cst_23 = arith.constant 1.000000e+00 : f32
    %25 = vector.broadcast %cst_23 : f32 to vector<2x1x8xf32>
    %26 = arith.subf %24, %25 : vector<2x1x8xf32>
    %cst_24 = arith.constant 1.000000e+30 : f32
    %27 = vector.broadcast %cst_24 : f32 to vector<2x1x8xf32>
    %28 = arith.mulf %26, %27 : vector<2x1x8xf32>
    %29 = vector.shape_cast %1 : vector<2x6x32xf32> to vector<12x32xf32>
    %c0_25 = arith.constant 0 : index
    %c0_26 = arith.constant 0 : index
    %30 = vector.load %arg10[%c0_25, %c0_26] : memref<32x32xbf16, #tpu.memory_space<vmem>>, vector<32x32xbf16>
    %c0_27 = arith.constant 0 : index
    %c0_28 = arith.constant 0 : index
    %31 = vector.load %arg12[%c0_27, %c0_28] : memref<1x32xf32, #tpu.memory_space<vmem>>, vector<1x32xf32>
    %32 = arith.truncf %29 : vector<12x32xf32> to vector<12x32xbf16>
    %cst_29 = arith.constant dense<0.000000e+00> : vector<12x32xf32>
    %33 = tpu.matmul %32, %30, %cst_29 {dimension_numbers = #tpu.dot_dimension_numbers<[1], [0], [0], [1], [0, 0, 1, 1], [], []>} : vector<12x32xbf16>, vector<32x32xbf16>, vector<12x32xf32> -> vector<12x32xf32>
    %34 = vector.broadcast %31 : vector<1x32xf32> to vector<12x32xf32>
    %35 = arith.addf %33, %34 : vector<12x32xf32>
    %36 = arith.truncf %23 : vector<2x6x32xf32> to vector<2x6x32xbf16>
    %37 = vector.extract_strided_slice %12 {offsets = [0, 0, 0], sizes = [2, 8, 32], strides = [1, 1, 1]} : vector<2x8x64xf32> to vector<2x8x32xf32>
    %38 = arith.truncf %37 : vector<2x8x32xf32> to vector<2x8x32xbf16>
    %39 = vector.extract_strided_slice %12 {offsets = [0, 0, 32], sizes = [2, 8, 32], strides = [1, 1, 1]} : vector<2x8x64xf32> to vector<2x8x32xf32>
    %40 = arith.truncf %39 : vector<2x8x32xf32> to vector<2x8x32xbf16>
    %c0_30 = arith.constant 0 : index
    %c0_31 = arith.constant 0 : index
    %41 = vector.load %arg11[%c0_30, %c0_31] : memref<32x32xbf16, #tpu.memory_space<vmem>>, vector<32x32xbf16>
    %42 = vector.extract_strided_slice %36 {offsets = [0, 0, 0], sizes = [2, 6, 16], strides = [1, 1, 1]} : vector<2x6x32xbf16> to vector<2x6x16xbf16>
    %43 = vector.extract_strided_slice %38 {offsets = [0, 0, 0], sizes = [2, 8, 16], strides = [1, 1, 1]} : vector<2x8x32xbf16> to vector<2x8x16xbf16>
    "tpu.trace_start"() <{level = 10 : i32, message = "btd,bsd->bts"}> : () -> ()
    %cst_32 = arith.constant dense<0.000000e+00> : vector<2x6x8xf32>
    %44 = tpu.matmul %42, %43, %cst_32 {dimension_numbers = #tpu.dot_dimension_numbers<[2], [2], [1], [1], [0, 0, 0, 1, 1, 1], [0], [0]>} : vector<2x6x16xbf16>, vector<2x8x16xbf16>, vector<2x6x8xf32> -> vector<2x6x8xf32>
    "tpu.trace_stop"() : () -> ()
    %cst_33 = arith.constant 2.500000e-01 : f32
    %45 = vector.broadcast %cst_33 : f32 to vector<2x6x8xf32>
    %46 = arith.mulf %44, %45 : vector<2x6x8xf32>
    %47 = vector.broadcast %28 : vector<2x1x8xf32> to vector<2x6x8xf32>
    %48 = arith.addf %46, %47 : vector<2x6x8xf32>
    %cst_34 = arith.constant dense<0xFF800000> : vector<2x6xf32>
    %49 = vector.multi_reduction <maximumf>, %48, %cst_34 [2] : vector<2x6x8xf32> to vector<2x6xf32>
    %50 = vector.shape_cast %49 : vector<2x6xf32> to vector<2x6x1xf32>
    %51 = vector.broadcast %50 : vector<2x6x1xf32> to vector<2x6x8xf32>
    %52 = arith.subf %48, %51 : vector<2x6x8xf32>
    %53 = math.exp %52 : vector<2x6x8xf32>
    %cst_35 = arith.constant dense<0.000000e+00> : vector<2x6xf32>
    %54 = vector.multi_reduction <add>, %53, %cst_35 [2] : vector<2x6x8xf32> to vector<2x6xf32>
    %55 = vector.shape_cast %54 : vector<2x6xf32> to vector<2x6x1xf32>
    %56 = tpu.reciprocal %55 {approx = true} : vector<2x6x1xf32> -> vector<2x6x1xf32>
    %57 = vector.broadcast %56 : vector<2x6x1xf32> to vector<2x6x8xf32>
    %58 = arith.mulf %53, %57 : vector<2x6x8xf32>
    %59 = arith.truncf %58 : vector<2x6x8xf32> to vector<2x6x8xbf16>
    %60 = vector.extract_strided_slice %40 {offsets = [0, 0, 0], sizes = [2, 8, 16], strides = [1, 1, 1]} : vector<2x8x32xbf16> to vector<2x8x16xbf16>
    "tpu.trace_start"() <{level = 10 : i32, message = "bts,bsd->btd"}> : () -> ()
    %cst_36 = arith.constant dense<0.000000e+00> : vector<2x6x16xf32>
    %61 = tpu.matmul %59, %60, %cst_36 {dimension_numbers = #tpu.dot_dimension_numbers<[2], [1], [1], [2], [0, 0, 0, 1, 1, 2], [0], [0]>} : vector<2x6x8xbf16>, vector<2x8x16xbf16>, vector<2x6x16xf32> -> vector<2x6x16xf32>
    "tpu.trace_stop"() : () -> ()
    %62 = vector.shape_cast %61 : vector<2x6x16xf32> to vector<12x16xf32>
    %63 = vector.extract_strided_slice %41 {offsets = [0, 0], sizes = [16, 32], strides = [1, 1]} : vector<32x32xbf16> to vector<16x32xbf16>
    %64 = arith.truncf %62 : vector<12x16xf32> to vector<12x16xbf16>
    %cst_37 = arith.constant dense<0.000000e+00> : vector<12x32xf32>
    %65 = tpu.matmul %64, %63, %cst_37 {dimension_numbers = #tpu.dot_dimension_numbers<[1], [0], [0], [1], [0, 0, 1, 1], [], []>} : vector<12x16xbf16>, vector<16x32xbf16>, vector<12x32xf32> -> vector<12x32xf32>
    %66 = arith.addf %35, %65 : vector<12x32xf32>
    %67 = vector.extract_strided_slice %36 {offsets = [0, 0, 16], sizes = [2, 6, 16], strides = [1, 1, 1]} : vector<2x6x32xbf16> to vector<2x6x16xbf16>
    %68 = vector.extract_strided_slice %38 {offsets = [0, 0, 16], sizes = [2, 8, 16], strides = [1, 1, 1]} : vector<2x8x32xbf16> to vector<2x8x16xbf16>
    "tpu.trace_start"() <{level = 10 : i32, message = "btd,bsd->bts"}> : () -> ()
    %cst_38 = arith.constant dense<0.000000e+00> : vector<2x6x8xf32>
    %69 = tpu.matmul %67, %68, %cst_38 {dimension_numbers = #tpu.dot_dimension_numbers<[2], [2], [1], [1], [0, 0, 0, 1, 1, 1], [0], [0]>} : vector<2x6x16xbf16>, vector<2x8x16xbf16>, vector<2x6x8xf32> -> vector<2x6x8xf32>
    "tpu.trace_stop"() : () -> ()
    %cst_39 = arith.constant 2.500000e-01 : f32
    %70 = vector.broadcast %cst_39 : f32 to vector<2x6x8xf32>
    %71 = arith.mulf %69, %70 : vector<2x6x8xf32>
    %72 = vector.broadcast %28 : vector<2x1x8xf32> to vector<2x6x8xf32>
    %73 = arith.addf %71, %72 : vector<2x6x8xf32>
    %cst_40 = arith.constant dense<0xFF800000> : vector<2x6xf32>
    %74 = vector.multi_reduction <maximumf>, %73, %cst_40 [2] : vector<2x6x8xf32> to vector<2x6xf32>
    %75 = vector.shape_cast %74 : vector<2x6xf32> to vector<2x6x1xf32>
    %76 = vector.broadcast %75 : vector<2x6x1xf32> to vector<2x6x8xf32>
    %77 = arith.subf %73, %76 : vector<2x6x8xf32>
    %78 = math.exp %77 : vector<2x6x8xf32>
    %cst_41 = arith.constant dense<0.000000e+00> : vector<2x6xf32>
    %79 = vector.multi_reduction <add>, %78, %cst_41 [2] : vector<2x6x8xf32> to vector<2x6xf32>
    %80 = vector.shape_cast %79 : vector<2x6xf32> to vector<2x6x1xf32>
    %81 = tpu.reciprocal %80 {approx = true} : vector<2x6x1xf32> -> vector<2x6x1xf32>
    %82 = vector.broadcast %81 : vector<2x6x1xf32> to vector<2x6x8xf32>
    %83 = arith.mulf %78, %82 : vector<2x6x8xf32>
    %84 = arith.truncf %83 : vector<2x6x8xf32> to vector<2x6x8xbf16>
    %85 = vector.extract_strided_slice %40 {offsets = [0, 0, 16], sizes = [2, 8, 16], strides = [1, 1, 1]} : vector<2x8x32xbf16> to vector<2x8x16xbf16>
    "tpu.trace_start"() <{level = 10 : i32, message = "bts,bsd->btd"}> : () -> ()
    %cst_42 = arith.constant dense<0.000000e+00> : vector<2x6x16xf32>
    %86 = tpu.matmul %84, %85, %cst_42 {dimension_numbers = #tpu.dot_dimension_numbers<[2], [1], [1], [2], [0, 0, 0, 1, 1, 2], [0], [0]>} : vector<2x6x8xbf16>, vector<2x8x16xbf16>, vector<2x6x16xf32> -> vector<2x6x16xf32>
    "tpu.trace_stop"() : () -> ()
    %87 = vector.shape_cast %86 : vector<2x6x16xf32> to vector<12x16xf32>
    %88 = vector.extract_strided_slice %41 {offsets = [16, 0], sizes = [16, 32], strides = [1, 1]} : vector<32x32xbf16> to vector<16x32xbf16>
    %89 = arith.truncf %87 : vector<12x16xf32> to vector<12x16xbf16>
    %cst_43 = arith.constant dense<0.000000e+00> : vector<12x32xf32>
    %90 = tpu.matmul %89, %88, %cst_43 {dimension_numbers = #tpu.dot_dimension_numbers<[1], [0], [0], [1], [0, 0, 1, 1], [], []>} : vector<12x16xbf16>, vector<16x32xbf16>, vector<12x32xf32> -> vector<12x32xf32>
    %91 = arith.addf %66, %90 : vector<12x32xf32>
    %92 = vector.shape_cast %91 : vector<12x32xf32> to vector<2x6x32xf32>
    %c0_44 = arith.constant 0 : index
    %c0_45 = arith.constant 0 : index
    %c0_46 = arith.constant 0 : index
    %93 = vector.load %arg13[%c0_44, %c0_45, %c0_46] : memref<2x6x32xf32, #tpu.memory_space<vmem>>, vector<2x6x32xf32>
    tpu.vector_store %arg13[%c0_44, %c0_45, %c0_46], %92 {strides = array<i32>} : memref<2x6x32xf32, #tpu.memory_space<vmem>>, vector<2x6x32xf32>,
    return
  }
  func.func @transform_0(%arg0: i32) -> (i32, i32, i32) {
    %c0_i32 = arith.constant 0 : i32
    %c0_i32_0 = arith.constant 0 : i32
    %c0_i32_1 = arith.constant 0 : i32
    return %arg0, %c0_i32, %c0_i32_0 : i32, i32, i32
  }
  func.func @transform_1(%arg0: i32) -> (i32, i32, i32) {
    %c0_i32 = arith.constant 0 : i32
    %c0_i32_0 = arith.constant 0 : i32
    %c0_i32_1 = arith.constant 0 : i32
    return %arg0, %c0_i32, %c0_i32_0 : i32, i32, i32
  }
  func.func @transform_2(%arg0: i32) -> (i32, i32, i32) {
    %c0_i32 = arith.constant 0 : i32
    %c0_i32_0 = arith.constant 0 : i32
    %c0_i32_1 = arith.constant 0 : i32
    return %arg0, %c0_i32, %c0_i32_0 : i32, i32, i32
  }
  func.func @transform_3(%arg0: i32) -> (i32, i32, i32) {
    %c0_i32 = arith.constant 0 : i32
    %c0_i32_0 = arith.constant 0 : i32
    %c0_i32_1 = arith.constant 0 : i32
    return %arg0, %c0_i32, %c0_i32_0 : i32, i32, i32
  }
  func.func @transform_4(%arg0: i32) -> (i32, i32, i32) {
    %c0_i32 = arith.constant 0 : i32
    %c0_i32_0 = arith.constant 0 : i32
    %c0_i32_1 = arith.constant 0 : i32
    return %arg0, %c0_i32, %c0_i32_0 : i32, i32, i32
  }
  func.func @transform_5(%arg0: i32) -> (i32, i32) {
    %c0_i32 = arith.constant 0 : i32
    %c0_i32_0 = arith.constant 0 : i32
    %c0_i32_1 = arith.constant 0 : i32
    return %c0_i32, %c0_i32_0 : i32, i32
  }
  func.func @transform_6(%arg0: i32) -> (i32, i32) {
    %c0_i32 = arith.constant 0 : i32
    %c0_i32_0 = arith.constant 0 : i32
    %c0_i32_1 = arith.constant 0 : i32
    return %c0_i32, %c0_i32_0 : i32, i32
  }
  func.func @transform_7(%arg0: i32) -> (i32, i32) {
    %c0_i32 = arith.constant 0 : i32
    %c0_i32_0 = arith.constant 0 : i32
    %c0_i32_1 = arith.constant 0 : i32
    return %c0_i32, %c0_i32_0 : i32, i32
  }
  func.func @transform_8(%arg0: i32) -> (i32, i32) {
    %c0_i32 = arith.constant 0 : i32
    %c0_i32_0 = arith.constant 0 : i32
    %c0_i32_1 = arith.constant 0 : i32
    return %c0_i32, %c0_i32_0 : i32, i32
  }
  func.func @transform_9(%arg0: i32) -> (i32, i32) {
    %c0_i32 = arith.constant 0 : i32
    %c0_i32_0 = arith.constant 0 : i32
    %c0_i32_1 = arith.constant 0 : i32
    return %c0_i32, %c0_i32_0 : i32, i32
  }
  func.func @transform_10(%arg0: i32) -> (i32, i32) {
    %c0_i32 = arith.constant 0 : i32
    %c0_i32_0 = arith.constant 0 : i32
    %c0_i32_1 = arith.constant 0 : i32
    return %c0_i32, %c0_i32_0 : i32, i32
  }
  func.func @transform_11(%arg0: i32) -> (i32, i32) {
    %c0_i32 = arith.constant 0 : i32
    %c0_i32_0 = arith.constant 0 : i32
    %c0_i32_1 = arith.constant 0 : i32
    return %c0_i32, %c0_i32_0 : i32, i32
  }
  func.func @transform_12(%arg0: i32) -> (i32, i32, i32) {
    %c0_i32 = arith.constant 0 : i32
    %c0_i32_0 = arith.constant 0 : i32
    %c0_i32_1 = arith.constant 0 : i32
    return %arg0, %c0_i32, %c0_i32_0 : i32, i32, i32
  }
}

module attributes {stable_mosaic.version = 11 : i64} {
  func.func @_inter_kernel(%arg0: i32, %arg1: memref<2x6x32xf32, #tpu.memory_space<vmem>>, %arg2: memref<2x8x32xf32, #tpu.memory_space<vmem>>, %arg3: memref<2x6x1xf32, #tpu.memory_space<vmem>>, %arg4: memref<2x1x6xf32, #tpu.memory_space<vmem>>, %arg5: memref<2x8x1xf32, #tpu.memory_space<vmem>>, %arg6: memref<32x64xbf16, #tpu.memory_space<vmem>>, %arg7: memref<1x64xf32, #tpu.memory_space<vmem>>, %arg8: memref<32x32xbf16, #tpu.memory_space<vmem>>, %arg9: memref<1x32xf32, #tpu.memory_space<vmem>>, %arg10: memref<32x32xbf16, #tpu.memory_space<vmem>>, %arg11: memref<32x32xbf16, #tpu.memory_space<vmem>>, %arg12: memref<1x32xf32, #tpu.memory_space<vmem>>, %arg13: memref<2x8x32xf32, #tpu.memory_space<vmem>>) attributes {dimension_semantics = [#tpu.dimension_semantics<parallel>], iteration_bounds = array<i64: 1>, scalar_prefetch = 0 : i64, scratch_operands = 0 : i64, tpu.core_type = #tpu.core_type<tc>, window_params = [{transform_indices = @transform_0, window_bounds = array<i64: 2, 6, 32>}, {transform_indices = @transform_1, window_bounds = array<i64: 2, 8, 32>}, {transform_indices = @transform_2, window_bounds = array<i64: 2, 6, 1>}, {transform_indices = @transform_3, window_bounds = array<i64: 2, 1, 6>}, {transform_indices = @transform_4, window_bounds = array<i64: 2, 8, 1>}, {pipeline_mode = #tpu.pipeline_mode<synchronous>, transform_indices = @transform_5, window_bounds = array<i64: 32, 64>}, {pipeline_mode = #tpu.pipeline_mode<synchronous>, transform_indices = @transform_6, window_bounds = array<i64: 1, 64>}, {pipeline_mode = #tpu.pipeline_mode<synchronous>, transform_indices = @transform_7, window_bounds = array<i64: 32, 32>}, {pipeline_mode = #tpu.pipeline_mode<synchronous>, transform_indices = @transform_8, window_bounds = array<i64: 1, 32>}, {pipeline_mode = #tpu.pipeline_mode<synchronous>, transform_indices = @transform_9, window_bounds = array<i64: 32, 32>}, {pipeline_mode = #tpu.pipeline_mode<synchronous>, transform_indices = @transform_10, window_bounds = array<i64: 32, 32>}, {pipeline_mode = #tpu.pipeline_mode<synchronous>, transform_indices = @transform_11, window_bounds = array<i64: 1, 32>}, {transform_indices = @transform_12, window_bounds = array<i64: 2, 8, 32>}]} {
    %c0 = arith.constant 0 : index
    %c0_0 = arith.constant 0 : index
    %c0_1 = arith.constant 0 : index
    %0 = vector.load %arg1[%c0, %c0_0, %c0_1] : memref<2x6x32xf32, #tpu.memory_space<vmem>>, vector<2x6x32xf32>
    %c0_2 = arith.constant 0 : index
    %c0_3 = arith.constant 0 : index
    %c0_4 = arith.constant 0 : index
    %1 = vector.load %arg2[%c0_2, %c0_3, %c0_4] : memref<2x8x32xf32, #tpu.memory_space<vmem>>, vector<2x8x32xf32>
    %2 = vector.shape_cast %0 : vector<2x6x32xf32> to vector<12x32xf32>
    %c0_5 = arith.constant 0 : index
    %c0_6 = arith.constant 0 : index
    %3 = vector.load %arg6[%c0_5, %c0_6] : memref<32x64xbf16, #tpu.memory_space<vmem>>, vector<32x64xbf16>
    %c0_7 = arith.constant 0 : index
    %c0_8 = arith.constant 0 : index
    %4 = vector.load %arg7[%c0_7, %c0_8] : memref<1x64xf32, #tpu.memory_space<vmem>>, vector<1x64xf32>
    %5 = arith.truncf %2 : vector<12x32xf32> to vector<12x32xbf16>
    %cst = arith.constant dense<0.000000e+00> : vector<12x64xf32>
    %6 = tpu.matmul %5, %3, %cst {dimension_numbers = #tpu.dot_dimension_numbers<[1], [0], [0], [1], [0, 0, 1, 1], [], []>} : vector<12x32xbf16>, vector<32x64xbf16>, vector<12x64xf32> -> vector<12x64xf32>
    %7 = vector.broadcast %4 : vector<1x64xf32> to vector<12x64xf32>
    %8 = arith.addf %6, %7 : vector<12x64xf32>
    %9 = vector.shape_cast %8 : vector<12x64xf32> to vector<2x6x64xf32>
    %c0_9 = arith.constant 0 : index
    %c0_10 = arith.constant 0 : index
    %c0_11 = arith.constant 0 : index
    %10 = vector.load %arg3[%c0_9, %c0_10, %c0_11] : memref<2x6x1xf32, #tpu.memory_space<vmem>>, vector<2x6x1xf32>
    %11 = vector.broadcast %10 : vector<2x6x1xf32> to vector<2x6x64xf32>
    %12 = arith.mulf %9, %11 : vector<2x6x64xf32>
    %13 = vector.shape_cast %1 : vector<2x8x32xf32> to vector<16x32xf32>
    %c0_12 = arith.constant 0 : index
    %c0_13 = arith.constant 0 : index
    %14 = vector.load %arg8[%c0_12, %c0_13] : memref<32x32xbf16, #tpu.memory_space<vmem>>, vector<32x32xbf16>
    %c0_14 = arith.constant 0 : index
    %c0_15 = arith.constant 0 : index
    %15 = vector.load %arg9[%c0_14, %c0_15] : memref<1x32xf32, #tpu.memory_space<vmem>>, vector<1x32xf32>
    %16 = arith.truncf %13 : vector<16x32xf32> to vector<16x32xbf16>
    %cst_16 = arith.constant dense<0.000000e+00> : vector<16x32xf32>
    %17 = tpu.matmul %16, %14, %cst_16 {dimension_numbers = #tpu.dot_dimension_numbers<[1], [0], [0], [1], [0, 0, 1, 1], [], []>} : vector<16x32xbf16>, vector<32x32xbf16>, vector<16x32xf32> -> vector<16x32xf32>
    %18 = vector.broadcast %15 : vector<1x32xf32> to vector<16x32xf32>
    %19 = arith.addf %17, %18 : vector<16x32xf32>
    %20 = vector.shape_cast %19 : vector<16x32xf32> to vector<2x8x32xf32>
    %c0_17 = arith.constant 0 : index
    %c0_18 = arith.constant 0 : index
    %c0_19 = arith.constant 0 : index
    %21 = vector.load %arg5[%c0_17, %c0_18, %c0_19] : memref<2x8x1xf32, #tpu.memory_space<vmem>>, vector<2x8x1xf32>
    %22 = vector.broadcast %21 : vector<2x8x1xf32> to vector<2x8x32xf32>
    %23 = arith.mulf %20, %22 : vector<2x8x32xf32>
    %c0_20 = arith.constant 0 : index
    %c0_21 = arith.constant 0 : index
    %c0_22 = arith.constant 0 : index
    %24 = vector.load %arg4[%c0_20, %c0_21, %c0_22] : memref<2x1x6xf32, #tpu.memory_space<vmem>>, vector<2x1x6xf32>
    %cst_23 = arith.constant 1.000000e+00 : f32
    %25 = vector.broadcast %cst_23 : f32 to vector<2x1x6xf32>
    %26 = arith.subf %24, %25 : vector<2x1x6xf32>
    %cst_24 = arith.constant 1.000000e+30 : f32
    %27 = vector.broadcast %cst_24 : f32 to vector<2x1x6xf32>
    %28 = arith.mulf %26, %27 : vector<2x1x6xf32>
    %29 = vector.shape_cast %1 : vector<2x8x32xf32> to vector<16x32xf32>
    %c0_25 = arith.constant 0 : index
    %c0_26 = arith.constant 0 : index
    %30 = vector.load %arg10[%c0_25, %c0_26] : memref<32x32xbf16, #tpu.memory_space<vmem>>, vector<32x32xbf16>
    %c0_27 = arith.constant 0 : index
    %c0_28 = arith.constant 0 : index
    %31 = vector.load %arg12[%c0_27, %c0_28] : memref<1x32xf32, #tpu.memory_space<vmem>>, vector<1x32xf32>
    %32 = arith.truncf %29 : vector<16x32xf32> to vector<16x32xbf16>
    %cst_29 = arith.constant dense<0.000000e+00> : vector<16x32xf32>
    %33 = tpu.matmul %32, %30, %cst_29 {dimension_numbers = #tpu.dot_dimension_numbers<[1], [0], [0], [1], [0, 0, 1, 1], [], []>} : vector<16x32xbf16>, vector<32x32xbf16>, vector<16x32xf32> -> vector<16x32xf32>
    %34 = vector.broadcast %31 : vector<1x32xf32> to vector<16x32xf32>
    %35 = arith.addf %33, %34 : vector<16x32xf32>
    %36 = arith.truncf %23 : vector<2x8x32xf32> to vector<2x8x32xbf16>
    %37 = vector.extract_strided_slice %12 {offsets = [0, 0, 0], sizes = [2, 6, 32], strides = [1, 1, 1]} : vector<2x6x64xf32> to vector<2x6x32xf32>
    %38 = arith.truncf %37 : vector<2x6x32xf32> to vector<2x6x32xbf16>
    %39 = vector.extract_strided_slice %12 {offsets = [0, 0, 32], sizes = [2, 6, 32], strides = [1, 1, 1]} : vector<2x6x64xf32> to vector<2x6x32xf32>
    %40 = arith.truncf %39 : vector<2x6x32xf32> to vector<2x6x32xbf16>
    %c0_30 = arith.constant 0 : index
    %c0_31 = arith.constant 0 : index
    %41 = vector.load %arg11[%c0_30, %c0_31] : memref<32x32xbf16, #tpu.memory_space<vmem>>, vector<32x32xbf16>
    %42 = vector.extract_strided_slice %36 {offsets = [0, 0, 0], sizes = [2, 8, 16], strides = [1, 1, 1]} : vector<2x8x32xbf16> to vector<2x8x16xbf16>
    %43 = vector.extract_strided_slice %38 {offsets = [0, 0, 0], sizes = [2, 6, 16], strides = [1, 1, 1]} : vector<2x6x32xbf16> to vector<2x6x16xbf16>
    "tpu.trace_start"() <{level = 10 : i32, message = "btd,bsd->bts"}> : () -> ()
    %cst_32 = arith.constant dense<0.000000e+00> : vector<2x8x6xf32>
    %44 = tpu.matmul %42, %43, %cst_32 {dimension_numbers = #tpu.dot_dimension_numbers<[2], [2], [1], [1], [0, 0, 0, 1, 1, 1], [0], [0]>} : vector<2x8x16xbf16>, vector<2x6x16xbf16>, vector<2x8x6xf32> -> vector<2x8x6xf32>
    "tpu.trace_stop"() : () -> ()
    %cst_33 = arith.constant 2.500000e-01 : f32
    %45 = vector.broadcast %cst_33 : f32 to vector<2x8x6xf32>
    %46 = arith.mulf %44, %45 : vector<2x8x6xf32>
    %47 = vector.broadcast %28 : vector<2x1x6xf32> to vector<2x8x6xf32>
    %48 = arith.addf %46, %47 : vector<2x8x6xf32>
    %cst_34 = arith.constant dense<0xFF800000> : vector<2x8xf32>
    %49 = vector.multi_reduction <maximumf>, %48, %cst_34 [2] : vector<2x8x6xf32> to vector<2x8xf32>
    %50 = vector.shape_cast %49 : vector<2x8xf32> to vector<2x8x1xf32>
    %51 = vector.broadcast %50 : vector<2x8x1xf32> to vector<2x8x6xf32>
    %52 = arith.subf %48, %51 : vector<2x8x6xf32>
    %53 = math.exp %52 : vector<2x8x6xf32>
    %cst_35 = arith.constant dense<0.000000e+00> : vector<2x8xf32>
    %54 = vector.multi_reduction <add>, %53, %cst_35 [2] : vector<2x8x6xf32> to vector<2x8xf32>
    %55 = vector.shape_cast %54 : vector<2x8xf32> to vector<2x8x1xf32>
    %56 = tpu.reciprocal %55 {approx = true} : vector<2x8x1xf32> -> vector<2x8x1xf32>
    %57 = vector.broadcast %56 : vector<2x8x1xf32> to vector<2x8x6xf32>
    %58 = arith.mulf %53, %57 : vector<2x8x6xf32>
    %59 = arith.truncf %58 : vector<2x8x6xf32> to vector<2x8x6xbf16>
    %60 = vector.extract_strided_slice %40 {offsets = [0, 0, 0], sizes = [2, 6, 16], strides = [1, 1, 1]} : vector<2x6x32xbf16> to vector<2x6x16xbf16>
    "tpu.trace_start"() <{level = 10 : i32, message = "bts,bsd->btd"}> : () -> ()
    %cst_36 = arith.constant dense<0.000000e+00> : vector<2x8x16xf32>
    %61 = tpu.matmul %59, %60, %cst_36 {dimension_numbers = #tpu.dot_dimension_numbers<[2], [1], [1], [2], [0, 0, 0, 1, 1, 2], [0], [0]>} : vector<2x8x6xbf16>, vector<2x6x16xbf16>, vector<2x8x16xf32> -> vector<2x8x16xf32>
    "tpu.trace_stop"() : () -> ()
    %62 = vector.shape_cast %61 : vector<2x8x16xf32> to vector<16x16xf32>
    %63 = vector.extract_strided_slice %41 {offsets = [0, 0], sizes = [16, 32], strides = [1, 1]} : vector<32x32xbf16> to vector<16x32xbf16>
    %64 = arith.truncf %62 : vector<16x16xf32> to vector<16x16xbf16>
    %cst_37 = arith.constant dense<0.000000e+00> : vector<16x32xf32>
    %65 = tpu.matmul %64, %63, %cst_37 {dimension_numbers = #tpu.dot_dimension_numbers<[1], [0], [0], [1], [0, 0, 1, 1], [], []>} : vector<16x16xbf16>, vector<16x32xbf16>, vector<16x32xf32> -> vector<16x32xf32>
    %66 = arith.addf %35, %65 : vector<16x32xf32>
    %67 = vector.extract_strided_slice %36 {offsets = [0, 0, 16], sizes = [2, 8, 16], strides = [1, 1, 1]} : vector<2x8x32xbf16> to vector<2x8x16xbf16>
    %68 = vector.extract_strided_slice %38 {offsets = [0, 0, 16], sizes = [2, 6, 16], strides = [1, 1, 1]} : vector<2x6x32xbf16> to vector<2x6x16xbf16>
    "tpu.trace_start"() <{level = 10 : i32, message = "btd,bsd->bts"}> : () -> ()
    %cst_38 = arith.constant dense<0.000000e+00> : vector<2x8x6xf32>
    %69 = tpu.matmul %67, %68, %cst_38 {dimension_numbers = #tpu.dot_dimension_numbers<[2], [2], [1], [1], [0, 0, 0, 1, 1, 1], [0], [0]>} : vector<2x8x16xbf16>, vector<2x6x16xbf16>, vector<2x8x6xf32> -> vector<2x8x6xf32>
    "tpu.trace_stop"() : () -> ()
    %cst_39 = arith.constant 2.500000e-01 : f32
    %70 = vector.broadcast %cst_39 : f32 to vector<2x8x6xf32>
    %71 = arith.mulf %69, %70 : vector<2x8x6xf32>
    %72 = vector.broadcast %28 : vector<2x1x6xf32> to vector<2x8x6xf32>
    %73 = arith.addf %71, %72 : vector<2x8x6xf32>
    %cst_40 = arith.constant dense<0xFF800000> : vector<2x8xf32>
    %74 = vector.multi_reduction <maximumf>, %73, %cst_40 [2] : vector<2x8x6xf32> to vector<2x8xf32>
    %75 = vector.shape_cast %74 : vector<2x8xf32> to vector<2x8x1xf32>
    %76 = vector.broadcast %75 : vector<2x8x1xf32> to vector<2x8x6xf32>
    %77 = arith.subf %73, %76 : vector<2x8x6xf32>
    %78 = math.exp %77 : vector<2x8x6xf32>
    %cst_41 = arith.constant dense<0.000000e+00> : vector<2x8xf32>
    %79 = vector.multi_reduction <add>, %78, %cst_41 [2] : vector<2x8x6xf32> to vector<2x8xf32>
    %80 = vector.shape_cast %79 : vector<2x8xf32> to vector<2x8x1xf32>
    %81 = tpu.reciprocal %80 {approx = true} : vector<2x8x1xf32> -> vector<2x8x1xf32>
    %82 = vector.broadcast %81 : vector<2x8x1xf32> to vector<2x8x6xf32>
    %83 = arith.mulf %78, %82 : vector<2x8x6xf32>
    %84 = arith.truncf %83 : vector<2x8x6xf32> to vector<2x8x6xbf16>
    %85 = vector.extract_strided_slice %40 {offsets = [0, 0, 16], sizes = [2, 6, 16], strides = [1, 1, 1]} : vector<2x6x32xbf16> to vector<2x6x16xbf16>
    "tpu.trace_start"() <{level = 10 : i32, message = "bts,bsd->btd"}> : () -> ()
    %cst_42 = arith.constant dense<0.000000e+00> : vector<2x8x16xf32>
    %86 = tpu.matmul %84, %85, %cst_42 {dimension_numbers = #tpu.dot_dimension_numbers<[2], [1], [1], [2], [0, 0, 0, 1, 1, 2], [0], [0]>} : vector<2x8x6xbf16>, vector<2x6x16xbf16>, vector<2x8x16xf32> -> vector<2x8x16xf32>
    "tpu.trace_stop"() : () -> ()
    %87 = vector.shape_cast %86 : vector<2x8x16xf32> to vector<16x16xf32>
    %88 = vector.extract_strided_slice %41 {offsets = [16, 0], sizes = [16, 32], strides = [1, 1]} : vector<32x32xbf16> to vector<16x32xbf16>
    %89 = arith.truncf %87 : vector<16x16xf32> to vector<16x16xbf16>
    %cst_43 = arith.constant dense<0.000000e+00> : vector<16x32xf32>
    %90 = tpu.matmul %89, %88, %cst_43 {dimension_numbers = #tpu.dot_dimension_numbers<[1], [0], [0], [1], [0, 0, 1, 1], [], []>} : vector<16x16xbf16>, vector<16x32xbf16>, vector<16x32xf32> -> vector<16x32xf32>
    %91 = arith.addf %66, %90 : vector<16x32xf32>
    %92 = vector.shape_cast %91 : vector<16x32xf32> to vector<2x8x32xf32>
    %c0_44 = arith.constant 0 : index
    %c0_45 = arith.constant 0 : index
    %c0_46 = arith.constant 0 : index
    %93 = vector.load %arg13[%c0_44, %c0_45, %c0_46] : memref<2x8x32xf32, #tpu.memory_space<vmem>>, vector<2x8x32xf32>
    tpu.vector_store %arg13[%c0_44, %c0_45, %c0_46], %92 {strides = array<i32>} : memref<2x8x32xf32, #tpu.memory_space<vmem>>, vector<2x8x32xf32>,
    return
  }
  func.func @transform_0(%arg0: i32) -> (i32, i32, i32) {
    %c0_i32 = arith.constant 0 : i32
    %c0_i32_0 = arith.constant 0 : i32
    %c0_i32_1 = arith.constant 0 : i32
    return %arg0, %c0_i32, %c0_i32_0 : i32, i32, i32
  }
  func.func @transform_1(%arg0: i32) -> (i32, i32, i32) {
    %c0_i32 = arith.constant 0 : i32
    %c0_i32_0 = arith.constant 0 : i32
    %c0_i32_1 = arith.constant 0 : i32
    return %arg0, %c0_i32, %c0_i32_0 : i32, i32, i32
  }
  func.func @transform_2(%arg0: i32) -> (i32, i32, i32) {
    %c0_i32 = arith.constant 0 : i32
    %c0_i32_0 = arith.constant 0 : i32
    %c0_i32_1 = arith.constant 0 : i32
    return %arg0, %c0_i32, %c0_i32_0 : i32, i32, i32
  }
  func.func @transform_3(%arg0: i32) -> (i32, i32, i32) {
    %c0_i32 = arith.constant 0 : i32
    %c0_i32_0 = arith.constant 0 : i32
    %c0_i32_1 = arith.constant 0 : i32
    return %arg0, %c0_i32, %c0_i32_0 : i32, i32, i32
  }
  func.func @transform_4(%arg0: i32) -> (i32, i32, i32) {
    %c0_i32 = arith.constant 0 : i32
    %c0_i32_0 = arith.constant 0 : i32
    %c0_i32_1 = arith.constant 0 : i32
    return %arg0, %c0_i32, %c0_i32_0 : i32, i32, i32
  }
  func.func @transform_5(%arg0: i32) -> (i32, i32) {
    %c0_i32 = arith.constant 0 : i32
    %c0_i32_0 = arith.constant 0 : i32
    %c0_i32_1 = arith.constant 0 : i32
    return %c0_i32, %c0_i32_0 : i32, i32
  }
  func.func @transform_6(%arg0: i32) -> (i32, i32) {
    %c0_i32 = arith.constant 0 : i32
    %c0_i32_0 = arith.constant 0 : i32
    %c0_i32_1 = arith.constant 0 : i32
    return %c0_i32, %c0_i32_0 : i32, i32
  }
  func.func @transform_7(%arg0: i32) -> (i32, i32) {
    %c0_i32 = arith.constant 0 : i32
    %c0_i32_0 = arith.constant 0 : i32
    %c0_i32_1 = arith.constant 0 : i32
    return %c0_i32, %c0_i32_0 : i32, i32
  }
  func.func @transform_8(%arg0: i32) -> (i32, i32) {
    %c0_i32 = arith.constant 0 : i32
    %c0_i32_0 = arith.constant 0 : i32
    %c0_i32_1 = arith.constant 0 : i32
    return %c0_i32, %c0_i32_0 : i32, i32
  }
  func.func @transform_9(%arg0: i32) -> (i32, i32) {
    %c0_i32 = arith.constant 0 : i32
    %c0_i32_0 = arith.constant 0 : i32
    %c0_i32_1 = arith.constant 0 : i32
    return %c0_i32, %c0_i32_0 : i32, i32
  }
  func.func @transform_10(%arg0: i32) -> (i32, i32) {
    %c0_i32 = arith.constant 0 : i32
    %c0_i32_0 = arith.constant 0 : i32
    %c0_i32_1 = arith.constant 0 : i32
    return %c0_i32, %c0_i32_0 : i32, i32
  }
  func.func @transform_11(%arg0: i32) -> (i32, i32) {
    %c0_i32 = arith.constant 0 : i32
    %c0_i32_0 = arith.constant 0 : i32
    %c0_i32_1 = arith.constant 0 : i32
    return %c0_i32, %c0_i32_0 : i32, i32
  }
  func.func @transform_12(%arg0: i32) -> (i32, i32, i32) {
    %c0_i32 = arith.constant 0 : i32
    %c0_i32_0 = arith.constant 0 : i32
    %c0_i32_1 = arith.constant 0 : i32
    return %arg0, %c0_i32, %c0_i32_0 : i32, i32, i32
  }
}

module attributes {stable_mosaic.version = 11 : i64} {
  func.func @_intra_kernel(%arg0: i32, %arg1: memref<2x8x32xf32, #tpu.memory_space<vmem>>, %arg2: memref<2x6x32xf32, #tpu.memory_space<vmem>>, %arg3: memref<2x8x1xf32, #tpu.memory_space<vmem>>, %arg4: memref<2x1x8xf32, #tpu.memory_space<vmem>>, %arg5: memref<2x6x1xf32, #tpu.memory_space<vmem>>, %arg6: memref<2x1x6xf32, #tpu.memory_space<vmem>>, %arg7: memref<2x1xf32, #tpu.memory_space<vmem>>, %arg8: memref<2x1xf32, #tpu.memory_space<vmem>>, %arg9: memref<32x32xbf16, #tpu.memory_space<vmem>>, %arg10: memref<1x32xf32, #tpu.memory_space<vmem>>, %arg11: memref<32x32xbf16, #tpu.memory_space<vmem>>, %arg12: memref<1x32xf32, #tpu.memory_space<vmem>>, %arg13: memref<32x96xbf16, #tpu.memory_space<vmem>>, %arg14: memref<1x96xf32, #tpu.memory_space<vmem>>, %arg15: memref<32x96xbf16, #tpu.memory_space<vmem>>, %arg16: memref<1x96xf32, #tpu.memory_space<vmem>>, %arg17: memref<32x32xbf16, #tpu.memory_space<vmem>>, %arg18: memref<1x32xf32, #tpu.memory_space<vmem>>, %arg19: memref<32x32xbf16, #tpu.memory_space<vmem>>, %arg20: memref<1x32xf32, #tpu.memory_space<vmem>>, %arg21: memref<2x8x32xf32, #tpu.memory_space<vmem>>, %arg22: memref<2x6x32xf32, #tpu.memory_space<vmem>>) attributes {dimension_semantics = [#tpu.dimension_semantics<parallel>], iteration_bounds = array<i64: 1>, scalar_prefetch = 0 : i64, scratch_operands = 0 : i64, tpu.core_type = #tpu.core_type<tc>, window_params = [{transform_indices = @transform_0, window_bounds = array<i64: 2, 8, 32>}, {transform_indices = @transform_1, window_bounds = array<i64: 2, 6, 32>}, {transform_indices = @transform_2, window_bounds = array<i64: 2, 8, 1>}, {transform_indices = @transform_3, window_bounds = array<i64: 2, 1, 8>}, {transform_indices = @transform_4, window_bounds = array<i64: 2, 6, 1>}, {transform_indices = @transform_5, window_bounds = array<i64: 2, 1, 6>}, {transform_indices = @transform_6, window_bounds = array<i64: 2, 1>}, {transform_indices = @transform_7, window_bounds = array<i64: 2, 1>}, {pipeline_mode = #tpu.pipeline_mode<synchronous>, transform_indices = @transform_8, window_bounds = array<i64: 32, 32>}, {pipeline_mode = #tpu.pipeline_mode<synchronous>, transform_indices = @transform_9, window_bounds = array<i64: 1, 32>}, {pipeline_mode = #tpu.pipeline_mode<synchronous>, transform_indices = @transform_10, window_bounds = array<i64: 32, 32>}, {pipeline_mode = #tpu.pipeline_mode<synchronous>, transform_indices = @transform_11, window_bounds = array<i64: 1, 32>}, {pipeline_mode = #tpu.pipeline_mode<synchronous>, transform_indices = @transform_12, window_bounds = array<i64: 32, 96>}, {pipeline_mode = #tpu.pipeline_mode<synchronous>, transform_indices = @transform_13, window_bounds = array<i64: 1, 96>}, {pipeline_mode = #tpu.pipeline_mode<synchronous>, transform_indices = @transform_14, window_bounds = array<i64: 32, 96>}, {pipeline_mode = #tpu.pipeline_mode<synchronous>, transform_indices = @transform_15, window_bounds = array<i64: 1, 96>}, {pipeline_mode = #tpu.pipeline_mode<synchronous>, transform_indices = @transform_16, window_bounds = array<i64: 32, 32>}, {pipeline_mode = #tpu.pipeline_mode<synchronous>, transform_indices = @transform_17, window_bounds = array<i64: 1, 32>}, {pipeline_mode = #tpu.pipeline_mode<synchronous>, transform_indices = @transform_18, window_bounds = array<i64: 32, 32>}, {pipeline_mode = #tpu.pipeline_mode<synchronous>, transform_indices = @transform_19, window_bounds = array<i64: 1, 32>}, {transform_indices = @transform_20, window_bounds = array<i64: 2, 8, 32>}, {transform_indices = @transform_21, window_bounds = array<i64: 2, 6, 32>}]} {
    %c0 = arith.constant 0 : index
    %c0_0 = arith.constant 0 : index
    %c0_1 = arith.constant 0 : index
    %0 = vector.load %arg1[%c0, %c0_0, %c0_1] : memref<2x8x32xf32, #tpu.memory_space<vmem>>, vector<2x8x32xf32>
    %c0_2 = arith.constant 0 : index
    %c0_3 = arith.constant 0 : index
    %c0_4 = arith.constant 0 : index
    %1 = vector.load %arg2[%c0_2, %c0_3, %c0_4] : memref<2x6x32xf32, #tpu.memory_space<vmem>>, vector<2x6x32xf32>
    %c0_5 = arith.constant 0 : index
    %c0_6 = arith.constant 0 : index
    %c0_7 = arith.constant 0 : index
    %2 = vector.load %arg3[%c0_5, %c0_6, %c0_7] : memref<2x8x1xf32, #tpu.memory_space<vmem>>, vector<2x8x1xf32>
    %c0_8 = arith.constant 0 : index
    %c0_9 = arith.constant 0 : index
    %c0_10 = arith.constant 0 : index
    %3 = vector.load %arg5[%c0_8, %c0_9, %c0_10] : memref<2x6x1xf32, #tpu.memory_space<vmem>>, vector<2x6x1xf32>
    %4 = vector.broadcast %2 : vector<2x8x1xf32> to vector<2x8x32xf32>
    %5 = arith.mulf %0, %4 : vector<2x8x32xf32>
    %cst = arith.constant dense<0.000000e+00> : vector<2x32xf32>
    %6 = vector.multi_reduction <add>, %5, %cst [1] : vector<2x8x32xf32> to vector<2x32xf32>
    %c0_11 = arith.constant 0 : index
    %c0_12 = arith.constant 0 : index
    %7 = vector.load %arg7[%c0_11, %c0_12] : memref<2x1xf32, #tpu.memory_space<vmem>>, vector<2x1xf32>
    %8 = vector.broadcast %7 : vector<2x1xf32> to vector<2x32xf32>
    %9 = arith.mulf %6, %8 : vector<2x32xf32>
    %10 = vector.broadcast %3 : vector<2x6x1xf32> to vector<2x6x32xf32>
    %11 = arith.mulf %1, %10 : vector<2x6x32xf32>
    %cst_13 = arith.constant dense<0.000000e+00> : vector<2x32xf32>
    %12 = vector.multi_reduction <add>, %11, %cst_13 [1] : vector<2x6x32xf32> to vector<2x32xf32>
    %c0_14 = arith.constant 0 : index
    %c0_15 = arith.constant 0 : index
    %13 = vector.load %arg8[%c0_14, %c0_15] : memref<2x1xf32, #tpu.memory_space<vmem>>, vector<2x1xf32>
    %14 = vector.broadcast %13 : vector<2x1xf32> to vector<2x32xf32>
    %15 = arith.mulf %12, %14 : vector<2x32xf32>
    %c0_16 = arith.constant 0 : index
    %c0_17 = arith.constant 0 : index
    %16 = vector.load %arg9[%c0_16, %c0_17] : memref<32x32xbf16, #tpu.memory_space<vmem>>, vector<32x32xbf16>
    %c0_18 = arith.constant 0 : index
    %c0_19 = arith.constant 0 : index
    %17 = vector.load %arg10[%c0_18, %c0_19] : memref<1x32xf32, #tpu.memory_space<vmem>>, vector<1x32xf32>
    %18 = arith.truncf %9 : vector<2x32xf32> to vector<2x32xbf16>
    %cst_20 = arith.constant dense<0.000000e+00> : vector<2x32xf32>
    %19 = tpu.matmul %18, %16, %cst_20 {dimension_numbers = #tpu.dot_dimension_numbers<[1], [0], [0], [1], [0, 0, 1, 1], [], []>} : vector<2x32xbf16>, vector<32x32xbf16>, vector<2x32xf32> -> vector<2x32xf32>
    %20 = vector.broadcast %17 : vector<1x32xf32> to vector<2x32xf32>
    %21 = arith.addf %19, %20 : vector<2x32xf32>
    %cst_21 = arith.constant 0.000000e+00 : f32
    %22 = vector.broadcast %cst_21 : f32 to vector<2x32xf32>
    %23 = arith.subf %22, %21 : vector<2x32xf32>
    %24 = math.exp %23 : vector<2x32xf32>
    %cst_22 = arith.constant 1.000000e+00 : f32
    %25 = vector.broadcast %cst_22 : f32 to vector<2x32xf32>
    %26 = arith.addf %25, %24 : vector<2x32xf32>
    %cst_23 = arith.constant 1.000000e+00 : f32
    %27 = vector.broadcast %cst_23 : f32 to vector<2x32xf32>
    %28 = arith.divf %27, %26 : vector<2x32xf32>
    %29 = vector.shape_cast %28 : vector<2x32xf32> to vector<2x1x32xf32>
    %c0_24 = arith.constant 0 : index
    %c0_25 = arith.constant 0 : index
    %30 = vector.load %arg11[%c0_24, %c0_25] : memref<32x32xbf16, #tpu.memory_space<vmem>>, vector<32x32xbf16>
    %c0_26 = arith.constant 0 : index
    %c0_27 = arith.constant 0 : index
    %31 = vector.load %arg12[%c0_26, %c0_27] : memref<1x32xf32, #tpu.memory_space<vmem>>, vector<1x32xf32>
    %32 = arith.truncf %15 : vector<2x32xf32> to vector<2x32xbf16>
    %cst_28 = arith.constant dense<0.000000e+00> : vector<2x32xf32>
    %33 = tpu.matmul %32, %30, %cst_28 {dimension_numbers = #tpu.dot_dimension_numbers<[1], [0], [0], [1], [0, 0, 1, 1], [], []>} : vector<2x32xbf16>, vector<32x32xbf16>, vector<2x32xf32> -> vector<2x32xf32>
    %34 = vector.broadcast %31 : vector<1x32xf32> to vector<2x32xf32>
    %35 = arith.addf %33, %34 : vector<2x32xf32>
    %cst_29 = arith.constant 0.000000e+00 : f32
    %36 = vector.broadcast %cst_29 : f32 to vector<2x32xf32>
    %37 = arith.subf %36, %35 : vector<2x32xf32>
    %38 = math.exp %37 : vector<2x32xf32>
    %cst_30 = arith.constant 1.000000e+00 : f32
    %39 = vector.broadcast %cst_30 : f32 to vector<2x32xf32>
    %40 = arith.addf %39, %38 : vector<2x32xf32>
    %cst_31 = arith.constant 1.000000e+00 : f32
    %41 = vector.broadcast %cst_31 : f32 to vector<2x32xf32>
    %42 = arith.divf %41, %40 : vector<2x32xf32>
    %43 = vector.shape_cast %42 : vector<2x32xf32> to vector<2x1x32xf32>
    %cst_32 = arith.constant 1.000000e+00 : f32
    %44 = vector.broadcast %cst_32 : f32 to vector<2x1x32xf32>
    %45 = arith.addf %44, %43 : vector<2x1x32xf32>
    %cst_33 = arith.constant 1.000000e+00 : f32
    %46 = vector.broadcast %cst_33 : f32 to vector<2x1x32xf32>
    %47 = arith.addf %46, %29 : vector<2x1x32xf32>
    %48 = vector.shape_cast %0 : vector<2x8x32xf32> to vector<16x32xf32>
    %c0_34 = arith.constant 0 : index
    %c0_35 = arith.constant 0 : index
    %49 = vector.load %arg13[%c0_34, %c0_35] : memref<32x96xbf16, #tpu.memory_space<vmem>>, vector<32x96xbf16>
    %c0_36 = arith.constant 0 : index
    %c0_37 = arith.constant 0 : index
    %50 = vector.load %arg14[%c0_36, %c0_37] : memref<1x96xf32, #tpu.memory_space<vmem>>, vector<1x96xf32>
    %51 = arith.truncf %48 : vector<16x32xf32> to vector<16x32xbf16>
    %cst_38 = arith.constant dense<0.000000e+00> : vector<16x96xf32>
    %52 = tpu.matmul %51, %49, %cst_38 {dimension_numbers = #tpu.dot_dimension_numbers<[1], [0], [0], [1], [0, 0, 1, 1], [], []>} : vector<16x32xbf16>, vector<32x96xbf16>, vector<16x96xf32> -> vector<16x96xf32>
    %53 = vector.broadcast %50 : vector<1x96xf32> to vector<16x96xf32>
    %54 = arith.addf %52, %53 : vector<16x96xf32>
    %55 = vector.shape_cast %54 : vector<16x96xf32> to vector<2x8x96xf32>
    %56 = vector.broadcast %2 : vector<2x8x1xf32> to vector<2x8x96xf32>
    %57 = arith.mulf %55, %56 : vector<2x8x96xf32>
    %58 = vector.shape_cast %1 : vector<2x6x32xf32> to vector<12x32xf32>
    %c0_39 = arith.constant 0 : index
    %c0_40 = arith.constant 0 : index
    %59 = vector.load %arg15[%c0_39, %c0_40] : memref<32x96xbf16, #tpu.memory_space<vmem>>, vector<32x96xbf16>
    %c0_41 = arith.constant 0 : index
    %c0_42 = arith.constant 0 : index
    %60 = vector.load %arg16[%c0_41, %c0_42] : memref<1x96xf32, #tpu.memory_space<vmem>>, vector<1x96xf32>
    %61 = arith.truncf %58 : vector<12x32xf32> to vector<12x32xbf16>
    %cst_43 = arith.constant dense<0.000000e+00> : vector<12x96xf32>
    %62 = tpu.matmul %61, %59, %cst_43 {dimension_numbers = #tpu.dot_dimension_numbers<[1], [0], [0], [1], [0, 0, 1, 1], [], []>} : vector<12x32xbf16>, vector<32x96xbf16>, vector<12x96xf32> -> vector<12x96xf32>
    %63 = vector.broadcast %60 : vector<1x96xf32> to vector<12x96xf32>
    %64 = arith.addf %62, %63 : vector<12x96xf32>
    %65 = vector.shape_cast %64 : vector<12x96xf32> to vector<2x6x96xf32>
    %66 = vector.broadcast %3 : vector<2x6x1xf32> to vector<2x6x96xf32>
    %67 = arith.mulf %65, %66 : vector<2x6x96xf32>
    %68 = vector.extract_strided_slice %57 {offsets = [0, 0, 0], sizes = [2, 8, 32], strides = [1, 1, 1]} : vector<2x8x96xf32> to vector<2x8x32xf32>
    %69 = vector.broadcast %45 : vector<2x1x32xf32> to vector<2x8x32xf32>
    %70 = arith.mulf %69, %68 : vector<2x8x32xf32>
    %71 = arith.truncf %70 : vector<2x8x32xf32> to vector<2x8x32xbf16>
    %72 = vector.extract_strided_slice %57 {offsets = [0, 0, 32], sizes = [2, 8, 32], strides = [1, 1, 1]} : vector<2x8x96xf32> to vector<2x8x32xf32>
    %73 = vector.broadcast %45 : vector<2x1x32xf32> to vector<2x8x32xf32>
    %74 = arith.mulf %73, %72 : vector<2x8x32xf32>
    %75 = arith.truncf %74 : vector<2x8x32xf32> to vector<2x8x32xbf16>
    %76 = vector.extract_strided_slice %57 {offsets = [0, 0, 64], sizes = [2, 8, 32], strides = [1, 1, 1]} : vector<2x8x96xf32> to vector<2x8x32xf32>
    %77 = vector.broadcast %45 : vector<2x1x32xf32> to vector<2x8x32xf32>
    %78 = arith.mulf %77, %76 : vector<2x8x32xf32>
    %79 = arith.truncf %78 : vector<2x8x32xf32> to vector<2x8x32xbf16>
    %80 = vector.extract_strided_slice %67 {offsets = [0, 0, 0], sizes = [2, 6, 32], strides = [1, 1, 1]} : vector<2x6x96xf32> to vector<2x6x32xf32>
    %81 = vector.broadcast %47 : vector<2x1x32xf32> to vector<2x6x32xf32>
    %82 = arith.mulf %81, %80 : vector<2x6x32xf32>
    %83 = arith.truncf %82 : vector<2x6x32xf32> to vector<2x6x32xbf16>
    %84 = vector.extract_strided_slice %67 {offsets = [0, 0, 32], sizes = [2, 6, 32], strides = [1, 1, 1]} : vector<2x6x96xf32> to vector<2x6x32xf32>
    %85 = vector.broadcast %47 : vector<2x1x32xf32> to vector<2x6x32xf32>
    %86 = arith.mulf %85, %84 : vector<2x6x32xf32>
    %87 = arith.truncf %86 : vector<2x6x32xf32> to vector<2x6x32xbf16>
    %88 = vector.extract_strided_slice %67 {offsets = [0, 0, 64], sizes = [2, 6, 32], strides = [1, 1, 1]} : vector<2x6x96xf32> to vector<2x6x32xf32>
    %89 = vector.broadcast %47 : vector<2x1x32xf32> to vector<2x6x32xf32>
    %90 = arith.mulf %89, %88 : vector<2x6x32xf32>
    %91 = arith.truncf %90 : vector<2x6x32xf32> to vector<2x6x32xbf16>
    %c0_44 = arith.constant 0 : index
    %c0_45 = arith.constant 0 : index
    %c0_46 = arith.constant 0 : index
    %92 = vector.load %arg4[%c0_44, %c0_45, %c0_46] : memref<2x1x8xf32, #tpu.memory_space<vmem>>, vector<2x1x8xf32>
    %cst_47 = arith.constant 1.000000e+00 : f32
    %93 = vector.broadcast %cst_47 : f32 to vector<2x1x8xf32>
    %94 = arith.subf %92, %93 : vector<2x1x8xf32>
    %cst_48 = arith.constant 1.000000e+30 : f32
    %95 = vector.broadcast %cst_48 : f32 to vector<2x1x8xf32>
    %96 = arith.mulf %94, %95 : vector<2x1x8xf32>
    %c0_49 = arith.constant 0 : index
    %c0_50 = arith.constant 0 : index
    %c0_51 = arith.constant 0 : index
    %97 = vector.load %arg6[%c0_49, %c0_50, %c0_51] : memref<2x1x6xf32, #tpu.memory_space<vmem>>, vector<2x1x6xf32>
    %cst_52 = arith.constant 1.000000e+00 : f32
    %98 = vector.broadcast %cst_52 : f32 to vector<2x1x6xf32>
    %99 = arith.subf %97, %98 : vector<2x1x6xf32>
    %cst_53 = arith.constant 1.000000e+30 : f32
    %100 = vector.broadcast %cst_53 : f32 to vector<2x1x6xf32>
    %101 = arith.mulf %99, %100 : vector<2x1x6xf32>
    %c0_54 = arith.constant 0 : index
    %c0_55 = arith.constant 0 : index
    %102 = vector.load %arg17[%c0_54, %c0_55] : memref<32x32xbf16, #tpu.memory_space<vmem>>, vector<32x32xbf16>
    %c0_56 = arith.constant 0 : index
    %c0_57 = arith.constant 0 : index
    %103 = vector.load %arg19[%c0_56, %c0_57] : memref<32x32xbf16, #tpu.memory_space<vmem>>, vector<32x32xbf16>
    %104 = vector.shape_cast %0 : vector<2x8x32xf32> to vector<16x32xf32>
    %c0_58 = arith.constant 0 : index
    %c0_59 = arith.constant 0 : index
    %105 = vector.load %arg18[%c0_58, %c0_59] : memref<1x32xf32, #tpu.memory_space<vmem>>, vector<1x32xf32>
    %106 = arith.truncf %104 : vector<16x32xf32> to vector<16x32xbf16>
    %cst_60 = arith.constant dense<0.000000e+00> : vector<16x32xf32>
    %107 = tpu.matmul %106, %102, %cst_60 {dimension_numbers = #tpu.dot_dimension_numbers<[1], [0], [0], [1], [0, 0, 1, 1], [], []>} : vector<16x32xbf16>, vector<32x32xbf16>, vector<16x32xf32> -> vector<16x32xf32>
    %108 = vector.broadcast %105 : vector<1x32xf32> to vector<16x32xf32>
    %109 = arith.addf %107, %108 : vector<16x32xf32>
    %110 = vector.shape_cast %1 : vector<2x6x32xf32> to vector<12x32xf32>
    %c0_61 = arith.constant 0 : index
    %c0_62 = arith.constant 0 : index
    %111 = vector.load %arg20[%c0_61, %c0_62] : memref<1x32xf32, #tpu.memory_space<vmem>>, vector<1x32xf32>
    %112 = arith.truncf %110 : vector<12x32xf32> to vector<12x32xbf16>
    %cst_63 = arith.constant dense<0.000000e+00> : vector<12x32xf32>
    %113 = tpu.matmul %112, %103, %cst_63 {dimension_numbers = #tpu.dot_dimension_numbers<[1], [0], [0], [1], [0, 0, 1, 1], [], []>} : vector<12x32xbf16>, vector<32x32xbf16>, vector<12x32xf32> -> vector<12x32xf32>
    %114 = vector.broadcast %111 : vector<1x32xf32> to vector<12x32xf32>
    %115 = arith.addf %113, %114 : vector<12x32xf32>
    %116 = vector.extract_strided_slice %75 {offsets = [0, 0, 0], sizes = [2, 8, 16], strides = [1, 1, 1]} : vector<2x8x32xbf16> to vector<2x8x16xbf16>
    %117 = vector.extract_strided_slice %71 {offsets = [0, 0, 0], sizes = [2, 8, 16], strides = [1, 1, 1]} : vector<2x8x32xbf16> to vector<2x8x16xbf16>
    "tpu.trace_start"() <{level = 10 : i32, message = "btd,bsd->bts"}> : () -> ()
    %cst_64 = arith.constant dense<0.000000e+00> : vector<2x8x8xf32>
    %118 = tpu.matmul %116, %117, %cst_64 {dimension_numbers = #tpu.dot_dimension_numbers<[2], [2], [1], [1], [0, 0, 0, 1, 1, 1], [0], [0]>} : vector<2x8x16xbf16>, vector<2x8x16xbf16>, vector<2x8x8xf32> -> vector<2x8x8xf32>
    "tpu.trace_stop"() : () -> ()
    %cst_65 = arith.constant 2.500000e-01 : f32
    %119 = vector.broadcast %cst_65 : f32 to vector<2x8x8xf32>
    %120 = arith.mulf %118, %119 : vector<2x8x8xf32>
    %121 = vector.broadcast %96 : vector<2x1x8xf32> to vector<2x8x8xf32>
    %122 = arith.addf %120, %121 : vector<2x8x8xf32>
    %cst_66 = arith.constant dense<0xFF800000> : vector<2x8xf32>
    %123 = vector.multi_reduction <maximumf>, %122, %cst_66 [2] : vector<2x8x8xf32> to vector<2x8xf32>
    %124 = vector.shape_cast %123 : vector<2x8xf32> to vector<2x8x1xf32>
    %125 = vector.broadcast %124 : vector<2x8x1xf32> to vector<2x8x8xf32>
    %126 = arith.subf %122, %125 : vector<2x8x8xf32>
    %127 = math.exp %126 : vector<2x8x8xf32>
    %cst_67 = arith.constant dense<0.000000e+00> : vector<2x8xf32>
    %128 = vector.multi_reduction <add>, %127, %cst_67 [2] : vector<2x8x8xf32> to vector<2x8xf32>
    %129 = vector.shape_cast %128 : vector<2x8xf32> to vector<2x8x1xf32>
    %130 = tpu.reciprocal %129 {approx = true} : vector<2x8x1xf32> -> vector<2x8x1xf32>
    %131 = vector.broadcast %130 : vector<2x8x1xf32> to vector<2x8x8xf32>
    %132 = arith.mulf %127, %131 : vector<2x8x8xf32>
    %133 = arith.truncf %132 : vector<2x8x8xf32> to vector<2x8x8xbf16>
    %134 = vector.extract_strided_slice %79 {offsets = [0, 0, 0], sizes = [2, 8, 16], strides = [1, 1, 1]} : vector<2x8x32xbf16> to vector<2x8x16xbf16>
    "tpu.trace_start"() <{level = 10 : i32, message = "bts,bsd->btd"}> : () -> ()
    %cst_68 = arith.constant dense<0.000000e+00> : vector<2x8x16xf32>
    %135 = tpu.matmul %133, %134, %cst_68 {dimension_numbers = #tpu.dot_dimension_numbers<[2], [1], [1], [2], [0, 0, 0, 1, 1, 2], [0], [0]>} : vector<2x8x8xbf16>, vector<2x8x16xbf16>, vector<2x8x16xf32> -> vector<2x8x16xf32>
    "tpu.trace_stop"() : () -> ()
    %136 = vector.shape_cast %135 : vector<2x8x16xf32> to vector<16x16xf32>
    %137 = vector.extract_strided_slice %102 {offsets = [0, 0], sizes = [16, 32], strides = [1, 1]} : vector<32x32xbf16> to vector<16x32xbf16>
    %138 = arith.truncf %136 : vector<16x16xf32> to vector<16x16xbf16>
    %cst_69 = arith.constant dense<0.000000e+00> : vector<16x32xf32>
    %139 = tpu.matmul %138, %137, %cst_69 {dimension_numbers = #tpu.dot_dimension_numbers<[1], [0], [0], [1], [0, 0, 1, 1], [], []>} : vector<16x16xbf16>, vector<16x32xbf16>, vector<16x32xf32> -> vector<16x32xf32>
    %140 = arith.addf %109, %139 : vector<16x32xf32>
    %141 = vector.extract_strided_slice %87 {offsets = [0, 0, 0], sizes = [2, 6, 16], strides = [1, 1, 1]} : vector<2x6x32xbf16> to vector<2x6x16xbf16>
    %142 = vector.extract_strided_slice %83 {offsets = [0, 0, 0], sizes = [2, 6, 16], strides = [1, 1, 1]} : vector<2x6x32xbf16> to vector<2x6x16xbf16>
    "tpu.trace_start"() <{level = 10 : i32, message = "btd,bsd->bts"}> : () -> ()
    %cst_70 = arith.constant dense<0.000000e+00> : vector<2x6x6xf32>
    %143 = tpu.matmul %141, %142, %cst_70 {dimension_numbers = #tpu.dot_dimension_numbers<[2], [2], [1], [1], [0, 0, 0, 1, 1, 1], [0], [0]>} : vector<2x6x16xbf16>, vector<2x6x16xbf16>, vector<2x6x6xf32> -> vector<2x6x6xf32>
    "tpu.trace_stop"() : () -> ()
    %cst_71 = arith.constant 2.500000e-01 : f32
    %144 = vector.broadcast %cst_71 : f32 to vector<2x6x6xf32>
    %145 = arith.mulf %143, %144 : vector<2x6x6xf32>
    %146 = vector.broadcast %101 : vector<2x1x6xf32> to vector<2x6x6xf32>
    %147 = arith.addf %145, %146 : vector<2x6x6xf32>
    %cst_72 = arith.constant dense<0xFF800000> : vector<2x6xf32>
    %148 = vector.multi_reduction <maximumf>, %147, %cst_72 [2] : vector<2x6x6xf32> to vector<2x6xf32>
    %149 = vector.shape_cast %148 : vector<2x6xf32> to vector<2x6x1xf32>
    %150 = vector.broadcast %149 : vector<2x6x1xf32> to vector<2x6x6xf32>
    %151 = arith.subf %147, %150 : vector<2x6x6xf32>
    %152 = math.exp %151 : vector<2x6x6xf32>
    %cst_73 = arith.constant dense<0.000000e+00> : vector<2x6xf32>
    %153 = vector.multi_reduction <add>, %152, %cst_73 [2] : vector<2x6x6xf32> to vector<2x6xf32>
    %154 = vector.shape_cast %153 : vector<2x6xf32> to vector<2x6x1xf32>
    %155 = tpu.reciprocal %154 {approx = true} : vector<2x6x1xf32> -> vector<2x6x1xf32>
    %156 = vector.broadcast %155 : vector<2x6x1xf32> to vector<2x6x6xf32>
    %157 = arith.mulf %152, %156 : vector<2x6x6xf32>
    %158 = arith.truncf %157 : vector<2x6x6xf32> to vector<2x6x6xbf16>
    %159 = vector.extract_strided_slice %91 {offsets = [0, 0, 0], sizes = [2, 6, 16], strides = [1, 1, 1]} : vector<2x6x32xbf16> to vector<2x6x16xbf16>
    "tpu.trace_start"() <{level = 10 : i32, message = "bts,bsd->btd"}> : () -> ()
    %cst_74 = arith.constant dense<0.000000e+00> : vector<2x6x16xf32>
    %160 = tpu.matmul %158, %159, %cst_74 {dimension_numbers = #tpu.dot_dimension_numbers<[2], [1], [1], [2], [0, 0, 0, 1, 1, 2], [0], [0]>} : vector<2x6x6xbf16>, vector<2x6x16xbf16>, vector<2x6x16xf32> -> vector<2x6x16xf32>
    "tpu.trace_stop"() : () -> ()
    %161 = vector.shape_cast %160 : vector<2x6x16xf32> to vector<12x16xf32>
    %162 = vector.extract_strided_slice %103 {offsets = [0, 0], sizes = [16, 32], strides = [1, 1]} : vector<32x32xbf16> to vector<16x32xbf16>
    %163 = arith.truncf %161 : vector<12x16xf32> to vector<12x16xbf16>
    %cst_75 = arith.constant dense<0.000000e+00> : vector<12x32xf32>
    %164 = tpu.matmul %163, %162, %cst_75 {dimension_numbers = #tpu.dot_dimension_numbers<[1], [0], [0], [1], [0, 0, 1, 1], [], []>} : vector<12x16xbf16>, vector<16x32xbf16>, vector<12x32xf32> -> vector<12x32xf32>
    %165 = arith.addf %115, %164 : vector<12x32xf32>
    %166 = vector.extract_strided_slice %75 {offsets = [0, 0, 16], sizes = [2, 8, 16], strides = [1, 1, 1]} : vector<2x8x32xbf16> to vector<2x8x16xbf16>
    %167 = vector.extract_strided_slice %71 {offsets = [0, 0, 16], sizes = [2, 8, 16], strides = [1, 1, 1]} : vector<2x8x32xbf16> to vector<2x8x16xbf16>
    "tpu.trace_start"() <{level = 10 : i32, message = "btd,bsd->bts"}> : () -> ()
    %cst_76 = arith.constant dense<0.000000e+00> : vector<2x8x8xf32>
    %168 = tpu.matmul %166, %167, %cst_76 {dimension_numbers = #tpu.dot_dimension_numbers<[2], [2], [1], [1], [0, 0, 0, 1, 1, 1], [0], [0]>} : vector<2x8x16xbf16>, vector<2x8x16xbf16>, vector<2x8x8xf32> -> vector<2x8x8xf32>
    "tpu.trace_stop"() : () -> ()
    %cst_77 = arith.constant 2.500000e-01 : f32
    %169 = vector.broadcast %cst_77 : f32 to vector<2x8x8xf32>
    %170 = arith.mulf %168, %169 : vector<2x8x8xf32>
    %171 = vector.broadcast %96 : vector<2x1x8xf32> to vector<2x8x8xf32>
    %172 = arith.addf %170, %171 : vector<2x8x8xf32>
    %cst_78 = arith.constant dense<0xFF800000> : vector<2x8xf32>
    %173 = vector.multi_reduction <maximumf>, %172, %cst_78 [2] : vector<2x8x8xf32> to vector<2x8xf32>
    %174 = vector.shape_cast %173 : vector<2x8xf32> to vector<2x8x1xf32>
    %175 = vector.broadcast %174 : vector<2x8x1xf32> to vector<2x8x8xf32>
    %176 = arith.subf %172, %175 : vector<2x8x8xf32>
    %177 = math.exp %176 : vector<2x8x8xf32>
    %cst_79 = arith.constant dense<0.000000e+00> : vector<2x8xf32>
    %178 = vector.multi_reduction <add>, %177, %cst_79 [2] : vector<2x8x8xf32> to vector<2x8xf32>
    %179 = vector.shape_cast %178 : vector<2x8xf32> to vector<2x8x1xf32>
    %180 = tpu.reciprocal %179 {approx = true} : vector<2x8x1xf32> -> vector<2x8x1xf32>
    %181 = vector.broadcast %180 : vector<2x8x1xf32> to vector<2x8x8xf32>
    %182 = arith.mulf %177, %181 : vector<2x8x8xf32>
    %183 = arith.truncf %182 : vector<2x8x8xf32> to vector<2x8x8xbf16>
    %184 = vector.extract_strided_slice %79 {offsets = [0, 0, 16], sizes = [2, 8, 16], strides = [1, 1, 1]} : vector<2x8x32xbf16> to vector<2x8x16xbf16>
    "tpu.trace_start"() <{level = 10 : i32, message = "bts,bsd->btd"}> : () -> ()
    %cst_80 = arith.constant dense<0.000000e+00> : vector<2x8x16xf32>
    %185 = tpu.matmul %183, %184, %cst_80 {dimension_numbers = #tpu.dot_dimension_numbers<[2], [1], [1], [2], [0, 0, 0, 1, 1, 2], [0], [0]>} : vector<2x8x8xbf16>, vector<2x8x16xbf16>, vector<2x8x16xf32> -> vector<2x8x16xf32>
    "tpu.trace_stop"() : () -> ()
    %186 = vector.shape_cast %185 : vector<2x8x16xf32> to vector<16x16xf32>
    %187 = vector.extract_strided_slice %102 {offsets = [16, 0], sizes = [16, 32], strides = [1, 1]} : vector<32x32xbf16> to vector<16x32xbf16>
    %188 = arith.truncf %186 : vector<16x16xf32> to vector<16x16xbf16>
    %cst_81 = arith.constant dense<0.000000e+00> : vector<16x32xf32>
    %189 = tpu.matmul %188, %187, %cst_81 {dimension_numbers = #tpu.dot_dimension_numbers<[1], [0], [0], [1], [0, 0, 1, 1], [], []>} : vector<16x16xbf16>, vector<16x32xbf16>, vector<16x32xf32> -> vector<16x32xf32>
    %190 = arith.addf %140, %189 : vector<16x32xf32>
    %191 = vector.extract_strided_slice %87 {offsets = [0, 0, 16], sizes = [2, 6, 16], strides = [1, 1, 1]} : vector<2x6x32xbf16> to vector<2x6x16xbf16>
    %192 = vector.extract_strided_slice %83 {offsets = [0, 0, 16], sizes = [2, 6, 16], strides = [1, 1, 1]} : vector<2x6x32xbf16> to vector<2x6x16xbf16>
    "tpu.trace_start"() <{level = 10 : i32, message = "btd,bsd->bts"}> : () -> ()
    %cst_82 = arith.constant dense<0.000000e+00> : vector<2x6x6xf32>
    %193 = tpu.matmul %191, %192, %cst_82 {dimension_numbers = #tpu.dot_dimension_numbers<[2], [2], [1], [1], [0, 0, 0, 1, 1, 1], [0], [0]>} : vector<2x6x16xbf16>, vector<2x6x16xbf16>, vector<2x6x6xf32> -> vector<2x6x6xf32>
    "tpu.trace_stop"() : () -> ()
    %cst_83 = arith.constant 2.500000e-01 : f32
    %194 = vector.broadcast %cst_83 : f32 to vector<2x6x6xf32>
    %195 = arith.mulf %193, %194 : vector<2x6x6xf32>
    %196 = vector.broadcast %101 : vector<2x1x6xf32> to vector<2x6x6xf32>
    %197 = arith.addf %195, %196 : vector<2x6x6xf32>
    %cst_84 = arith.constant dense<0xFF800000> : vector<2x6xf32>
    %198 = vector.multi_reduction <maximumf>, %197, %cst_84 [2] : vector<2x6x6xf32> to vector<2x6xf32>
    %199 = vector.shape_cast %198 : vector<2x6xf32> to vector<2x6x1xf32>
    %200 = vector.broadcast %199 : vector<2x6x1xf32> to vector<2x6x6xf32>
    %201 = arith.subf %197, %200 : vector<2x6x6xf32>
    %202 = math.exp %201 : vector<2x6x6xf32>
    %cst_85 = arith.constant dense<0.000000e+00> : vector<2x6xf32>
    %203 = vector.multi_reduction <add>, %202, %cst_85 [2] : vector<2x6x6xf32> to vector<2x6xf32>
    %204 = vector.shape_cast %203 : vector<2x6xf32> to vector<2x6x1xf32>
    %205 = tpu.reciprocal %204 {approx = true} : vector<2x6x1xf32> -> vector<2x6x1xf32>
    %206 = vector.broadcast %205 : vector<2x6x1xf32> to vector<2x6x6xf32>
    %207 = arith.mulf %202, %206 : vector<2x6x6xf32>
    %208 = arith.truncf %207 : vector<2x6x6xf32> to vector<2x6x6xbf16>
    %209 = vector.extract_strided_slice %91 {offsets = [0, 0, 16], sizes = [2, 6, 16], strides = [1, 1, 1]} : vector<2x6x32xbf16> to vector<2x6x16xbf16>
    "tpu.trace_start"() <{level = 10 : i32, message = "bts,bsd->btd"}> : () -> ()
    %cst_86 = arith.constant dense<0.000000e+00> : vector<2x6x16xf32>
    %210 = tpu.matmul %208, %209, %cst_86 {dimension_numbers = #tpu.dot_dimension_numbers<[2], [1], [1], [2], [0, 0, 0, 1, 1, 2], [0], [0]>} : vector<2x6x6xbf16>, vector<2x6x16xbf16>, vector<2x6x16xf32> -> vector<2x6x16xf32>
    "tpu.trace_stop"() : () -> ()
    %211 = vector.shape_cast %210 : vector<2x6x16xf32> to vector<12x16xf32>
    %212 = vector.extract_strided_slice %103 {offsets = [16, 0], sizes = [16, 32], strides = [1, 1]} : vector<32x32xbf16> to vector<16x32xbf16>
    %213 = arith.truncf %211 : vector<12x16xf32> to vector<12x16xbf16>
    %cst_87 = arith.constant dense<0.000000e+00> : vector<12x32xf32>
    %214 = tpu.matmul %213, %212, %cst_87 {dimension_numbers = #tpu.dot_dimension_numbers<[1], [0], [0], [1], [0, 0, 1, 1], [], []>} : vector<12x16xbf16>, vector<16x32xbf16>, vector<12x32xf32> -> vector<12x32xf32>
    %215 = arith.addf %165, %214 : vector<12x32xf32>
    %216 = vector.shape_cast %190 : vector<16x32xf32> to vector<2x8x32xf32>
    %c0_88 = arith.constant 0 : index
    %c0_89 = arith.constant 0 : index
    %c0_90 = arith.constant 0 : index
    %217 = vector.load %arg21[%c0_88, %c0_89, %c0_90] : memref<2x8x32xf32, #tpu.memory_space<vmem>>, vector<2x8x32xf32>
    tpu.vector_store %arg21[%c0_88, %c0_89, %c0_90], %216 {strides = array<i32>} : memref<2x8x32xf32, #tpu.memory_space<vmem>>, vector<2x8x32xf32>,
    %218 = vector.shape_cast %215 : vector<12x32xf32> to vector<2x6x32xf32>
    %c0_91 = arith.constant 0 : index
    %c0_92 = arith.constant 0 : index
    %c0_93 = arith.constant 0 : index
    %219 = vector.load %arg22[%c0_91, %c0_92, %c0_93] : memref<2x6x32xf32, #tpu.memory_space<vmem>>, vector<2x6x32xf32>
    tpu.vector_store %arg22[%c0_91, %c0_92, %c0_93], %218 {strides = array<i32>} : memref<2x6x32xf32, #tpu.memory_space<vmem>>, vector<2x6x32xf32>,
    return
  }
  func.func @transform_0(%arg0: i32) -> (i32, i32, i32) {
    %c0_i32 = arith.constant 0 : i32
    %c0_i32_0 = arith.constant 0 : i32
    %c0_i32_1 = arith.constant 0 : i32
    return %arg0, %c0_i32, %c0_i32_0 : i32, i32, i32
  }
  func.func @transform_1(%arg0: i32) -> (i32, i32, i32) {
    %c0_i32 = arith.constant 0 : i32
    %c0_i32_0 = arith.constant 0 : i32
    %c0_i32_1 = arith.constant 0 : i32
    return %arg0, %c0_i32, %c0_i32_0 : i32, i32, i32
  }
  func.func @transform_2(%arg0: i32) -> (i32, i32, i32) {
    %c0_i32 = arith.constant 0 : i32
    %c0_i32_0 = arith.constant 0 : i32
    %c0_i32_1 = arith.constant 0 : i32
    return %arg0, %c0_i32, %c0_i32_0 : i32, i32, i32
  }
  func.func @transform_3(%arg0: i32) -> (i32, i32, i32) {
    %c0_i32 = arith.constant 0 : i32
    %c0_i32_0 = arith.constant 0 : i32
    %c0_i32_1 = arith.constant 0 : i32
    return %arg0, %c0_i32, %c0_i32_0 : i32, i32, i32
  }
  func.func @transform_4(%arg0: i32) -> (i32, i32, i32) {
    %c0_i32 = arith.constant 0 : i32
    %c0_i32_0 = arith.constant 0 : i32
    %c0_i32_1 = arith.constant 0 : i32
    return %arg0, %c0_i32, %c0_i32_0 : i32, i32, i32
  }
  func.func @transform_5(%arg0: i32) -> (i32, i32, i32) {
    %c0_i32 = arith.constant 0 : i32
    %c0_i32_0 = arith.constant 0 : i32
    %c0_i32_1 = arith.constant 0 : i32
    return %arg0, %c0_i32, %c0_i32_0 : i32, i32, i32
  }
  func.func @transform_6(%arg0: i32) -> (i32, i32) {
    %c0_i32 = arith.constant 0 : i32
    %c0_i32_0 = arith.constant 0 : i32
    return %arg0, %c0_i32 : i32, i32
  }
  func.func @transform_7(%arg0: i32) -> (i32, i32) {
    %c0_i32 = arith.constant 0 : i32
    %c0_i32_0 = arith.constant 0 : i32
    return %arg0, %c0_i32 : i32, i32
  }
  func.func @transform_8(%arg0: i32) -> (i32, i32) {
    %c0_i32 = arith.constant 0 : i32
    %c0_i32_0 = arith.constant 0 : i32
    %c0_i32_1 = arith.constant 0 : i32
    return %c0_i32, %c0_i32_0 : i32, i32
  }
  func.func @transform_9(%arg0: i32) -> (i32, i32) {
    %c0_i32 = arith.constant 0 : i32
    %c0_i32_0 = arith.constant 0 : i32
    %c0_i32_1 = arith.constant 0 : i32
    return %c0_i32, %c0_i32_0 : i32, i32
  }
  func.func @transform_10(%arg0: i32) -> (i32, i32) {
    %c0_i32 = arith.constant 0 : i32
    %c0_i32_0 = arith.constant 0 : i32
    %c0_i32_1 = arith.constant 0 : i32
    return %c0_i32, %c0_i32_0 : i32, i32
  }
  func.func @transform_11(%arg0: i32) -> (i32, i32) {
    %c0_i32 = arith.constant 0 : i32
    %c0_i32_0 = arith.constant 0 : i32
    %c0_i32_1 = arith.constant 0 : i32
    return %c0_i32, %c0_i32_0 : i32, i32
  }
  func.func @transform_12(%arg0: i32) -> (i32, i32) {
    %c0_i32 = arith.constant 0 : i32
    %c0_i32_0 = arith.constant 0 : i32
    %c0_i32_1 = arith.constant 0 : i32
    return %c0_i32, %c0_i32_0 : i32, i32
  }
  func.func @transform_13(%arg0: i32) -> (i32, i32) {
    %c0_i32 = arith.constant 0 : i32
    %c0_i32_0 = arith.constant 0 : i32
    %c0_i32_1 = arith.constant 0 : i32
    return %c0_i32, %c0_i32_0 : i32, i32
  }
  func.func @transform_14(%arg0: i32) -> (i32, i32) {
    %c0_i32 = arith.constant 0 : i32
    %c0_i32_0 = arith.constant 0 : i32
    %c0_i32_1 = arith.constant 0 : i32
    return %c0_i32, %c0_i32_0 : i32, i32
  }
  func.func @transform_15(%arg0: i32) -> (i32, i32) {
    %c0_i32 = arith.constant 0 : i32
    %c0_i32_0 = arith.constant 0 : i32
    %c0_i32_1 = arith.constant 0 : i32
    return %c0_i32, %c0_i32_0 : i32, i32
  }
  func.func @transform_16(%arg0: i32) -> (i32, i32) {
    %c0_i32 = arith.constant 0 : i32
    %c0_i32_0 = arith.constant 0 : i32
    %c0_i32_1 = arith.constant 0 : i32
    return %c0_i32, %c0_i32_0 : i32, i32
  }
  func.func @transform_17(%arg0: i32) -> (i32, i32) {
    %c0_i32 = arith.constant 0 : i32
    %c0_i32_0 = arith.constant 0 : i32
    %c0_i32_1 = arith.constant 0 : i32
    return %c0_i32, %c0_i32_0 : i32, i32
  }
  func.func @transform_18(%arg0: i32) -> (i32, i32) {
    %c0_i32 = arith.constant 0 : i32
    %c0_i32_0 = arith.constant 0 : i32
    %c0_i32_1 = arith.constant 0 : i32
    return %c0_i32, %c0_i32_0 : i32, i32
  }
  func.func @transform_19(%arg0: i32) -> (i32, i32) {
    %c0_i32 = arith.constant 0 : i32
    %c0_i32_0 = arith.constant 0 : i32
    %c0_i32_1 = arith.constant 0 : i32
    return %c0_i32, %c0_i32_0 : i32, i32
  }
  func.func @transform_20(%arg0: i32) -> (i32, i32, i32) {
    %c0_i32 = arith.constant 0 : i32
    %c0_i32_0 = arith.constant 0 : i32
    %c0_i32_1 = arith.constant 0 : i32
    return %arg0, %c0_i32, %c0_i32_0 : i32, i32, i32
  }
  func.func @transform_21(%arg0: i32) -> (i32, i32, i32) {
    %c0_i32 = arith.constant 0 : i32
    %c0_i32_0 = arith.constant 0 : i32
    %c0_i32_1 = arith.constant 0 : i32
    return %arg0, %c0_i32, %c0_i32_0 : i32, i32, i32
  }
}

</mosaic_0001>

<llo_original>
// kernel: multiblock_forward.7
$region0: #{multiblock_forward.7}
  #allocation0 [shape = 'u32[]', space=smem, size = 0x4, offset = 0x4, fixed_abs, tag = 'smem constant byte address 0x4 - core index']
  #allocation1 [shape = 'u32[72,128]{1,0:T(1,128)}', space=vmem, size = 0x9000, scoped, tag = 'internal scratch']
  %s0 = inlined_call_operand.vmem [shape: f32[2,8,32], index: 0, kind: input, shape index: {}]
  %s1 = inlined_call_operand.vmem [shape: f32[2,6,32], index: 1, kind: input, shape index: {}]
  %s2 = inlined_call_operand.vmem [shape: bf16[32,32], index: 2, kind: input, shape index: {}]
  %s3 = inlined_call_operand.vmem [shape: f32[1,32], index: 3, kind: input, shape index: {}]
  %s4 = inlined_call_operand.vmem [shape: bf16[32,32], index: 4, kind: input, shape index: {}]
  %s5 = inlined_call_operand.vmem [shape: f32[1,32], index: 5, kind: input, shape index: {}]
  %s6 = inlined_call_operand.vmem [shape: f32[2,8,32], index: 6, kind: output, shape index: {0}]
  %s7 = inlined_call_operand.vmem [shape: f32[2,6,32], index: 7, kind: output, shape index: {1}]
  %8 = xla_tuple %s6, %s7
  %s9 = sld [smem:[#allocation0]]
  $region42: #{multiblock_forward.7} parent=0
    _
  %s11 = ssub.s32 1, %s9
  %s12 = scalar_select 0, %s11, %s9
  // Predicated region
  $region2: #{multiblock_forward.7} parent=0 // pred_check
    _
  $region3: #{multiblock_forward.7} parent=0 // pred_check_branch
    %14 = sbr.rel (0) target = $region5
  $region4: #{multiblock_forward.7} parent=0 // pred_region
    _
  $region5: #{multiblock_forward.7} parent=0 // pred_fallthru
    _
  // Predicated region
  $region6: #{multiblock_forward.7} parent=0 // pred_check
    _
  $region7: #{multiblock_forward.7} parent=0 // pred_check_branch
    %16 = sbr.rel (0) target = $region9
  $region8: #{multiblock_forward.7} parent=0 // pred_region
    _
  $region9: #{multiblock_forward.7} parent=0 // pred_fallthru
    _
  // Predicated region
  $region10: #{multiblock_forward.7} parent=0 // pred_check
    _
  $region11: #{multiblock_forward.7} parent=0 // pred_check_branch
    %18 = sbr.rel (0) target = $region13
  $region12: #{multiblock_forward.7} parent=0 // pred_region
    _
  $region13: #{multiblock_forward.7} parent=0 // pred_fallthru
    _
  // Predicated region
  $region14: #{multiblock_forward.7} parent=0 // pred_check
    _
  $region15: #{multiblock_forward.7} parent=0 // pred_check_branch
    %20 = sbr.rel (0) target = $region17
  $region16: #{multiblock_forward.7} parent=0 // pred_region
    _
  $region17: #{multiblock_forward.7} parent=0 // pred_fallthru
    _
  // Predicated region
  $region18: #{multiblock_forward.7} parent=0 // pred_check
    _
  $region19: #{multiblock_forward.7} parent=0 // pred_check_branch
    %22 = sbr.rel (0) target = $region21
  $region20: #{multiblock_forward.7} parent=0 // pred_region
    _
  $region21: #{multiblock_forward.7} parent=0 // pred_fallthru
    _
  // Predicated region
  $region22: #{multiblock_forward.7} parent=0 // pred_check
    _
  $region23: #{multiblock_forward.7} parent=0 // pred_check_branch
    %24 = sbr.rel (0) target = $region25
  $region24: #{multiblock_forward.7} parent=0 // pred_region
    _
  $region25: #{multiblock_forward.7} parent=0 // pred_fallthru
    _
  %v26 = vld [vmem:[%s0] sm:$0xff]
  %v27 = vld [vmem:[%s0 + $0x8] sm:$0xff]
  %v28 = vld [vmem:[%s2] sm:$0xf]
  %v29 = vld [vmem:[%s2 + $0x4] sm:$0xf]
  %v30 = vld [vmem:[%s2 + $0x8] sm:$0xf]
  %v31 = vld [vmem:[%s2 + $0xc] sm:$0xf]
  %v32 = vld [vmem:[%s3] sm:$0x1]
  %v33 = vpack.c.bf16 %v27, %v26
  %v35 = vperm.slane %v32, 0
  %v41 = vunpack.c.l.b16 %v28
  %v42 = vunpack.c.l.b16 %v29
  %v43 = vunpack.c.l.b16 %v30
  %v44 = vunpack.c.l.b16 %v31
  %v45 = vpack.c.b16 %v42, %v41
  %v46 = vpack.c.b16 %v44, %v43
  %vm49 = vcmask 261120
  %v51 = vsel %vm49, %v33, 0
  %53 = vmatpush.bf16.msra.mxu0 0
  %54 = vmatpush.bf16.msra.mxu0 0
  %55 = vmatpush.bf16.msra.mxu0 0
  %56 = vmatpush.bf16.msra.mxu0 0
  %57 = vmatpush.bf16.msra.mxu0 0
  %58 = vmatpush.bf16.msra.mxu0 0
  %59 = vmatpush.bf16.msra.mxu0 %v46
  %60 = vmatpush.bf16.msra.mxu0 %v45
  %61 = vmatmul.bf16.gmra.mxu0 %v51
  %v62 = vpop.f32.mrf.mxu0
  %v63 = vadd.f32 %v35, %v62
  %v64 = vpop.f32.mrf.mxu0
  %v65 = vadd.f32 %v35, %v64
  %66 = vdwg.mxu0
  %67 = vst.msk [vmem:[%s6] sm:$0xff] %vm49, %v63
  %68 = vst.msk [vmem:[%s6 + $0x8] sm:$0xff] %vm49, %v65
  %v69 = vld [vmem:[%s1] sm:$0x3f]
  %v70 = vld [vmem:[%s1 + $0x8] sm:$0x3f]
  %v73 = vrot.slane %v69, 2
  %v74 = vrot.slane %v69, 4
  %v75 = vrot.slane %v70, 2
  %v76 = vrot.slane %v70, 4
  %v77 = vld [vmem:[%s4] sm:$0xf]
  %v78 = vld [vmem:[%s4 + $0x4] sm:$0xf]
  %v79 = vld [vmem:[%s4 + $0x8] sm:$0xf]
  %v80 = vld [vmem:[%s4 + $0xc] sm:$0xf]
  %v81 = vld [vmem:[%s5] sm:$0x1]
  %82 = vst [vmem:[#allocation1] ss:$4 sm:$0xff] %v69
  %s83 = scalar_lea.vmem [#allocation1], 1
  %84 = vst [vmem:[%s83] ss:$4 sm:$0xff] %v73
  %s85 = scalar_lea.vmem [#allocation1], 2
  %86 = vst [vmem:[%s85] ss:$4 sm:$0xff] %v74
  %s87 = scalar_lea.vmem [#allocation1], 3
  %88 = vst [vmem:[%s87] ss:$4 sm:$0xff] %v70
  %s89 = scalar_lea.vmem [#allocation1], 32
  %90 = vst [vmem:[%s89] ss:$4 sm:$0xff] %v75
  %s91 = scalar_lea.vmem [#allocation1], 33
  %92 = vst [vmem:[%s91] ss:$4 sm:$0xff] %v76
  %v93 = vld.sshfl [vmem:[#allocation1] sm:$0xff pattern:$0x73625140]
  %v94 = vld.sshfl [vmem:[#allocation1 + $0x20] sm:$0xff pattern:$0x73625140]
  %v97 = vpack.c.bf16 %v94, %v93
  %v99 = vperm.slane %v81, 0
  %v105 = vunpack.c.l.b16 %v77
  %v106 = vunpack.c.l.b16 %v78
  %v107 = vunpack.c.l.b16 %v79
  %v108 = vunpack.c.l.b16 %v80
  %v109 = vpack.c.b16 %v106, %v105
  %v110 = vpack.c.b16 %v108, %v107
  %v114 = vsel %vm49, %v97, 0
  %116 = vmatpush.bf16.msra.mxu0 0
  %117 = vmatpush.bf16.msra.mxu0 0
  %118 = vmatpush.bf16.msra.mxu0 0
  %119 = vmatpush.bf16.msra.mxu0 0
  %120 = vmatpush.bf16.msra.mxu0 0
  %121 = vmatpush.bf16.msra.mxu0 0
  %122 = vmatpush.bf16.msra.mxu0 %v110
  %123 = vmatpush.bf16.msra.mxu0 %v109
  %124 = vmatmul.bf16.gmra.mxu0 %v114
  %v125 = vpop.f32.mrf.mxu0
  %v126 = vadd.f32 %v99, %v125
  %v127 = vpop.f32.mrf.mxu0
  %v128 = vadd.f32 %v99, %v127
  %129 = vdwg.mxu0
  %v132 = vrot.slane %v126, 2
  %v133 = vrot.slane %v126, 4
  %v134 = vrot.slane %v126, 6
  %v135 = vrot.slane %v128, 2
  %136 = vst [vmem:[#allocation1] ss:$4 sm:$0xff] %v126
  %s137 = scalar_lea.vmem [#allocation1], 1
  %138 = vst [vmem:[%s137] ss:$4 sm:$0xff] %v132
  %s139 = scalar_lea.vmem [#allocation1], 2
  %140 = vst [vmem:[%s139] ss:$4 sm:$0xff] %v133
  %v141 = vld.sshfl [vmem:[#allocation1] sm:$0xff pattern:$0x73625140]
  %s142 = scalar_lea.vmem [#allocation1], 32
  %143 = vst [vmem:[%s142] ss:$4 sm:$0xff] %v134
  %s144 = scalar_lea.vmem [#allocation1], 33
  %145 = vst [vmem:[%s144] ss:$4 sm:$0xff] %v128
  %s146 = scalar_lea.vmem [#allocation1], 34
  %147 = vst [vmem:[%s146] ss:$4 sm:$0xff] %v135
  %v148 = vld.sshfl [vmem:[#allocation1 + $0x20] sm:$0xff pattern:$0x73625140]
  %vm151 = vcmask 259072
  %152 = vst.msk [vmem:[%s7] sm:$0x3f] %vm151, %v141
  %153 = vst.msk [vmem:[%s7 + $0x8] sm:$0x3f] %vm151, %v148
  // Predicated region
  $region26: #{multiblock_forward.7} parent=0 // pred_check
    _
  $region27: #{multiblock_forward.7} parent=0 // pred_check_branch
    %155 = sbr.rel (0) target = $region29
  $region28: #{multiblock_forward.7} parent=0 // pred_region
    _
  $region29: #{multiblock_forward.7} parent=0 // pred_fallthru
    _
  // Predicated region
  $region30: #{multiblock_forward.7} parent=0 // pred_check
    _
  $region31: #{multiblock_forward.7} parent=0 // pred_check_branch
    %157 = sbr.rel (0) target = $region33
  $region32: #{multiblock_forward.7} parent=0 // pred_region
    _
  $region33: #{multiblock_forward.7} parent=0 // pred_fallthru
    _
  // Predicated region
  $region34: #{multiblock_forward.7} parent=0 // pred_check
    _
  $region35: #{multiblock_forward.7} parent=0 // pred_check_branch
    %159 = sbr.rel (0) target = $region37
  $region36: #{multiblock_forward.7} parent=0 // pred_region
    _
  $region37: #{multiblock_forward.7} parent=0 // pred_fallthru
    _
  // Predicated region
  $region38: #{multiblock_forward.7} parent=0 // pred_check
    _
  $region39: #{multiblock_forward.7} parent=0 // pred_check_branch
    %161 = sbr.rel (0) target = $region41
  $region40: #{multiblock_forward.7} parent=0 // pred_region
    _
  $region41: #{multiblock_forward.7} parent=0 // pred_fallthru
    _

// kernel: multiblock_forward.9
$region0: #{multiblock_forward.9}
  #allocation0 [shape = 'u32[]', space=smem, size = 0x4, offset = 0x4, fixed_abs, tag = 'smem constant byte address 0x4 - core index']
  #allocation1 [shape = 'u32[72,128]{1,0:T(1,128)}', space=vmem, size = 0x9000, scoped, tag = 'internal scratch']
  %s0 = inlined_call_operand.vmem [shape: f32[2,6,32], index: 0, kind: input, shape index: {}]
  %s1 = inlined_call_operand.vmem [shape: f32[2,8,32], index: 1, kind: input, shape index: {}]
  %s2 = inlined_call_operand.vmem [shape: f32[2,6,1], index: 2, kind: input, shape index: {}]
  %s3 = inlined_call_operand.vmem [shape: f32[2,1,6], index: 3, kind: input, shape index: {}]
  %s4 = inlined_call_operand.vmem [shape: f32[2,8,1], index: 4, kind: input, shape index: {}]
  %s5 = inlined_call_operand.vmem [shape: bf16[32,64], index: 5, kind: input, shape index: {}]
  %s6 = inlined_call_operand.vmem [shape: f32[1,64], index: 6, kind: input, shape index: {}]
  %s7 = inlined_call_operand.vmem [shape: bf16[32,32], index: 7, kind: input, shape index: {}]
  %s8 = inlined_call_operand.vmem [shape: f32[1,32], index: 8, kind: input, shape index: {}]
  %s9 = inlined_call_operand.vmem [shape: bf16[32,32], index: 9, kind: input, shape index: {}]
  %s10 = inlined_call_operand.vmem [shape: bf16[32,32], index: 10, kind: input, shape index: {}]
  %s11 = inlined_call_operand.vmem [shape: f32[1,32], index: 11, kind: input, shape index: {}]
  %s12 = inlined_call_operand.vmem [shape: f32[2,8,32], index: 12, kind: output, shape index: {}]
  %s13 = sld [smem:[#allocation0]]
  $region58: #{multiblock_forward.9} parent=0
    _
  %s15 = ssub.s32 1, %s13
  %s16 = scalar_select 0, %s15, %s13
  // Predicated region
  $region2: #{multiblock_forward.9} parent=0 // pred_check
    _
  $region3: #{multiblock_forward.9} parent=0 // pred_check_branch
    %18 = sbr.rel (0) target = $region5
  $region4: #{multiblock_forward.9} parent=0 // pred_region
    _
  $region5: #{multiblock_forward.9} parent=0 // pred_fallthru
    _
  // Predicated region
  $region6: #{multiblock_forward.9} parent=0 // pred_check
    _
  $region7: #{multiblock_forward.9} parent=0 // pred_check_branch
    %20 = sbr.rel (0) target = $region9
  $region8: #{multiblock_forward.9} parent=0 // pred_region
    _
  $region9: #{multiblock_forward.9} parent=0 // pred_fallthru
    _
  // Predicated region
  $region10: #{multiblock_forward.9} parent=0 // pred_check
    _
  $region11: #{multiblock_forward.9} parent=0 // pred_check_branch
    %22 = sbr.rel (0) target = $region13
  $region12: #{multiblock_forward.9} parent=0 // pred_region
    _
  $region13: #{multiblock_forward.9} parent=0 // pred_fallthru
    _
  // Predicated region
  $region14: #{multiblock_forward.9} parent=0 // pred_check
    _
  $region15: #{multiblock_forward.9} parent=0 // pred_check_branch
    %24 = sbr.rel (0) target = $region17
  $region16: #{multiblock_forward.9} parent=0 // pred_region
    _
  $region17: #{multiblock_forward.9} parent=0 // pred_fallthru
    _
  // Predicated region
  $region18: #{multiblock_forward.9} parent=0 // pred_check
    _
  $region19: #{multiblock_forward.9} parent=0 // pred_check_branch
    %26 = sbr.rel (0) target = $region21
  $region20: #{multiblock_forward.9} parent=0 // pred_region
    _
  $region21: #{multiblock_forward.9} parent=0 // pred_fallthru
    _
  // Predicated region
  $region22: #{multiblock_forward.9} parent=0 // pred_check
    _
  $region23: #{multiblock_forward.9} parent=0 // pred_check_branch
    %28 = sbr.rel (0) target = $region25
  $region24: #{multiblock_forward.9} parent=0 // pred_region
    _
  $region25: #{multiblock_forward.9} parent=0 // pred_fallthru
    _
  // Predicated region
  $region26: #{multiblock_forward.9} parent=0 // pred_check
    _
  $region27: #{multiblock_forward.9} parent=0 // pred_check_branch
    %30 = sbr.rel (0) target = $region29
  $region28: #{multiblock_forward.9} parent=0 // pred_region
    _
  $region29: #{multiblock_forward.9} parent=0 // pred_fallthru
    _
  // Predicated region
  $region30: #{multiblock_forward.9} parent=0 // pred_check
    _
  $region31: #{multiblock_forward.9} parent=0 // pred_check_branch
    %32 = sbr.rel (0) target = $region33
  $region32: #{multiblock_forward.9} parent=0 // pred_region
    _
  $region33: #{multiblock_forward.9} parent=0 // pred_fallthru
    _
  // Predicated region
  $region34: #{multiblock_forward.9} parent=0 // pred_check
    _
  $region35: #{multiblock_forward.9} parent=0 // pred_check_branch
    %34 = sbr.rel (0) target = $region37
  $region36: #{multiblock_forward.9} parent=0 // pred_region
    _
  $region37: #{multiblock_forward.9} parent=0 // pred_fallthru
    _
  // Predicated region
  $region38: #{multiblock_forward.9} parent=0 // pred_check
    _
  $region39: #{multiblock_forward.9} parent=0 // pred_check_branch
    %36 = sbr.rel (0) target = $region41
  $region40: #{multiblock_forward.9} parent=0 // pred_region
    _
  $region41: #{multiblock_forward.9} parent=0 // pred_fallthru
    _
  // Predicated region
  $region42: #{multiblock_forward.9} parent=0 // pred_check
    _
  $region43: #{multiblock_forward.9} parent=0 // pred_check_branch
    %38 = sbr.rel (0) target = $region45
  $region44: #{multiblock_forward.9} parent=0 // pred_region
    _
  $region45: #{multiblock_forward.9} parent=0 // pred_fallthru
    _
  // Predicated region
  $region46: #{multiblock_forward.9} parent=0 // pred_check
    _
  $region47: #{multiblock_forward.9} parent=0 // pred_check_branch
    %40 = sbr.rel (0) target = $region49
  $region48: #{multiblock_forward.9} parent=0 // pred_region
    _
  $region49: #{multiblock_forward.9} parent=0 // pred_fallthru
    _
  %v42 = vld [vmem:[%s0] sm:$0x3f]
  %v43 = vld [vmem:[%s0 + $0x8] sm:$0x3f]
  %v44 = vld [vmem:[%s1] sm:$0xff]
  %v45 = vld [vmem:[%s1 + $0x8] sm:$0xff]
  %v48 = vrot.slane %v42, 2
  %v49 = vrot.slane %v42, 4
  %v50 = vrot.slane %v43, 2
  %v51 = vrot.slane %v43, 4
  %v52 = vld [vmem:[%s5] sm:$0xf]
  %v53 = vld [vmem:[%s5 + $0x4] sm:$0xf]
  %v54 = vld [vmem:[%s5 + $0x8] sm:$0xf]
  %v55 = vld [vmem:[%s5 + $0xc] sm:$0xf]
  %v56 = vld [vmem:[%s6] sm:$0x1]
  %57 = vst [vmem:[#allocation1] ss:$4 sm:$0xff] %v42
  %s58 = scalar_lea.vmem [#allocation1], 1
  %59 = vst [vmem:[%s58] ss:$4 sm:$0xff] %v48
  %s60 = scalar_lea.vmem [#allocation1], 2
  %61 = vst [vmem:[%s60] ss:$4 sm:$0xff] %v49
  %s62 = scalar_lea.vmem [#allocation1], 3
  %63 = vst [vmem:[%s62] ss:$4 sm:$0xff] %v43
  %s64 = scalar_lea.vmem [#allocation1], 32
  %65 = vst [vmem:[%s64] ss:$4 sm:$0xff] %v50
  %s66 = scalar_lea.vmem [#allocation1], 33
  %67 = vst [vmem:[%s66] ss:$4 sm:$0xff] %v51
  %v68 = vld.sshfl [vmem:[#allocation1] sm:$0xff pattern:$0x73625140]
  %v69 = vld.sshfl [vmem:[#allocation1 + $0x20] sm:$0xff pattern:$0x73625140]
  %v72 = vpack.c.bf16 %v69, %v68
  %v74 = vperm.slane %v56, 0
  %v80 = vunpack.c.l.b16 %v52
  %v81 = vunpack.c.l.b16 %v53
  %v82 = vunpack.c.l.b16 %v54
  %v83 = vunpack.c.l.b16 %v55
  %v84 = vpack.c.b16 %v81, %v80
  %v85 = vpack.c.b16 %v83, %v82
  %vm88 = vcmask 261120
  %v90 = vsel %vm88, %v72, 0
  %92 = vmatpush.bf16.msra.mxu0 0
  %93 = vmatpush.bf16.msra.mxu0 0
  %94 = vmatpush.bf16.msra.mxu0 0
  %95 = vmatpush.bf16.msra.mxu0 0
  %96 = vmatpush.bf16.msra.mxu0 0
  %97 = vmatpush.bf16.msra.mxu0 0
  %98 = vmatpush.bf16.msra.mxu0 %v85
  %99 = vmatpush.bf16.msra.mxu0 %v84
  %100 = vmatmul.bf16.gmra.mxu0 %v90
  %v101 = vpop.f32.mrf.mxu0
  %v102 = vadd.f32 %v74, %v101
  %v103 = vpop.f32.mrf.mxu0
  %v104 = vadd.f32 %v74, %v103
  %105 = vdwg.mxu0
  %v108 = vrot.slane %v102, 2
  %v109 = vrot.slane %v102, 4
  %v110 = vrot.slane %v102, 6
  %v111 = vrot.slane %v104, 2
  %v116 = vld [vmem:[%s2] sm:$0x3f]
  %v117 = vld [vmem:[%s2 + $0x8] sm:$0x3f]
  %119 = vset.pattern.permute.xlu0 0
  %120 = vperm.xlu0 %119, %v116
  %v121 = vpop.permute.xlu0 %120
  %123 = vset.pattern.permute.xlu0 0
  %124 = vperm.xlu0 %123, %v117
  %v125 = vpop.permute.xlu0 %124
  %v127 = vunpack.c.l.s4 269488144
  %v128 = vunpack.c.0.s8 %v127
  %v129 = vperm.slane %v121, %v128
  %v131 = vunpack.c.l.s4 842150450
  %v132 = vunpack.c.0.s8 %v131
  %v133 = vperm.slane %v121, %v132
  %v135 = vunpack.c.l.s4 1414812756
  %v136 = vunpack.c.0.s8 %v135
  %v137 = vperm.slane %v121, %v136
  %v139 = vunpack.c.l.s4 269488144
  %v140 = vunpack.c.0.s8 %v139
  %v141 = vperm.slane %v125, %v140
  %v143 = vunpack.c.l.s4 842150450
  %v144 = vunpack.c.0.s8 %v143
  %v145 = vperm.slane %v125, %v144
  %v147 = vunpack.c.l.s4 1414812756
  %v148 = vunpack.c.0.s8 %v147
  %v149 = vperm.slane %v125, %v148
  %v156 = vmul.f32 %v102, %v129
  %v157 = vmul.f32 %v108, %v133
  %v158 = vmul.f32 %v109, %v137
  %v159 = vmul.f32 %v110, %v141
  %v160 = vmul.f32 %v104, %v145
  %v161 = vmul.f32 %v111, %v149
  %v162 = vld [vmem:[%s7] sm:$0xf]
  %v163 = vld [vmem:[%s7 + $0x4] sm:$0xf]
  %v164 = vld [vmem:[%s7 + $0x8] sm:$0xf]
  %v165 = vld [vmem:[%s7 + $0xc] sm:$0xf]
  %v166 = vld [vmem:[%s8] sm:$0x1]
  %v167 = vpack.c.bf16 %v45, %v44
  %v169 = vperm.slane %v166, 0
  %v175 = vunpack.c.l.b16 %v162
  %v176 = vunpack.c.l.b16 %v163
  %v177 = vunpack.c.l.b16 %v164
  %v178 = vunpack.c.l.b16 %v165
  %v179 = vpack.c.b16 %v176, %v175
  %v180 = vpack.c.b16 %v178, %v177
  %v184 = vsel %vm88, %v167, 0
  %186 = vmatpush.bf16.msra.mxu0 0
  %187 = vmatpush.bf16.msra.mxu0 0
  %188 = vmatpush.bf16.msra.mxu0 0
  %189 = vmatpush.bf16.msra.mxu0 0
  %190 = vmatpush.bf16.msra.mxu0 0
  %191 = vmatpush.bf16.msra.mxu0 0
  %192 = vmatpush.bf16.msra.mxu0 %v180
  %193 = vmatpush.bf16.msra.mxu0 %v179
  %194 = vmatmul.bf16.gmra.mxu0 %v184
  %v195 = vpop.f32.mrf.mxu0
  %v196 = vadd.f32 %v169, %v195
  %v197 = vpop.f32.mrf.mxu0
  %v198 = vadd.f32 %v169, %v197
  %199 = vdwg.mxu0
  %v200 = vld [vmem:[%s4] sm:$0xff]
  %v201 = vld [vmem:[%s4 + $0x8] sm:$0xff]
  %203 = vset.pattern.permute.xlu0 0
  %204 = vperm.xlu0 %203, %v200
  %v205 = vpop.permute.xlu0 %204
  %208 = vset.pattern.permute.xlu0 0
  %209 = vperm.xlu0 %208, %v201
  %v210 = vpop.permute.xlu0 %209
  %v212 = vmul.f32 %v196, %v205
  %v213 = vmul.f32 %v198, %v210
  %v214 = vld [vmem:[%s3] sm:$0x1]
  %v215 = vld [vmem:[%s3 + $0x1] sm:$0x1]
  %v216 = vsub.f32 %v214, 1.0
  %v217 = vsub.f32 %v215, 1.0
  %v218 = vmul.f32 %v216, 1e+30
  %v219 = vmul.f32 %v217, 1e+30
  %v220 = vld [vmem:[%s9] sm:$0xf]
  %v221 = vld [vmem:[%s9 + $0x4] sm:$0xf]
  %v222 = vld [vmem:[%s9 + $0x8] sm:$0xf]
  %v223 = vld [vmem:[%s9 + $0xc] sm:$0xf]
  %v224 = vld [vmem:[%s11] sm:$0x1]
  %v226 = vperm.slane %v224, 0
  %v232 = vunpack.c.l.b16 %v220
  %v233 = vunpack.c.l.b16 %v221
  %v234 = vunpack.c.l.b16 %v222
  %v235 = vunpack.c.l.b16 %v223
  %v236 = vpack.c.b16 %v233, %v232
  %v237 = vpack.c.b16 %v235, %v234
  %240 = vmatpush.bf16.msra.mxu0 0
  %241 = vmatpush.bf16.msra.mxu0 0
  %242 = vmatpush.bf16.msra.mxu0 0
  %243 = vmatpush.bf16.msra.mxu0 0
  %244 = vmatpush.bf16.msra.mxu0 0
  %245 = vmatpush.bf16.msra.mxu0 0
  %246 = vmatpush.bf16.msra.mxu0 %v237
  %247 = vmatpush.bf16.msra.mxu0 %v236
  %248 = vmatmul.bf16.gmra.mxu0 %v184
  %v249 = vpop.f32.mrf.mxu0
  %v250 = vadd.f32 %v226, %v249
  %v251 = vpop.f32.mrf.mxu0
  %v252 = vadd.f32 %v226, %v251
  %253 = vdwg.mxu0
  %v254 = vpack.c.bf16 %v212, %v212
  %v255 = vpack.c.bf16 %v213, %v213
  %262 = vst [vmem:[#allocation1] ss:$4 sm:$0xff] %v156
  %s263 = scalar_lea.vmem [#allocation1], 1
  %264 = vst [vmem:[%s263] ss:$4 sm:$0xff] %v157
  %s265 = scalar_lea.vmem [#allocation1], 2
  %266 = vst [vmem:[%s265] ss:$4 sm:$0xff] %v158
  %v267 = vld.sshfl [vmem:[#allocation1] sm:$0xff pattern:$0x73625140]
  %s268 = scalar_lea.vmem [#allocation1], 32
  %269 = vst [vmem:[%s268] ss:$4 sm:$0xff] %v159
  %s270 = scalar_lea.vmem [#allocation1], 33
  %271 = vst [vmem:[%s270] ss:$4 sm:$0xff] %v160
  %s272 = scalar_lea.vmem [#allocation1], 34
  %273 = vst [vmem:[%s272] ss:$4 sm:$0xff] %v161
  %v274 = vld.sshfl [vmem:[#allocation1 + $0x20] sm:$0xff pattern:$0x73625140]
  %v277 = vpack.c.bf16 %v267, %v267
  %v278 = vpack.c.bf16 %v274, %v274
  %279 = vst [vmem:[#allocation1] ss:$4 sm:$0xff] %v156
  %s280 = scalar_lea.vmem [#allocation1], 1
  %281 = vst [vmem:[%s280] ss:$4 sm:$0xff] %v157
  %s282 = scalar_lea.vmem [#allocation1], 2
  %283 = vst [vmem:[%s282] ss:$4 sm:$0xff] %v158
  %v284 = vld.sshfl [vmem:[#allocation1] sm:$0xff pattern:$0x73625140]
  %s285 = scalar_lea.vmem [#allocation1], 32
  %286 = vst [vmem:[%s285] ss:$4 sm:$0xff] %v159
  %s287 = scalar_lea.vmem [#allocation1], 33
  %288 = vst [vmem:[%s287] ss:$4 sm:$0xff] %v160
  %s289 = scalar_lea.vmem [#allocation1], 34
  %290 = vst [vmem:[%s289] ss:$4 sm:$0xff] %v161
  %v291 = vld.sshfl [vmem:[#allocation1 + $0x20] sm:$0xff pattern:$0x73625140]
  %v294 = vpack.c.bf16 %v284, %v284
  %v295 = vpack.c.bf16 %v291, %v291
  %v296 = vld [vmem:[%s10] sm:$0xf]
  %v297 = vld [vmem:[%s10 + $0x4] sm:$0xf]
  %v298 = vld [vmem:[%s10 + $0x8] sm:$0xf]
  %v299 = vld [vmem:[%s10 + $0xc] sm:$0xf]
  %vm300 = vcmask 130048
  %v302 = vsel %vm300, %v254, 0
  %v305 = vsel %vm300, %v277, 0
  %307 = vmatpush.bf16.xpose.msra.mxu0 0
  %308 = vmatpush.bf16.xpose.msra.mxu0 0
  %309 = vmatpush.bf16.xpose.msra.mxu0 0
  %310 = vmatpush.bf16.xpose.msra.mxu0 0
  %311 = vmatpush.bf16.xpose.msra.mxu0 0
  %312 = vmatpush.bf16.xpose.msra.mxu0 0
  %313 = vmatpush.bf16.xpose.msra.mxu0 0
  %314 = vmatpush.bf16.xpose.msra.mxu0 %v305
  %315 = vmatmul.bf16.gmra.mxu0 %v302
  %v316 = vpop.f32.mrf.mxu0
  %v317 = vadd.f32 0.0, %v316
  %v318 = vpop.f32.mrf.mxu0
  %319 = vdwg.mxu0
  %v321 = vsel %vm300, %v255, 0
  %v324 = vsel %vm300, %v278, 0
  %326 = vmatpush.bf16.xpose.msra.mxu0 0
  %327 = vmatpush.bf16.xpose.msra.mxu0 0
  %328 = vmatpush.bf16.xpose.msra.mxu0 0
  %329 = vmatpush.bf16.xpose.msra.mxu0 0
  %330 = vmatpush.bf16.xpose.msra.mxu0 0
  %331 = vmatpush.bf16.xpose.msra.mxu0 0
  %332 = vmatpush.bf16.xpose.msra.mxu0 0
  %333 = vmatpush.bf16.xpose.msra.mxu0 %v324
  %334 = vmatmul.bf16.gmra.mxu0 %v321
  %v335 = vpop.f32.mrf.mxu0
  %v336 = vadd.f32 0.0, %v335
  %v337 = vpop.f32.mrf.mxu0
  %338 = vdwg.mxu0
  %v339 = vmul.f32 %v317, 0.25
  %v340 = vmul.f32 %v336, 0.25
  %v343 = vperm.slane %v218, 0
  %v344 = vperm.slane %v219, 0
  %v347 = vadd.f32 %v339, %v343
  %v348 = vadd.f32 %v340, %v344
  %vm349 = vcmask 48128
  %v350 = vsel %vm349, %v347, -inf
  %351 = vmax.xlane.f32.xlu0 %v350
  %v352 = vpop.xlane.xlu0 %351
  %v353 = vsel %vm349, %v348, -inf
  %354 = vmax.xlane.f32.xlu0 %v353
  %v355 = vpop.xlane.xlu0 %354
  %v356 = vsub.f32 %v347, %v352
  %v357 = vsub.f32 %v348, %v355
  %v358 = vmul.f32 %v356, 1.442695
  %v359 = vpow.pop %v358
  %v360 = vmul.f32 %v357, 1.442695
  %v361 = vpow.pop %v360
  %v362 = vsel %vm349, %v359, 0.0
  %363 = vadd.xlane.f32.xlu0 %v362
  %v364 = vpop.xlane.xlu0 %363
  %v365 = vsel %vm349, %v361, 0.0
  %366 = vadd.xlane.f32.xlu0 %v365
  %v367 = vpop.xlane.xlu0 %366
  %v368 = vrcp.pop %v364
  %v369 = vrcp.pop %v367
  %v370 = vmul.f32 %v359, %v368
  %v371 = vmul.f32 %v361, %v369
  %v372 = vpack.c.bf16 %v370, %v370
  %v373 = vpack.c.bf16 %v371, %v371
  %v375 = vunpack.c.l.b16 %v294
  %v376 = vpack.c.b16 %v375, %v375
  %377 = vrot.lane.b32.xlu0 %v376, 96
  %v378 = vpop.permute.xlu0 %377
  %v380 = vsel %vm349, %v372, 0
  %vm382 = vcmask 1042432
  %v384 = vsel %vm382, %v378, 0
  %386 = vmatpush.bf16.msra.mxu0 0
  %387 = vmatpush.bf16.msra.mxu0 0
  %388 = vmatpush.bf16.msra.mxu0 0
  %389 = vmatpush.bf16.msra.mxu0 0
  %390 = vmatpush.bf16.msra.mxu0 0
  %391 = vmatpush.bf16.msra.mxu0 0
  %392 = vmatpush.bf16.msra.mxu0 0
  %393 = vmatpush.bf16.msra.mxu0 %v384
  %394 = vmatmul.bf16.gmra.mxu0 %v380
  %v395 = vpop.f32.mrf.mxu0
  %v396 = vadd.f32 0.0, %v395
  %v397 = vpop.f32.mrf.mxu0
  %398 = vdwg.mxu0
  %v400 = vunpack.c.l.b16 %v295
  %v401 = vpack.c.b16 %v400, %v400
  %402 = vrot.lane.b32.xlu0 %v401, 96
  %v403 = vpop.permute.xlu0 %402
  %v405 = vsel %vm349, %v373, 0
  %v408 = vsel %vm382, %v403, 0
  %410 = vmatpush.bf16.msra.mxu0 0
  %411 = vmatpush.bf16.msra.mxu0 0
  %412 = vmatpush.bf16.msra.mxu0 0
  %413 = vmatpush.bf16.msra.mxu0 0
  %414 = vmatpush.bf16.msra.mxu0 0
  %415 = vmatpush.bf16.msra.mxu0 0
  %416 = vmatpush.bf16.msra.mxu0 0
  %417 = vmatpush.bf16.msra.mxu0 %v408
  %418 = vmatmul.bf16.gmra.mxu0 %v405
  %v419 = vpop.f32.mrf.mxu0
  %v420 = vadd.f32 0.0, %v419
  %v421 = vpop.f32.mrf.mxu0
  %422 = vdwg.mxu0
  %v423 = vpack.c.bf16 %v420, %v396
  %v426 = vunpack.c.l.b16 %v296
  %v427 = vunpack.c.l.b16 %v297
  %v428 = vpack.c.b16 %v427, %v426
  %v431 = vsel %vm300, %v423, 0
  %433 = vmatpush.bf16.msra.mxu0 0
  %434 = vmatpush.bf16.msra.mxu0 0
  %435 = vmatpush.bf16.msra.mxu0 0
  %436 = vmatpush.bf16.msra.mxu0 0
  %437 = vmatpush.bf16.msra.mxu0 0
  %438 = vmatpush.bf16.msra.mxu0 0
  %439 = vmatpush.bf16.msra.mxu0 0
  %440 = vmatpush.bf16.msra.mxu0 %v428
  %441 = vmatmul.bf16.gmra.mxu0 %v431
  %v442 = vpop.f32.mrf.mxu0
  %v443 = vadd.f32 0.0, %v442
  %v444 = vpop.f32.mrf.mxu0
  %v445 = vadd.f32 0.0, %v444
  %446 = vdwg.mxu0
  %v447 = vadd.f32 %v250, %v443
  %v448 = vadd.f32 %v252, %v445
  %v450 = vunpack.c.l.b16 %v254
  %v451 = vpack.c.b16 %v450, %v450
  %452 = vrot.lane.b32.xlu0 %v451, 112
  %v453 = vpop.permute.xlu0 %452
  %v455 = vunpack.c.l.b16 %v277
  %v456 = vpack.c.b16 %v455, %v455
  %457 = vrot.lane.b32.xlu0 %v456, 112
  %v458 = vpop.permute.xlu0 %457
  %v460 = vsel %vm300, %v453, 0
  %v463 = vsel %vm300, %v458, 0
  %465 = vmatpush.bf16.xpose.msra.mxu0 0
  %466 = vmatpush.bf16.xpose.msra.mxu0 0
  %467 = vmatpush.bf16.xpose.msra.mxu0 0
  %468 = vmatpush.bf16.xpose.msra.mxu0 0
  %469 = vmatpush.bf16.xpose.msra.mxu0 0
  %470 = vmatpush.bf16.xpose.msra.mxu0 0
  %471 = vmatpush.bf16.xpose.msra.mxu0 0
  %472 = vmatpush.bf16.xpose.msra.mxu0 %v463
  %473 = vmatmul.bf16.gmra.mxu0 %v460
  %v474 = vpop.f32.mrf.mxu0
  %v475 = vadd.f32 0.0, %v474
  %v476 = vpop.f32.mrf.mxu0
  %477 = vdwg.mxu0
  %v479 = vunpack.c.l.b16 %v255
  %v480 = vpack.c.b16 %v479, %v479
  %481 = vrot.lane.b32.xlu0 %v480, 112
  %v482 = vpop.permute.xlu0 %481
  %v484 = vunpack.c.l.b16 %v278
  %v485 = vpack.c.b16 %v484, %v484
  %486 = vrot.lane.b32.xlu0 %v485, 112
  %v487 = vpop.permute.xlu0 %486
  %v489 = vsel %vm300, %v482, 0
  %v492 = vsel %vm300, %v487, 0
  %494 = vmatpush.bf16.xpose.msra.mxu0 0
  %495 = vmatpush.bf16.xpose.msra.mxu0 0
  %496 = vmatpush.bf16.xpose.msra.mxu0 0
  %497 = vmatpush.bf16.xpose.msra.mxu0 0
  %498 = vmatpush.bf16.xpose.msra.mxu0 0
  %499 = vmatpush.bf16.xpose.msra.mxu0 0
  %500 = vmatpush.bf16.xpose.msra.mxu0 0
  %501 = vmatpush.bf16.xpose.msra.mxu0 %v492
  %502 = vmatmul.bf16.gmra.mxu0 %v489
  %v503 = vpop.f32.mrf.mxu0
  %v504 = vadd.f32 0.0, %v503
  %v505 = vpop.f32.mrf.mxu0
  %506 = vdwg.mxu0
  %v507 = vmul.f32 %v475, 0.25
  %v508 = vmul.f32 %v504, 0.25
  %v509 = vadd.f32 %v507, %v343
  %v510 = vadd.f32 %v508, %v344
  %v511 = vsel %vm349, %v509, -inf
  %512 = vmax.xlane.f32.xlu0 %v511
  %v513 = vpop.xlane.xlu0 %512
  %v514 = vsel %vm349, %v510, -inf
  %515 = vmax.xlane.f32.xlu0 %v514
  %v516 = vpop.xlane.xlu0 %515
  %v517 = vsub.f32 %v509, %v513
  %v518 = vsub.f32 %v510, %v516
  %v519 = vmul.f32 %v517, 1.442695
  %v520 = vpow.pop %v519
  %v521 = vmul.f32 %v518, 1.442695
  %v522 = vpow.pop %v521
  %v523 = vsel %vm349, %v520, 0.0
  %524 = vadd.xlane.f32.xlu0 %v523
  %v525 = vpop.xlane.xlu0 %524
  %v526 = vsel %vm349, %v522, 0.0
  %527 = vadd.xlane.f32.xlu0 %v526
  %v528 = vpop.xlane.xlu0 %527
  %v529 = vrcp.pop %v525
  %v530 = vrcp.pop %v528
  %v531 = vmul.f32 %v520, %v529
  %v532 = vmul.f32 %v522, %v530
  %v533 = vpack.c.bf16 %v531, %v531
  %v534 = vpack.c.bf16 %v532, %v532
  %535 = vrot.lane.b32.xlu0 %v376, 80
  %v536 = vpop.permute.xlu0 %535
  %v538 = vsel %vm349, %v533, 0
  %v541 = vsel %vm382, %v536, 0
  %543 = vmatpush.bf16.msra.mxu0 0
  %544 = vmatpush.bf16.msra.mxu0 0
  %545 = vmatpush.bf16.msra.mxu0 0
  %546 = vmatpush.bf16.msra.mxu0 0
  %547 = vmatpush.bf16.msra.mxu0 0
  %548 = vmatpush.bf16.msra.mxu0 0
  %549 = vmatpush.bf16.msra.mxu0 0
  %550 = vmatpush.bf16.msra.mxu0 %v541
  %551 = vmatmul.bf16.gmra.mxu0 %v538
  %v552 = vpop.f32.mrf.mxu0
  %v553 = vadd.f32 0.0, %v552
  %v554 = vpop.f32.mrf.mxu0
  %555 = vdwg.mxu0
  %556 = vrot.lane.b32.xlu0 %v401, 80
  %v557 = vpop.permute.xlu0 %556
  %v559 = vsel %vm349, %v534, 0
  %v562 = vsel %vm382, %v557, 0
  %564 = vmatpush.bf16.msra.mxu0 0
  %565 = vmatpush.bf16.msra.mxu0 0
  %566 = vmatpush.bf16.msra.mxu0 0
  %567 = vmatpush.bf16.msra.mxu0 0
  %568 = vmatpush.bf16.msra.mxu0 0
  %569 = vmatpush.bf16.msra.mxu0 0
  %570 = vmatpush.bf16.msra.mxu0 0
  %571 = vmatpush.bf16.msra.mxu0 %v562
  %572 = vmatmul.bf16.gmra.mxu0 %v559
  %v573 = vpop.f32.mrf.mxu0
  %v574 = vadd.f32 0.0, %v573
  %v575 = vpop.f32.mrf.mxu0
  %576 = vdwg.mxu0
  %v577 = vpack.c.bf16 %v574, %v553
  %v580 = vunpack.c.l.b16 %v298
  %v581 = vunpack.c.l.b16 %v299
  %v582 = vpack.c.b16 %v581, %v580
  %v585 = vsel %vm300, %v577, 0
  %587 = vmatpush.bf16.msra.mxu0 0
  %588 = vmatpush.bf16.msra.mxu0 0
  %589 = vmatpush.bf16.msra.mxu0 0
  %590 = vmatpush.bf16.msra.mxu0 0
  %591 = vmatpush.bf16.msra.mxu0 0
  %592 = vmatpush.bf16.msra.mxu0 0
  %593 = vmatpush.bf16.msra.mxu0 0
  %594 = vmatpush.bf16.msra.mxu0 %v582
  %595 = vmatmul.bf16.gmra.mxu0 %v585
  %v596 = vpop.f32.mrf.mxu0
  %v597 = vadd.f32 0.0, %v596
  %v598 = vpop.f32.mrf.mxu0
  %v599 = vadd.f32 0.0, %v598
  %600 = vdwg.mxu0
  %v601 = vadd.f32 %v447, %v597
  %v602 = vadd.f32 %v448, %v599
  %603 = vst.msk [vmem:[%s12] sm:$0xff] %vm88, %v601
  %604 = vst.msk [vmem:[%s12 + $0x8] sm:$0xff] %vm88, %v602
  // Predicated region
  $region50: #{multiblock_forward.9} parent=0 // pred_check
    _
  $region51: #{multiblock_forward.9} parent=0 // pred_check_branch
    %606 = sbr.rel (0) target = $region53
  $region52: #{multiblock_forward.9} parent=0 // pred_region
    _
  $region53: #{multiblock_forward.9} parent=0 // pred_fallthru
    _
  // Predicated region
  $region54: #{multiblock_forward.9} parent=0 // pred_check
    _
  $region55: #{multiblock_forward.9} parent=0 // pred_check_branch
    %608 = sbr.rel (0) target = $region57
  $region56: #{multiblock_forward.9} parent=0 // pred_region
    _
  $region57: #{multiblock_forward.9} parent=0 // pred_fallthru
    _

// kernel: multiblock_forward.8
$region0: #{multiblock_forward.8}
  #allocation0 [shape = 'u32[]', space=smem, size = 0x4, offset = 0x4, fixed_abs, tag = 'smem constant byte address 0x4 - core index']
  #allocation1 [shape = 'u32[72,128]{1,0:T(1,128)}', space=vmem, size = 0x9000, scoped, tag = 'internal scratch']
  %s0 = inlined_call_operand.vmem [shape: f32[2,8,32], index: 0, kind: input, shape index: {}]
  %s1 = inlined_call_operand.vmem [shape: f32[2,6,32], index: 1, kind: input, shape index: {}]
  %s2 = inlined_call_operand.vmem [shape: f32[2,8,1], index: 2, kind: input, shape index: {}]
  %s3 = inlined_call_operand.vmem [shape: f32[2,1,8], index: 3, kind: input, shape index: {}]
  %s4 = inlined_call_operand.vmem [shape: f32[2,6,1], index: 4, kind: input, shape index: {}]
  %s5 = inlined_call_operand.vmem [shape: bf16[32,64], index: 5, kind: input, shape index: {}]
  %s6 = inlined_call_operand.vmem [shape: f32[1,64], index: 6, kind: input, shape index: {}]
  %s7 = inlined_call_operand.vmem [shape: bf16[32,32], index: 7, kind: input, shape index: {}]
  %s8 = inlined_call_operand.vmem [shape: f32[1,32], index: 8, kind: input, shape index: {}]
  %s9 = inlined_call_operand.vmem [shape: bf16[32,32], index: 9, kind: input, shape index: {}]
  %s10 = inlined_call_operand.vmem [shape: bf16[32,32], index: 10, kind: input, shape index: {}]
  %s11 = inlined_call_operand.vmem [shape: f32[1,32], index: 11, kind: input, shape index: {}]
  %s12 = inlined_call_operand.vmem [shape: f32[2,6,32], index: 12, kind: output, shape index: {}]
  %s13 = sld [smem:[#allocation0]]
  $region58: #{multiblock_forward.8} parent=0
    _
  %s15 = ssub.s32 1, %s13
  %s16 = scalar_select 0, %s15, %s13
  // Predicated region
  $region2: #{multiblock_forward.8} parent=0 // pred_check
    _
  $region3: #{multiblock_forward.8} parent=0 // pred_check_branch
    %18 = sbr.rel (0) target = $region5
  $region4: #{multiblock_forward.8} parent=0 // pred_region
    _
  $region5: #{multiblock_forward.8} parent=0 // pred_fallthru
    _
  // Predicated region
  $region6: #{multiblock_forward.8} parent=0 // pred_check
    _
  $region7: #{multiblock_forward.8} parent=0 // pred_check_branch
    %20 = sbr.rel (0) target = $region9
  $region8: #{multiblock_forward.8} parent=0 // pred_region
    _
  $region9: #{multiblock_forward.8} parent=0 // pred_fallthru
    _
  // Predicated region
  $region10: #{multiblock_forward.8} parent=0 // pred_check
    _
  $region11: #{multiblock_forward.8} parent=0 // pred_check_branch
    %22 = sbr.rel (0) target = $region13
  $region12: #{multiblock_forward.8} parent=0 // pred_region
    _
  $region13: #{multiblock_forward.8} parent=0 // pred_fallthru
    _
  // Predicated region
  $region14: #{multiblock_forward.8} parent=0 // pred_check
    _
  $region15: #{multiblock_forward.8} parent=0 // pred_check_branch
    %24 = sbr.rel (0) target = $region17
  $region16: #{multiblock_forward.8} parent=0 // pred_region
    _
  $region17: #{multiblock_forward.8} parent=0 // pred_fallthru
    _
  // Predicated region
  $region18: #{multiblock_forward.8} parent=0 // pred_check
    _
  $region19: #{multiblock_forward.8} parent=0 // pred_check_branch
    %26 = sbr.rel (0) target = $region21
  $region20: #{multiblock_forward.8} parent=0 // pred_region
    _
  $region21: #{multiblock_forward.8} parent=0 // pred_fallthru
    _
  // Predicated region
  $region22: #{multiblock_forward.8} parent=0 // pred_check
    _
  $region23: #{multiblock_forward.8} parent=0 // pred_check_branch
    %28 = sbr.rel (0) target = $region25
  $region24: #{multiblock_forward.8} parent=0 // pred_region
    _
  $region25: #{multiblock_forward.8} parent=0 // pred_fallthru
    _
  // Predicated region
  $region26: #{multiblock_forward.8} parent=0 // pred_check
    _
  $region27: #{multiblock_forward.8} parent=0 // pred_check_branch
    %30 = sbr.rel (0) target = $region29
  $region28: #{multiblock_forward.8} parent=0 // pred_region
    _
  $region29: #{multiblock_forward.8} parent=0 // pred_fallthru
    _
  // Predicated region
  $region30: #{multiblock_forward.8} parent=0 // pred_check
    _
  $region31: #{multiblock_forward.8} parent=0 // pred_check_branch
    %32 = sbr.rel (0) target = $region33
  $region32: #{multiblock_forward.8} parent=0 // pred_region
    _
  $region33: #{multiblock_forward.8} parent=0 // pred_fallthru
    _
  // Predicated region
  $region34: #{multiblock_forward.8} parent=0 // pred_check
    _
  $region35: #{multiblock_forward.8} parent=0 // pred_check_branch
    %34 = sbr.rel (0) target = $region37
  $region36: #{multiblock_forward.8} parent=0 // pred_region
    _
  $region37: #{multiblock_forward.8} parent=0 // pred_fallthru
    _
  // Predicated region
  $region38: #{multiblock_forward.8} parent=0 // pred_check
    _
  $region39: #{multiblock_forward.8} parent=0 // pred_check_branch
    %36 = sbr.rel (0) target = $region41
  $region40: #{multiblock_forward.8} parent=0 // pred_region
    _
  $region41: #{multiblock_forward.8} parent=0 // pred_fallthru
    _
  // Predicated region
  $region42: #{multiblock_forward.8} parent=0 // pred_check
    _
  $region43: #{multiblock_forward.8} parent=0 // pred_check_branch
    %38 = sbr.rel (0) target = $region45
  $region44: #{multiblock_forward.8} parent=0 // pred_region
    _
  $region45: #{multiblock_forward.8} parent=0 // pred_fallthru
    _
  // Predicated region
  $region46: #{multiblock_forward.8} parent=0 // pred_check
    _
  $region47: #{multiblock_forward.8} parent=0 // pred_check_branch
    %40 = sbr.rel (0) target = $region49
  $region48: #{multiblock_forward.8} parent=0 // pred_region
    _
  $region49: #{multiblock_forward.8} parent=0 // pred_fallthru
    _
  %v42 = vld [vmem:[%s0] sm:$0xff]
  %v43 = vld [vmem:[%s0 + $0x8] sm:$0xff]
  %v44 = vld [vmem:[%s1] sm:$0x3f]
  %v45 = vld [vmem:[%s1 + $0x8] sm:$0x3f]
  %v46 = vld [vmem:[%s5] sm:$0xf]
  %v47 = vld [vmem:[%s5 + $0x4] sm:$0xf]
  %v48 = vld [vmem:[%s5 + $0x8] sm:$0xf]
  %v49 = vld [vmem:[%s5 + $0xc] sm:$0xf]
  %v50 = vld [vmem:[%s6] sm:$0x1]
  %v51 = vpack.c.bf16 %v43, %v42
  %v53 = vperm.slane %v50, 0
  %v59 = vunpack.c.l.b16 %v46
  %v60 = vunpack.c.l.b16 %v47
  %v61 = vunpack.c.l.b16 %v48
  %v62 = vunpack.c.l.b16 %v49
  %v63 = vpack.c.b16 %v60, %v59
  %v64 = vpack.c.b16 %v62, %v61
  %vm67 = vcmask 261120
  %v69 = vsel %vm67, %v51, 0
  %71 = vmatpush.bf16.msra.mxu0 0
  %72 = vmatpush.bf16.msra.mxu0 0
  %73 = vmatpush.bf16.msra.mxu0 0
  %74 = vmatpush.bf16.msra.mxu0 0
  %75 = vmatpush.bf16.msra.mxu0 0
  %76 = vmatpush.bf16.msra.mxu0 0
  %77 = vmatpush.bf16.msra.mxu0 %v64
  %78 = vmatpush.bf16.msra.mxu0 %v63
  %79 = vmatmul.bf16.gmra.mxu0 %v69
  %v80 = vpop.f32.mrf.mxu0
  %v81 = vadd.f32 %v53, %v80
  %v82 = vpop.f32.mrf.mxu0
  %v83 = vadd.f32 %v53, %v82
  %84 = vdwg.mxu0
  %v85 = vld [vmem:[%s2] sm:$0xff]
  %v86 = vld [vmem:[%s2 + $0x8] sm:$0xff]
  %88 = vset.pattern.permute.xlu0 0
  %89 = vperm.xlu0 %88, %v85
  %v90 = vpop.permute.xlu0 %89
  %93 = vset.pattern.permute.xlu0 0
  %94 = vperm.xlu0 %93, %v86
  %v95 = vpop.permute.xlu0 %94
  %v97 = vmul.f32 %v81, %v90
  %v98 = vmul.f32 %v83, %v95
  %v101 = vrot.slane %v44, 2
  %v102 = vrot.slane %v44, 4
  %v103 = vrot.slane %v45, 2
  %v104 = vrot.slane %v45, 4
  %v105 = vld [vmem:[%s7] sm:$0xf]
  %v106 = vld [vmem:[%s7 + $0x4] sm:$0xf]
  %v107 = vld [vmem:[%s7 + $0x8] sm:$0xf]
  %v108 = vld [vmem:[%s7 + $0xc] sm:$0xf]
  %v109 = vld [vmem:[%s8] sm:$0x1]
  %110 = vst [vmem:[#allocation1] ss:$4 sm:$0xff] %v44
  %s111 = scalar_lea.vmem [#allocation1], 1
  %112 = vst [vmem:[%s111] ss:$4 sm:$0xff] %v101
  %s113 = scalar_lea.vmem [#allocation1], 2
  %114 = vst [vmem:[%s113] ss:$4 sm:$0xff] %v102
  %s115 = scalar_lea.vmem [#allocation1], 3
  %116 = vst [vmem:[%s115] ss:$4 sm:$0xff] %v45
  %s117 = scalar_lea.vmem [#allocation1], 32
  %118 = vst [vmem:[%s117] ss:$4 sm:$0xff] %v103
  %s119 = scalar_lea.vmem [#allocation1], 33
  %120 = vst [vmem:[%s119] ss:$4 sm:$0xff] %v104
  %v121 = vld.sshfl [vmem:[#allocation1] sm:$0xff pattern:$0x73625140]
  %v122 = vld.sshfl [vmem:[#allocation1 + $0x20] sm:$0xff pattern:$0x73625140]
  %v125 = vpack.c.bf16 %v122, %v121
  %v127 = vperm.slane %v109, 0
  %v133 = vunpack.c.l.b16 %v105
  %v134 = vunpack.c.l.b16 %v106
  %v135 = vunpack.c.l.b16 %v107
  %v136 = vunpack.c.l.b16 %v108
  %v137 = vpack.c.b16 %v134, %v133
  %v138 = vpack.c.b16 %v136, %v135
  %v142 = vsel %vm67, %v125, 0
  %144 = vmatpush.bf16.msra.mxu0 0
  %145 = vmatpush.bf16.msra.mxu0 0
  %146 = vmatpush.bf16.msra.mxu0 0
  %147 = vmatpush.bf16.msra.mxu0 0
  %148 = vmatpush.bf16.msra.mxu0 0
  %149 = vmatpush.bf16.msra.mxu0 0
  %150 = vmatpush.bf16.msra.mxu0 %v138
  %151 = vmatpush.bf16.msra.mxu0 %v137
  %152 = vmatmul.bf16.gmra.mxu0 %v142
  %v153 = vpop.f32.mrf.mxu0
  %v154 = vadd.f32 %v127, %v153
  %v155 = vpop.f32.mrf.mxu0
  %v156 = vadd.f32 %v127, %v155
  %157 = vdwg.mxu0
  %v160 = vrot.slane %v154, 2
  %v161 = vrot.slane %v154, 4
  %v162 = vrot.slane %v154, 6
  %v163 = vrot.slane %v156, 2
  %v168 = vld [vmem:[%s4] sm:$0x3f]
  %v169 = vld [vmem:[%s4 + $0x8] sm:$0x3f]
  %171 = vset.pattern.permute.xlu0 0
  %172 = vperm.xlu0 %171, %v168
  %v173 = vpop.permute.xlu0 %172
  %175 = vset.pattern.permute.xlu0 0
  %176 = vperm.xlu0 %175, %v169
  %v177 = vpop.permute.xlu0 %176
  %v179 = vunpack.c.l.s4 269488144
  %v180 = vunpack.c.0.s8 %v179
  %v181 = vperm.slane %v173, %v180
  %v183 = vunpack.c.l.s4 842150450
  %v184 = vunpack.c.0.s8 %v183
  %v185 = vperm.slane %v173, %v184
  %v187 = vunpack.c.l.s4 1414812756
  %v188 = vunpack.c.0.s8 %v187
  %v189 = vperm.slane %v173, %v188
  %v191 = vunpack.c.l.s4 269488144
  %v192 = vunpack.c.0.s8 %v191
  %v193 = vperm.slane %v177, %v192
  %v195 = vunpack.c.l.s4 842150450
  %v196 = vunpack.c.0.s8 %v195
  %v197 = vperm.slane %v177, %v196
  %v199 = vunpack.c.l.s4 1414812756
  %v200 = vunpack.c.0.s8 %v199
  %v201 = vperm.slane %v177, %v200
  %v208 = vmul.f32 %v154, %v181
  %v209 = vmul.f32 %v160, %v185
  %v210 = vmul.f32 %v161, %v189
  %v211 = vmul.f32 %v162, %v193
  %v212 = vmul.f32 %v156, %v197
  %v213 = vmul.f32 %v163, %v201
  %v214 = vld [vmem:[%s3] sm:$0x1]
  %v215 = vld [vmem:[%s3 + $0x1] sm:$0x1]
  %v216 = vsub.f32 %v214, 1.0
  %v217 = vsub.f32 %v215, 1.0
  %v218 = vmul.f32 %v216, 1e+30
  %v219 = vmul.f32 %v217, 1e+30
  %v220 = vld [vmem:[%s9] sm:$0xf]
  %v221 = vld [vmem:[%s9 + $0x4] sm:$0xf]
  %v222 = vld [vmem:[%s9 + $0x8] sm:$0xf]
  %v223 = vld [vmem:[%s9 + $0xc] sm:$0xf]
  %v224 = vld [vmem:[%s11] sm:$0x1]
  %v226 = vperm.slane %v224, 0
  %v232 = vunpack.c.l.b16 %v220
  %v233 = vunpack.c.l.b16 %v221
  %v234 = vunpack.c.l.b16 %v222
  %v235 = vunpack.c.l.b16 %v223
  %v236 = vpack.c.b16 %v233, %v232
  %v237 = vpack.c.b16 %v235, %v234
  %240 = vmatpush.bf16.msra.mxu0 0
  %241 = vmatpush.bf16.msra.mxu0 0
  %242 = vmatpush.bf16.msra.mxu0 0
  %243 = vmatpush.bf16.msra.mxu0 0
  %244 = vmatpush.bf16.msra.mxu0 0
  %245 = vmatpush.bf16.msra.mxu0 0
  %246 = vmatpush.bf16.msra.mxu0 %v237
  %247 = vmatpush.bf16.msra.mxu0 %v236
  %248 = vmatmul.bf16.gmra.mxu0 %v142
  %v249 = vpop.f32.mrf.mxu0
  %v250 = vadd.f32 %v226, %v249
  %v251 = vpop.f32.mrf.mxu0
  %v252 = vadd.f32 %v226, %v251
  %253 = vdwg.mxu0
  %260 = vst [vmem:[#allocation1] ss:$4 sm:$0xff] %v208
  %s261 = scalar_lea.vmem [#allocation1], 1
  %262 = vst [vmem:[%s261] ss:$4 sm:$0xff] %v209
  %s263 = scalar_lea.vmem [#allocation1], 2
  %264 = vst [vmem:[%s263] ss:$4 sm:$0xff] %v210
  %v265 = vld.sshfl [vmem:[#allocation1] sm:$0xff pattern:$0x73625140]
  %s266 = scalar_lea.vmem [#allocation1], 32
  %267 = vst [vmem:[%s266] ss:$4 sm:$0xff] %v211
  %s268 = scalar_lea.vmem [#allocation1], 33
  %269 = vst [vmem:[%s268] ss:$4 sm:$0xff] %v212
  %s270 = scalar_lea.vmem [#allocation1], 34
  %271 = vst [vmem:[%s270] ss:$4 sm:$0xff] %v213
  %v272 = vld.sshfl [vmem:[#allocation1 + $0x20] sm:$0xff pattern:$0x73625140]
  %v275 = vpack.c.bf16 %v265, %v265
  %v276 = vpack.c.bf16 %v272, %v272
  %v277 = vpack.c.bf16 %v97, %v97
  %v278 = vpack.c.bf16 %v98, %v98
  %v279 = vld [vmem:[%s10] sm:$0xf]
  %v280 = vld [vmem:[%s10 + $0x4] sm:$0xf]
  %v281 = vld [vmem:[%s10 + $0x8] sm:$0xf]
  %v282 = vld [vmem:[%s10 + $0xc] sm:$0xf]
  %vm283 = vcmask 130048
  %v285 = vsel %vm283, %v275, 0
  %v288 = vsel %vm283, %v277, 0
  %290 = vmatpush.bf16.xpose.msra.mxu0 0
  %291 = vmatpush.bf16.xpose.msra.mxu0 0
  %292 = vmatpush.bf16.xpose.msra.mxu0 0
  %293 = vmatpush.bf16.xpose.msra.mxu0 0
  %294 = vmatpush.bf16.xpose.msra.mxu0 0
  %295 = vmatpush.bf16.xpose.msra.mxu0 0
  %296 = vmatpush.bf16.xpose.msra.mxu0 0
  %297 = vmatpush.bf16.xpose.msra.mxu0 %v288
  %298 = vmatmul.bf16.gmra.mxu0 %v285
  %v299 = vpop.f32.mrf.mxu0
  %v300 = vadd.f32 0.0, %v299
  %v301 = vpop.f32.mrf.mxu0
  %302 = vdwg.mxu0
  %v304 = vsel %vm283, %v276, 0
  %v307 = vsel %vm283, %v278, 0
  %309 = vmatpush.bf16.xpose.msra.mxu0 0
  %310 = vmatpush.bf16.xpose.msra.mxu0 0
  %311 = vmatpush.bf16.xpose.msra.mxu0 0
  %312 = vmatpush.bf16.xpose.msra.mxu0 0
  %313 = vmatpush.bf16.xpose.msra.mxu0 0
  %314 = vmatpush.bf16.xpose.msra.mxu0 0
  %315 = vmatpush.bf16.xpose.msra.mxu0 0
  %316 = vmatpush.bf16.xpose.msra.mxu0 %v307
  %317 = vmatmul.bf16.gmra.mxu0 %v304
  %v318 = vpop.f32.mrf.mxu0
  %v319 = vadd.f32 0.0, %v318
  %v320 = vpop.f32.mrf.mxu0
  %321 = vdwg.mxu0
  %v322 = vmul.f32 %v300, 0.25
  %v323 = vmul.f32 %v319, 0.25
  %v326 = vperm.slane %v218, 0
  %v327 = vperm.slane %v219, 0
  %v330 = vadd.f32 %v322, %v326
  %v331 = vadd.f32 %v323, %v327
  %vm332 = vcmask 62464
  %v333 = vsel %vm332, %v330, -inf
  %334 = vmax.xlane.f32.xlu0 %v333
  %v335 = vpop.xlane.xlu0 %334
  %v336 = vsel %vm332, %v331, -inf
  %337 = vmax.xlane.f32.xlu0 %v336
  %v338 = vpop.xlane.xlu0 %337
  %v339 = vsub.f32 %v330, %v335
  %v340 = vsub.f32 %v331, %v338
  %v341 = vmul.f32 %v339, 1.442695
  %v342 = vpow.pop %v341
  %v343 = vmul.f32 %v340, 1.442695
  %v344 = vpow.pop %v343
  %v345 = vsel %vm332, %v342, 0.0
  %346 = vadd.xlane.f32.xlu0 %v345
  %v347 = vpop.xlane.xlu0 %346
  %v348 = vsel %vm332, %v344, 0.0
  %349 = vadd.xlane.f32.xlu0 %v348
  %v350 = vpop.xlane.xlu0 %349
  %v351 = vrcp.pop %v347
  %v352 = vrcp.pop %v350
  %v353 = vmul.f32 %v342, %v351
  %v354 = vmul.f32 %v344, %v352
  %v355 = vpack.c.bf16 %v353, %v353
  %v356 = vpack.c.bf16 %v354, %v354
  %v358 = vunpack.c.l.b16 %v277
  %v359 = vpack.c.b16 %v358, %v358
  %360 = vrot.lane.b32.xlu0 %v359, 96
  %v361 = vpop.permute.xlu0 %360
  %vm362 = vcmask 64512
  %v364 = vsel %vm362, %v355, 0
  %vm366 = vcmask 1043456
  %v368 = vsel %vm366, %v361, 0
  %370 = vmatpush.bf16.msra.mxu0 0
  %371 = vmatpush.bf16.msra.mxu0 0
  %372 = vmatpush.bf16.msra.mxu0 0
  %373 = vmatpush.bf16.msra.mxu0 0
  %374 = vmatpush.bf16.msra.mxu0 0
  %375 = vmatpush.bf16.msra.mxu0 0
  %376 = vmatpush.bf16.msra.mxu0 0
  %377 = vmatpush.bf16.msra.mxu0 %v368
  %378 = vmatmul.bf16.gmra.mxu0 %v364
  %v379 = vpop.f32.mrf.mxu0
  %v380 = vadd.f32 0.0, %v379
  %v381 = vpop.f32.mrf.mxu0
  %382 = vdwg.mxu0
  %v384 = vunpack.c.l.b16 %v278
  %v385 = vpack.c.b16 %v384, %v384
  %386 = vrot.lane.b32.xlu0 %v385, 96
  %v387 = vpop.permute.xlu0 %386
  %v389 = vsel %vm362, %v356, 0
  %v392 = vsel %vm366, %v387, 0
  %394 = vmatpush.bf16.msra.mxu0 0
  %395 = vmatpush.bf16.msra.mxu0 0
  %396 = vmatpush.bf16.msra.mxu0 0
  %397 = vmatpush.bf16.msra.mxu0 0
  %398 = vmatpush.bf16.msra.mxu0 0
  %399 = vmatpush.bf16.msra.mxu0 0
  %400 = vmatpush.bf16.msra.mxu0 0
  %401 = vmatpush.bf16.msra.mxu0 %v392
  %402 = vmatmul.bf16.gmra.mxu0 %v389
  %v403 = vpop.f32.mrf.mxu0
  %v404 = vadd.f32 0.0, %v403
  %v405 = vpop.f32.mrf.mxu0
  %406 = vdwg.mxu0
  %v409 = vrot.slane %v380, 2
  %v410 = vrot.slane %v380, 4
  %v411 = vrot.slane %v404, 2
  %v412 = vrot.slane %v404, 4
  %413 = vst [vmem:[#allocation1] ss:$4 sm:$0xff] %v380
  %s414 = scalar_lea.vmem [#allocation1], 1
  %415 = vst [vmem:[%s414] ss:$4 sm:$0xff] %v409
  %s416 = scalar_lea.vmem [#allocation1], 2
  %417 = vst [vmem:[%s416] ss:$4 sm:$0xff] %v410
  %s418 = scalar_lea.vmem [#allocation1], 3
  %419 = vst [vmem:[%s418] ss:$4 sm:$0xff] %v404
  %s420 = scalar_lea.vmem [#allocation1], 32
  %421 = vst [vmem:[%s420] ss:$4 sm:$0xff] %v411
  %s422 = scalar_lea.vmem [#allocation1], 33
  %423 = vst [vmem:[%s422] ss:$4 sm:$0xff] %v412
  %v424 = vld.sshfl [vmem:[#allocation1] sm:$0xff pattern:$0x73625140]
  %v425 = vld.sshfl [vmem:[#allocation1 + $0x20] sm:$0xff pattern:$0x73625140]
  %v428 = vpack.c.bf16 %v425, %v424
  %v431 = vunpack.c.l.b16 %v279
  %v432 = vunpack.c.l.b16 %v280
  %v433 = vpack.c.b16 %v432, %v431
  %v436 = vsel %vm283, %v428, 0
  %438 = vmatpush.bf16.msra.mxu0 0
  %439 = vmatpush.bf16.msra.mxu0 0
  %440 = vmatpush.bf16.msra.mxu0 0
  %441 = vmatpush.bf16.msra.mxu0 0
  %442 = vmatpush.bf16.msra.mxu0 0
  %443 = vmatpush.bf16.msra.mxu0 0
  %444 = vmatpush.bf16.msra.mxu0 0
  %445 = vmatpush.bf16.msra.mxu0 %v433
  %446 = vmatmul.bf16.gmra.mxu0 %v436
  %v447 = vpop.f32.mrf.mxu0
  %v448 = vadd.f32 0.0, %v447
  %v449 = vpop.f32.mrf.mxu0
  %v450 = vadd.f32 0.0, %v449
  %451 = vdwg.mxu0
  %v452 = vadd.f32 %v250, %v448
  %v453 = vadd.f32 %v252, %v450
  %v455 = vunpack.c.l.b16 %v275
  %v456 = vpack.c.b16 %v455, %v455
  %457 = vrot.lane.b32.xlu0 %v456, 112
  %v458 = vpop.permute.xlu0 %457
  %459 = vrot.lane.b32.xlu0 %v359, 112
  %v460 = vpop.permute.xlu0 %459
  %v462 = vsel %vm283, %v458, 0
  %v465 = vsel %vm283, %v460, 0
  %467 = vmatpush.bf16.xpose.msra.mxu0 0
  %468 = vmatpush.bf16.xpose.msra.mxu0 0
  %469 = vmatpush.bf16.xpose.msra.mxu0 0
  %470 = vmatpush.bf16.xpose.msra.mxu0 0
  %471 = vmatpush.bf16.xpose.msra.mxu0 0
  %472 = vmatpush.bf16.xpose.msra.mxu0 0
  %473 = vmatpush.bf16.xpose.msra.mxu0 0
  %474 = vmatpush.bf16.xpose.msra.mxu0 %v465
  %475 = vmatmul.bf16.gmra.mxu0 %v462
  %v476 = vpop.f32.mrf.mxu0
  %v477 = vadd.f32 0.0, %v476
  %v478 = vpop.f32.mrf.mxu0
  %479 = vdwg.mxu0
  %v481 = vunpack.c.l.b16 %v276
  %v482 = vpack.c.b16 %v481, %v481
  %483 = vrot.lane.b32.xlu0 %v482, 112
  %v484 = vpop.permute.xlu0 %483
  %485 = vrot.lane.b32.xlu0 %v385, 112
  %v486 = vpop.permute.xlu0 %485
  %v488 = vsel %vm283, %v484, 0
  %v491 = vsel %vm283, %v486, 0
  %493 = vmatpush.bf16.xpose.msra.mxu0 0
  %494 = vmatpush.bf16.xpose.msra.mxu0 0
  %495 = vmatpush.bf16.xpose.msra.mxu0 0
  %496 = vmatpush.bf16.xpose.msra.mxu0 0
  %497 = vmatpush.bf16.xpose.msra.mxu0 0
  %498 = vmatpush.bf16.xpose.msra.mxu0 0
  %499 = vmatpush.bf16.xpose.msra.mxu0 0
  %500 = vmatpush.bf16.xpose.msra.mxu0 %v491
  %501 = vmatmul.bf16.gmra.mxu0 %v488
  %v502 = vpop.f32.mrf.mxu0
  %v503 = vadd.f32 0.0, %v502
  %v504 = vpop.f32.mrf.mxu0
  %505 = vdwg.mxu0
  %v506 = vmul.f32 %v477, 0.25
  %v507 = vmul.f32 %v503, 0.25
  %v508 = vadd.f32 %v506, %v326
  %v509 = vadd.f32 %v507, %v327
  %v510 = vsel %vm332, %v508, -inf
  %511 = vmax.xlane.f32.xlu0 %v510
  %v512 = vpop.xlane.xlu0 %511
  %v513 = vsel %vm332, %v509, -inf
  %514 = vmax.xlane.f32.xlu0 %v513
  %v515 = vpop.xlane.xlu0 %514
  %v516 = vsub.f32 %v508, %v512
  %v517 = vsub.f32 %v509, %v515
  %v518 = vmul.f32 %v516, 1.442695
  %v519 = vpow.pop %v518
  %v520 = vmul.f32 %v517, 1.442695
  %v521 = vpow.pop %v520
  %v522 = vsel %vm332, %v519, 0.0
  %523 = vadd.xlane.f32.xlu0 %v522
  %v524 = vpop.xlane.xlu0 %523
  %v525 = vsel %vm332, %v521, 0.0
  %526 = vadd.xlane.f32.xlu0 %v525
  %v527 = vpop.xlane.xlu0 %526
  %v528 = vrcp.pop %v524
  %v529 = vrcp.pop %v527
  %v530 = vmul.f32 %v519, %v528
  %v531 = vmul.f32 %v521, %v529
  %v532 = vpack.c.bf16 %v530, %v530
  %v533 = vpack.c.bf16 %v531, %v531
  %534 = vrot.lane.b32.xlu0 %v359, 80
  %v535 = vpop.permute.xlu0 %534
  %v537 = vsel %vm362, %v532, 0
  %v540 = vsel %vm366, %v535, 0
  %542 = vmatpush.bf16.msra.mxu0 0
  %543 = vmatpush.bf16.msra.mxu0 0
  %544 = vmatpush.bf16.msra.mxu0 0
  %545 = vmatpush.bf16.msra.mxu0 0
  %546 = vmatpush.bf16.msra.mxu0 0
  %547 = vmatpush.bf16.msra.mxu0 0
  %548 = vmatpush.bf16.msra.mxu0 0
  %549 = vmatpush.bf16.msra.mxu0 %v540
  %550 = vmatmul.bf16.gmra.mxu0 %v537
  %v551 = vpop.f32.mrf.mxu0
  %v552 = vadd.f32 0.0, %v551
  %v553 = vpop.f32.mrf.mxu0
  %554 = vdwg.mxu0
  %555 = vrot.lane.b32.xlu0 %v385, 80
  %v556 = vpop.permute.xlu0 %555
  %v558 = vsel %vm362, %v533, 0
  %v561 = vsel %vm366, %v556, 0
  %563 = vmatpush.bf16.msra.mxu0 0
  %564 = vmatpush.bf16.msra.mxu0 0
  %565 = vmatpush.bf16.msra.mxu0 0
  %566 = vmatpush.bf16.msra.mxu0 0
  %567 = vmatpush.bf16.msra.mxu0 0
  %568 = vmatpush.bf16.msra.mxu0 0
  %569 = vmatpush.bf16.msra.mxu0 0
  %570 = vmatpush.bf16.msra.mxu0 %v561
  %571 = vmatmul.bf16.gmra.mxu0 %v558
  %v572 = vpop.f32.mrf.mxu0
  %v573 = vadd.f32 0.0, %v572
  %v574 = vpop.f32.mrf.mxu0
  %575 = vdwg.mxu0
  %v578 = vrot.slane %v552, 2
  %v579 = vrot.slane %v552, 4
  %v580 = vrot.slane %v573, 2
  %v581 = vrot.slane %v573, 4
  %582 = vst [vmem:[#allocation1] ss:$4 sm:$0xff] %v552
  %s583 = scalar_lea.vmem [#allocation1], 1
  %584 = vst [vmem:[%s583] ss:$4 sm:$0xff] %v578
  %s585 = scalar_lea.vmem [#allocation1], 2
  %586 = vst [vmem:[%s585] ss:$4 sm:$0xff] %v579
  %s587 = scalar_lea.vmem [#allocation1], 3
  %588 = vst [vmem:[%s587] ss:$4 sm:$0xff] %v573
  %s589 = scalar_lea.vmem [#allocation1], 32
  %590 = vst [vmem:[%s589] ss:$4 sm:$0xff] %v580
  %s591 = scalar_lea.vmem [#allocation1], 33
  %592 = vst [vmem:[%s591] ss:$4 sm:$0xff] %v581
  %v593 = vld.sshfl [vmem:[#allocation1] sm:$0xff pattern:$0x73625140]
  %v594 = vld.sshfl [vmem:[#allocation1 + $0x20] sm:$0xff pattern:$0x73625140]
  %v597 = vpack.c.bf16 %v594, %v593
  %v600 = vunpack.c.l.b16 %v281
  %v601 = vunpack.c.l.b16 %v282
  %v602 = vpack.c.b16 %v601, %v600
  %v605 = vsel %vm283, %v597, 0
  %607 = vmatpush.bf16.msra.mxu0 0
  %608 = vmatpush.bf16.msra.mxu0 0
  %609 = vmatpush.bf16.msra.mxu0 0
  %610 = vmatpush.bf16.msra.mxu0 0
  %611 = vmatpush.bf16.msra.mxu0 0
  %612 = vmatpush.bf16.msra.mxu0 0
  %613 = vmatpush.bf16.msra.mxu0 0
  %614 = vmatpush.bf16.msra.mxu0 %v602
  %615 = vmatmul.bf16.gmra.mxu0 %v605
  %v616 = vpop.f32.mrf.mxu0
  %v617 = vadd.f32 0.0, %v616
  %v618 = vpop.f32.mrf.mxu0
  %v619 = vadd.f32 0.0, %v618
  %620 = vdwg.mxu0
  %v621 = vadd.f32 %v452, %v617
  %v622 = vadd.f32 %v453, %v619
  %v625 = vrot.slane %v621, 2
  %v626 = vrot.slane %v621, 4
  %v627 = vrot.slane %v621, 6
  %v628 = vrot.slane %v622, 2
  %629 = vst [vmem:[#allocation1] ss:$4 sm:$0xff] %v621
  %s630 = scalar_lea.vmem [#allocation1], 1
  %631 = vst [vmem:[%s630] ss:$4 sm:$0xff] %v625
  %s632 = scalar_lea.vmem [#allocation1], 2
  %633 = vst [vmem:[%s632] ss:$4 sm:$0xff] %v626
  %v634 = vld.sshfl [vmem:[#allocation1] sm:$0xff pattern:$0x73625140]
  %s635 = scalar_lea.vmem [#allocation1], 32
  %636 = vst [vmem:[%s635] ss:$4 sm:$0xff] %v627
  %s637 = scalar_lea.vmem [#allocation1], 33
  %638 = vst [vmem:[%s637] ss:$4 sm:$0xff] %v622
  %s639 = scalar_lea.vmem [#allocation1], 34
  %640 = vst [vmem:[%s639] ss:$4 sm:$0xff] %v628
  %v641 = vld.sshfl [vmem:[#allocation1 + $0x20] sm:$0xff pattern:$0x73625140]
  %vm644 = vcmask 259072
  %645 = vst.msk [vmem:[%s12] sm:$0x3f] %vm644, %v634
  %646 = vst.msk [vmem:[%s12 + $0x8] sm:$0x3f] %vm644, %v641
  // Predicated region
  $region50: #{multiblock_forward.8} parent=0 // pred_check
    _
  $region51: #{multiblock_forward.8} parent=0 // pred_check_branch
    %648 = sbr.rel (0) target = $region53
  $region52: #{multiblock_forward.8} parent=0 // pred_region
    _
  $region53: #{multiblock_forward.8} parent=0 // pred_fallthru
    _
  // Predicated region
  $region54: #{multiblock_forward.8} parent=0 // pred_check
    _
  $region55: #{multiblock_forward.8} parent=0 // pred_check_branch
    %650 = sbr.rel (0) target = $region57
  $region56: #{multiblock_forward.8} parent=0 // pred_region
    _
  $region57: #{multiblock_forward.8} parent=0 // pred_fallthru
    _

// kernel: multiblock_forward.10
$region0: #{multiblock_forward.10}
  #allocation0 [shape = 'u32[]', space=smem, size = 0x4, offset = 0x4, fixed_abs, tag = 'smem constant byte address 0x4 - core index']
  #allocation1 [shape = 'u32[72,128]{1,0:T(1,128)}', space=vmem, size = 0x9000, scoped, tag = 'internal scratch']
  %s0 = inlined_call_operand.vmem [shape: f32[2,8,32], index: 0, kind: input, shape index: {}]
  %s1 = inlined_call_operand.vmem [shape: f32[2,6,32], index: 1, kind: input, shape index: {}]
  %s2 = inlined_call_operand.vmem [shape: f32[2,8,1], index: 2, kind: input, shape index: {}]
  %s3 = inlined_call_operand.vmem [shape: f32[2,1,8], index: 3, kind: input, shape index: {}]
  %s4 = inlined_call_operand.vmem [shape: f32[2,6,1], index: 4, kind: input, shape index: {}]
  %s5 = inlined_call_operand.vmem [shape: f32[2,1,6], index: 5, kind: input, shape index: {}]
  %s6 = inlined_call_operand.vmem [shape: f32[2,1], index: 6, kind: input, shape index: {}]
  %s7 = inlined_call_operand.vmem [shape: f32[2,1], index: 7, kind: input, shape index: {}]
  %s8 = inlined_call_operand.vmem [shape: bf16[32,32], index: 8, kind: input, shape index: {}]
  %s9 = inlined_call_operand.vmem [shape: f32[1,32], index: 9, kind: input, shape index: {}]
  %s10 = inlined_call_operand.vmem [shape: bf16[32,32], index: 10, kind: input, shape index: {}]
  %s11 = inlined_call_operand.vmem [shape: f32[1,32], index: 11, kind: input, shape index: {}]
  %s12 = inlined_call_operand.vmem [shape: bf16[32,96], index: 12, kind: input, shape index: {}]
  %s13 = inlined_call_operand.vmem [shape: f32[1,96], index: 13, kind: input, shape index: {}]
  %s14 = inlined_call_operand.vmem [shape: bf16[32,96], index: 14, kind: input, shape index: {}]
  %s15 = inlined_call_operand.vmem [shape: f32[1,96], index: 15, kind: input, shape index: {}]
  %s16 = inlined_call_operand.vmem [shape: bf16[32,32], index: 16, kind: input, shape index: {}]
  %s17 = inlined_call_operand.vmem [shape: f32[1,32], index: 17, kind: input, shape index: {}]
  %s18 = inlined_call_operand.vmem [shape: bf16[32,32], index: 18, kind: input, shape index: {}]
  %s19 = inlined_call_operand.vmem [shape: f32[1,32], index: 19, kind: input, shape index: {}]
  %s20 = inlined_call_operand.vmem [shape: f32[2,8,32], index: 20, kind: output, shape index: {0}]
  %s21 = inlined_call_operand.vmem [shape: f32[2,6,32], index: 21, kind: output, shape index: {1}]
  %22 = xla_tuple %s20, %s21
  %s23 = sld [smem:[#allocation0]]
  $region98: #{multiblock_forward.10} parent=0
    _
  %s25 = ssub.s32 1, %s23
  %s26 = scalar_select 0, %s25, %s23
  // Predicated region
  $region2: #{multiblock_forward.10} parent=0 // pred_check
    _
  $region3: #{multiblock_forward.10} parent=0 // pred_check_branch
    %28 = sbr.rel (0) target = $region5
  $region4: #{multiblock_forward.10} parent=0 // pred_region
    _
  $region5: #{multiblock_forward.10} parent=0 // pred_fallthru
    _
  // Predicated region
  $region6: #{multiblock_forward.10} parent=0 // pred_check
    _
  $region7: #{multiblock_forward.10} parent=0 // pred_check_branch
    %30 = sbr.rel (0) target = $region9
  $region8: #{multiblock_forward.10} parent=0 // pred_region
    _
  $region9: #{multiblock_forward.10} parent=0 // pred_fallthru
    _
  // Predicated region
  $region10: #{multiblock_forward.10} parent=0 // pred_check
    _
  $region11: #{multiblock_forward.10} parent=0 // pred_check_branch
    %32 = sbr.rel (0) target = $region13
  $region12: #{multiblock_forward.10} parent=0 // pred_region
    _
  $region13: #{multiblock_forward.10} parent=0 // pred_fallthru
    _
  // Predicated region
  $region14: #{multiblock_forward.10} parent=0 // pred_check
    _
  $region15: #{multiblock_forward.10} parent=0 // pred_check_branch
    %34 = sbr.rel (0) target = $region17
  $region16: #{multiblock_forward.10} parent=0 // pred_region
    _
  $region17: #{multiblock_forward.10} parent=0 // pred_fallthru
    _
  // Predicated region
  $region18: #{multiblock_forward.10} parent=0 // pred_check
    _
  $region19: #{multiblock_forward.10} parent=0 // pred_check_branch
    %36 = sbr.rel (0) target = $region21
  $region20: #{multiblock_forward.10} parent=0 // pred_region
    _
  $region21: #{multiblock_forward.10} parent=0 // pred_fallthru
    _
  // Predicated region
  $region22: #{multiblock_forward.10} parent=0 // pred_check
    _
  $region23: #{multiblock_forward.10} parent=0 // pred_check_branch
    %38 = sbr.rel (0) target = $region25
  $region24: #{multiblock_forward.10} parent=0 // pred_region
    _
  $region25: #{multiblock_forward.10} parent=0 // pred_fallthru
    _
  // Predicated region
  $region26: #{multiblock_forward.10} parent=0 // pred_check
    _
  $region27: #{multiblock_forward.10} parent=0 // pred_check_branch
    %40 = sbr.rel (0) target = $region29
  $region28: #{multiblock_forward.10} parent=0 // pred_region
    _
  $region29: #{multiblock_forward.10} parent=0 // pred_fallthru
    _
  // Predicated region
  $region30: #{multiblock_forward.10} parent=0 // pred_check
    _
  $region31: #{multiblock_forward.10} parent=0 // pred_check_branch
    %42 = sbr.rel (0) target = $region33
  $region32: #{multiblock_forward.10} parent=0 // pred_region
    _
  $region33: #{multiblock_forward.10} parent=0 // pred_fallthru
    _
  // Predicated region
  $region34: #{multiblock_forward.10} parent=0 // pred_check
    _
  $region35: #{multiblock_forward.10} parent=0 // pred_check_branch
    %44 = sbr.rel (0) target = $region37
  $region36: #{multiblock_forward.10} parent=0 // pred_region
    _
  $region37: #{multiblock_forward.10} parent=0 // pred_fallthru
    _
  // Predicated region
  $region38: #{multiblock_forward.10} parent=0 // pred_check
    _
  $region39: #{multiblock_forward.10} parent=0 // pred_check_branch
    %46 = sbr.rel (0) target = $region41
  $region40: #{multiblock_forward.10} parent=0 // pred_region
    _
  $region41: #{multiblock_forward.10} parent=0 // pred_fallthru
    _
  // Predicated region
  $region42: #{multiblock_forward.10} parent=0 // pred_check
    _
  $region43: #{multiblock_forward.10} parent=0 // pred_check_branch
    %48 = sbr.rel (0) target = $region45
  $region44: #{multiblock_forward.10} parent=0 // pred_region
    _
  $region45: #{multiblock_forward.10} parent=0 // pred_fallthru
    _
  // Predicated region
  $region46: #{multiblock_forward.10} parent=0 // pred_check
    _
  $region47: #{multiblock_forward.10} parent=0 // pred_check_branch
    %50 = sbr.rel (0) target = $region49
  $region48: #{multiblock_forward.10} parent=0 // pred_region
    _
  $region49: #{multiblock_forward.10} parent=0 // pred_fallthru
    _
  // Predicated region
  $region50: #{multiblock_forward.10} parent=0 // pred_check
    _
  $region51: #{multiblock_forward.10} parent=0 // pred_check_branch
    %52 = sbr.rel (0) target = $region53
  $region52: #{multiblock_forward.10} parent=0 // pred_region
    _
  $region53: #{multiblock_forward.10} parent=0 // pred_fallthru
    _
  // Predicated region
  $region54: #{multiblock_forward.10} parent=0 // pred_check
    _
  $region55: #{multiblock_forward.10} parent=0 // pred_check_branch
    %54 = sbr.rel (0) target = $region57
  $region56: #{multiblock_forward.10} parent=0 // pred_region
    _
  $region57: #{multiblock_forward.10} parent=0 // pred_fallthru
    _
  // Predicated region
  $region58: #{multiblock_forward.10} parent=0 // pred_check
    _
  $region59: #{multiblock_forward.10} parent=0 // pred_check_branch
    %56 = sbr.rel (0) target = $region61
  $region60: #{multiblock_forward.10} parent=0 // pred_region
    _
  $region61: #{multiblock_forward.10} parent=0 // pred_fallthru
    _
  // Predicated region
  $region62: #{multiblock_forward.10} parent=0 // pred_check
    _
  $region63: #{multiblock_forward.10} parent=0 // pred_check_branch
    %58 = sbr.rel (0) target = $region65
  $region64: #{multiblock_forward.10} parent=0 // pred_region
    _
  $region65: #{multiblock_forward.10} parent=0 // pred_fallthru
    _
  // Predicated region
  $region66: #{multiblock_forward.10} parent=0 // pred_check
    _
  $region67: #{multiblock_forward.10} parent=0 // pred_check_branch
    %60 = sbr.rel (0) target = $region69
  $region68: #{multiblock_forward.10} parent=0 // pred_region
    _
  $region69: #{multiblock_forward.10} parent=0 // pred_fallthru
    _
  // Predicated region
  $region70: #{multiblock_forward.10} parent=0 // pred_check
    _
  $region71: #{multiblock_forward.10} parent=0 // pred_check_branch
    %62 = sbr.rel (0) target = $region73
  $region72: #{multiblock_forward.10} parent=0 // pred_region
    _
  $region73: #{multiblock_forward.10} parent=0 // pred_fallthru
    _
  // Predicated region
  $region74: #{multiblock_forward.10} parent=0 // pred_check
    _
  $region75: #{multiblock_forward.10} parent=0 // pred_check_branch
    %64 = sbr.rel (0) target = $region77
  $region76: #{multiblock_forward.10} parent=0 // pred_region
    _
  $region77: #{multiblock_forward.10} parent=0 // pred_fallthru
    _
  // Predicated region
  $region78: #{multiblock_forward.10} parent=0 // pred_check
    _
  $region79: #{multiblock_forward.10} parent=0 // pred_check_branch
    %66 = sbr.rel (0) target = $region81
  $region80: #{multiblock_forward.10} parent=0 // pred_region
    _
  $region81: #{multiblock_forward.10} parent=0 // pred_fallthru
    _
  %v68 = vld [vmem:[%s0] sm:$0xff]
  %v69 = vld [vmem:[%s0 + $0x8] sm:$0xff]
  %v70 = vld [vmem:[%s1] sm:$0x3f]
  %v71 = vld [vmem:[%s1 + $0x8] sm:$0x3f]
  %v72 = vld [vmem:[%s2] sm:$0xff]
  %v73 = vld [vmem:[%s2 + $0x8] sm:$0xff]
  %v74 = vld [vmem:[%s4] sm:$0x3f]
  %v75 = vld [vmem:[%s4 + $0x8] sm:$0x3f]
  %77 = vset.pattern.permute.xlu0 0
  %78 = vperm.xlu0 %77, %v72
  %v79 = vpop.permute.xlu0 %78
  %82 = vset.pattern.permute.xlu0 0
  %83 = vperm.xlu0 %82, %v73
  %v84 = vpop.permute.xlu0 %83
  %v86 = vmul.f32 %v68, %v79
  %v87 = vmul.f32 %v69, %v84
  %vm88 = vcmask 261120
  %v89 = vsel %vm88, %v86, 0.0
  %v90 = vrot.slane %v89, 4
  %v91 = vadd.f32 %v89, %v90
  %v92 = vrot.slane %v91, 2
  %v93 = vadd.f32 %v91, %v92
  %v94 = vrot.slane %v93, 1
  %v95 = vadd.f32 %v93, %v94
  %v96 = vsel %vm88, %v87, 0.0
  %v97 = vrot.slane %v96, 4
  %v98 = vadd.f32 %v96, %v97
  %v99 = vrot.slane %v98, 2
  %v100 = vadd.f32 %v98, %v99
  %v101 = vrot.slane %v100, 1
  %v102 = vadd.f32 %v100, %v101
  %v103 = vld [vmem:[%s6] sm:$0x3]
  %105 = vset.pattern.permute.xlu0 0
  %106 = vperm.xlu0 %105, %v103
  %v107 = vpop.permute.xlu0 %106
  %v108 = vrot.slane %v107, 1
  %v111 = vmul.f32 %v95, %v107
  %v112 = vmul.f32 %v102, %v108
  %114 = vset.pattern.permute.xlu0 0
  %115 = vperm.xlu0 %114, %v74
  %v116 = vpop.permute.xlu0 %115
  %119 = vset.pattern.permute.xlu0 0
  %120 = vperm.xlu0 %119, %v75
  %v121 = vpop.permute.xlu0 %120
  %v123 = vmul.f32 %v70, %v116
  %v124 = vmul.f32 %v71, %v121
  %vm125 = vcmask 259072
  %v126 = vsel %vm125, %v123, 0.0
  %v127 = vrot.slane %v126, 4
  %v128 = vadd.f32 %v126, %v127
  %v129 = vrot.slane %v128, 2
  %v130 = vadd.f32 %v128, %v129
  %v131 = vrot.slane %v130, 1
  %v132 = vadd.f32 %v130, %v131
  %v133 = vsel %vm125, %v124, 0.0
  %v134 = vrot.slane %v133, 4
  %v135 = vadd.f32 %v133, %v134
  %v136 = vrot.slane %v135, 2
  %v137 = vadd.f32 %v135, %v136
  %v138 = vrot.slane %v137, 1
  %v139 = vadd.f32 %v137, %v138
  %v140 = vld [vmem:[%s7] sm:$0x3]
  %142 = vset.pattern.permute.xlu0 0
  %143 = vperm.xlu0 %142, %v140
  %v144 = vpop.permute.xlu0 %143
  %v145 = vrot.slane %v144, 1
  %v148 = vmul.f32 %v132, %v144
  %v149 = vmul.f32 %v139, %v145
  %v150 = vld [vmem:[%s8] sm:$0xf]
  %v151 = vld [vmem:[%s8 + $0x4] sm:$0xf]
  %v152 = vld [vmem:[%s8 + $0x8] sm:$0xf]
  %v153 = vld [vmem:[%s8 + $0xc] sm:$0xf]
  %v154 = vld [vmem:[%s9] sm:$0x1]
  %v155 = vpack.c.bf16 %v111, %v111
  %v156 = vpack.c.bf16 %v112, %v112
  %v158 = vperm.slane %v154, 0
  %v162 = vunpack.c.l.b16 %v155
  %v163 = vunpack.c.l.b16 %v156
  %v164 = vrot.slane %v163, 7
  %vm165 = vcmask 1041409
  %v166 = vsel %vm165, %v164, %v162
  %v167 = vpack.c.b16 %v166, %v166
  %v172 = vunpack.c.l.b16 %v150
  %v173 = vunpack.c.l.b16 %v151
  %v174 = vunpack.c.l.b16 %v152
  %v175 = vunpack.c.l.b16 %v153
  %v176 = vpack.c.b16 %v173, %v172
  %v177 = vpack.c.b16 %v175, %v174
  %v181 = vsel %vm88, %v167, 0
  %183 = vmatpush.bf16.msra.mxu0 0
  %184 = vmatpush.bf16.msra.mxu0 0
  %185 = vmatpush.bf16.msra.mxu0 0
  %186 = vmatpush.bf16.msra.mxu0 0
  %187 = vmatpush.bf16.msra.mxu0 0
  %188 = vmatpush.bf16.msra.mxu0 0
  %189 = vmatpush.bf16.msra.mxu0 %v177
  %190 = vmatpush.bf16.msra.mxu0 %v176
  %191 = vmatmul.bf16.gmra.mxu0 %v181
  %v192 = vpop.f32.mrf.mxu0
  %v193 = vadd.f32 %v158, %v192
  %v194 = vpop.f32.mrf.mxu0
  %195 = vdwg.mxu0
  %v196 = vsub.f32 0.0, %v193
  %v197 = vmul.f32 %v196, 1.442695
  %v198 = vpow.pop %v197
  %v199 = vadd.f32 %v198, 1.0
  %v200 = vrcp.pop %v199
  %v201 = vmul.f32 %v199, %v200
  %v202 = vsub.f32 1.0, %v201
  %v203 = vmul.f32 %v200, %v202
  %v204 = vadd.f32 %v200, %v203
  %vm205 = vweird.f32 %v199
  %vm206 = vweird.f32 %v200
  %vm207 = vmor %vm205, %vm206
  %v208 = vsel %vm207, %v200, %v204
  %v209 = vand.u32 2147483647, %v199
  %vm210 = vcmp.eq.f32.partialorder %v209, 8.507059e+37
  %v211 = vand.u32 %v199, 2147483648
  %v212 = vor.u32 1.1754944e-38, %v211
  %v213 = vsel %vm210, %v212, %v208
  %v214 = vmul.f32 1.0, %v213
  %v216 = vrot.slane %v214, 1
  %v218 = vld [vmem:[%s10] sm:$0xf]
  %v219 = vld [vmem:[%s10 + $0x4] sm:$0xf]
  %v220 = vld [vmem:[%s10 + $0x8] sm:$0xf]
  %v221 = vld [vmem:[%s10 + $0xc] sm:$0xf]
  %v222 = vld [vmem:[%s11] sm:$0x1]
  %v223 = vpack.c.bf16 %v148, %v148
  %v224 = vpack.c.bf16 %v149, %v149
  %v226 = vperm.slane %v222, 0
  %v230 = vunpack.c.l.b16 %v223
  %v231 = vunpack.c.l.b16 %v224
  %v232 = vrot.slane %v231, 7
  %v233 = vsel %vm165, %v232, %v230
  %v234 = vpack.c.b16 %v233, %v233
  %v239 = vunpack.c.l.b16 %v218
  %v240 = vunpack.c.l.b16 %v219
  %v241 = vunpack.c.l.b16 %v220
  %v242 = vunpack.c.l.b16 %v221
  %v243 = vpack.c.b16 %v240, %v239
  %v244 = vpack.c.b16 %v242, %v241
  %v248 = vsel %vm88, %v234, 0
  %250 = vmatpush.bf16.msra.mxu0 0
  %251 = vmatpush.bf16.msra.mxu0 0
  %252 = vmatpush.bf16.msra.mxu0 0
  %253 = vmatpush.bf16.msra.mxu0 0
  %254 = vmatpush.bf16.msra.mxu0 0
  %255 = vmatpush.bf16.msra.mxu0 0
  %256 = vmatpush.bf16.msra.mxu0 %v244
  %257 = vmatpush.bf16.msra.mxu0 %v243
  %258 = vmatmul.bf16.gmra.mxu0 %v248
  %v259 = vpop.f32.mrf.mxu0
  %v260 = vadd.f32 %v226, %v259
  %v261 = vpop.f32.mrf.mxu0
  %262 = vdwg.mxu0
  %v263 = vsub.f32 0.0, %v260
  %v264 = vmul.f32 %v263, 1.442695
  %v265 = vpow.pop %v264
  %v266 = vadd.f32 %v265, 1.0
  %v267 = vrcp.pop %v266
  %v268 = vmul.f32 %v266, %v267
  %v269 = vsub.f32 1.0, %v268
  %v270 = vmul.f32 %v267, %v269
  %v271 = vadd.f32 %v267, %v270
  %vm272 = vweird.f32 %v266
  %vm273 = vweird.f32 %v267
  %vm274 = vmor %vm272, %vm273
  %v275 = vsel %vm274, %v267, %v271
  %v276 = vand.u32 2147483647, %v266
  %vm277 = vcmp.eq.f32.partialorder %v276, 8.507059e+37
  %v278 = vand.u32 %v266, 2147483648
  %v279 = vor.u32 1.1754944e-38, %v278
  %v280 = vsel %vm277, %v279, %v275
  %v281 = vmul.f32 1.0, %v280
  %v283 = vrot.slane %v281, 1
  %v285 = vadd.f32 %v281, 1.0
  %v286 = vadd.f32 %v283, 1.0
  %v287 = vadd.f32 %v214, 1.0
  %v288 = vadd.f32 %v216, 1.0
  %v289 = vld [vmem:[%s12] sm:$0xf]
  %v290 = vld [vmem:[%s12 + $0x4] sm:$0xf]
  %v291 = vld [vmem:[%s12 + $0x8] sm:$0xf]
  %v292 = vld [vmem:[%s12 + $0xc] sm:$0xf]
  %v293 = vld [vmem:[%s13] sm:$0x1]
  %v294 = vpack.c.bf16 %v69, %v68
  %v296 = vperm.slane %v293, 0
  %v302 = vunpack.c.l.b16 %v289
  %v303 = vunpack.c.l.b16 %v290
  %v304 = vunpack.c.l.b16 %v291
  %v305 = vunpack.c.l.b16 %v292
  %v306 = vpack.c.b16 %v303, %v302
  %v307 = vpack.c.b16 %v305, %v304
  %v311 = vsel %vm88, %v294, 0
  %313 = vmatpush.bf16.msra.mxu0 0
  %314 = vmatpush.bf16.msra.mxu0 0
  %315 = vmatpush.bf16.msra.mxu0 0
  %316 = vmatpush.bf16.msra.mxu0 0
  %317 = vmatpush.bf16.msra.mxu0 0
  %318 = vmatpush.bf16.msra.mxu0 0
  %319 = vmatpush.bf16.msra.mxu0 %v307
  %320 = vmatpush.bf16.msra.mxu0 %v306
  %321 = vmatmul.bf16.gmra.mxu0 %v311
  %v322 = vpop.f32.mrf.mxu0
  %v323 = vadd.f32 %v296, %v322
  %v324 = vpop.f32.mrf.mxu0
  %v325 = vadd.f32 %v296, %v324
  %326 = vdwg.mxu0
  %v327 = vmul.f32 %v323, %v79
  %v328 = vmul.f32 %v325, %v84
  %v331 = vrot.slane %v70, 2
  %v332 = vrot.slane %v70, 4
  %v333 = vrot.slane %v71, 2
  %v334 = vrot.slane %v71, 4
  %v335 = vld [vmem:[%s14] sm:$0xf]
  %v336 = vld [vmem:[%s14 + $0x4] sm:$0xf]
  %v337 = vld [vmem:[%s14 + $0x8] sm:$0xf]
  %v338 = vld [vmem:[%s14 + $0xc] sm:$0xf]
  %v339 = vld [vmem:[%s15] sm:$0x1]
  %340 = vst [vmem:[#allocation1] ss:$4 sm:$0xff] %v70
  %s341 = scalar_lea.vmem [#allocation1], 1
  %342 = vst [vmem:[%s341] ss:$4 sm:$0xff] %v331
  %s343 = scalar_lea.vmem [#allocation1], 2
  %344 = vst [vmem:[%s343] ss:$4 sm:$0xff] %v332
  %s345 = scalar_lea.vmem [#allocation1], 3
  %346 = vst [vmem:[%s345] ss:$4 sm:$0xff] %v71
  %s347 = scalar_lea.vmem [#allocation1], 32
  %348 = vst [vmem:[%s347] ss:$4 sm:$0xff] %v333
  %s349 = scalar_lea.vmem [#allocation1], 33
  %350 = vst [vmem:[%s349] ss:$4 sm:$0xff] %v334
  %v351 = vld.sshfl [vmem:[#allocation1] sm:$0xff pattern:$0x73625140]
  %v352 = vld.sshfl [vmem:[#allocation1 + $0x20] sm:$0xff pattern:$0x73625140]
  %v355 = vpack.c.bf16 %v352, %v351
  %v357 = vperm.slane %v339, 0
  %v363 = vunpack.c.l.b16 %v335
  %v364 = vunpack.c.l.b16 %v336
  %v365 = vunpack.c.l.b16 %v337
  %v366 = vunpack.c.l.b16 %v338
  %v367 = vpack.c.b16 %v364, %v363
  %v368 = vpack.c.b16 %v366, %v365
  %v372 = vsel %vm88, %v355, 0
  %374 = vmatpush.bf16.msra.mxu0 0
  %375 = vmatpush.bf16.msra.mxu0 0
  %376 = vmatpush.bf16.msra.mxu0 0
  %377 = vmatpush.bf16.msra.mxu0 0
  %378 = vmatpush.bf16.msra.mxu0 0
  %379 = vmatpush.bf16.msra.mxu0 0
  %380 = vmatpush.bf16.msra.mxu0 %v368
  %381 = vmatpush.bf16.msra.mxu0 %v367
  %382 = vmatmul.bf16.gmra.mxu0 %v372
  %v383 = vpop.f32.mrf.mxu0
  %v384 = vadd.f32 %v357, %v383
  %v385 = vpop.f32.mrf.mxu0
  %v386 = vadd.f32 %v357, %v385
  %387 = vdwg.mxu0
  %v390 = vrot.slane %v384, 2
  %v391 = vrot.slane %v384, 4
  %v392 = vrot.slane %v384, 6
  %v393 = vrot.slane %v386, 2
  %v399 = vunpack.c.l.s4 269488144
  %v400 = vunpack.c.0.s8 %v399
  %v401 = vperm.slane %v116, %v400
  %v403 = vunpack.c.l.s4 842150450
  %v404 = vunpack.c.0.s8 %v403
  %v405 = vperm.slane %v116, %v404
  %v407 = vunpack.c.l.s4 1414812756
  %v408 = vunpack.c.0.s8 %v407
  %v409 = vperm.slane %v116, %v408
  %v411 = vunpack.c.l.s4 269488144
  %v412 = vunpack.c.0.s8 %v411
  %v413 = vperm.slane %v121, %v412
  %v415 = vunpack.c.l.s4 842150450
  %v416 = vunpack.c.0.s8 %v415
  %v417 = vperm.slane %v121, %v416
  %v419 = vunpack.c.l.s4 1414812756
  %v420 = vunpack.c.0.s8 %v419
  %v421 = vperm.slane %v121, %v420
  %v428 = vmul.f32 %v384, %v401
  %v429 = vmul.f32 %v390, %v405
  %v430 = vmul.f32 %v391, %v409
  %v431 = vmul.f32 %v392, %v413
  %v432 = vmul.f32 %v386, %v417
  %v433 = vmul.f32 %v393, %v421
  %v436 = vperm.slane %v285, 0
  %v437 = vperm.slane %v286, 0
  %v440 = vmul.f32 %v436, %v327
  %v441 = vmul.f32 %v437, %v328
  %v442 = vpack.c.bf16 %v440, %v440
  %v443 = vpack.c.bf16 %v441, %v441
  %446 = vrot.lane.b32.xlu0 %v327, 96
  %v447 = vpop.permute.xlu0 %446
  %448 = vrot.lane.b32.xlu0 %v328, 96
  %v449 = vpop.permute.xlu0 %448
  %v452 = vmul.f32 %v436, %v447
  %v453 = vmul.f32 %v437, %v449
  %v454 = vpack.c.bf16 %v452, %v452
  %v455 = vpack.c.bf16 %v453, %v453
  %456 = vrot.lane.b32.xlu0 %v327, 64
  %v457 = vpop.permute.xlu0 %456
  %458 = vrot.lane.b32.xlu0 %v328, 64
  %v459 = vpop.permute.xlu0 %458
  %v462 = vmul.f32 %v436, %v457
  %v463 = vmul.f32 %v437, %v459
  %v464 = vpack.c.bf16 %v462, %v462
  %v465 = vpack.c.bf16 %v463, %v463
  %v468 = vperm.slane %v287, 0
  %v469 = vperm.slane %v288, 0
  %478 = vst [vmem:[#allocation1] ss:$4 sm:$0xff] %v428
  %s479 = scalar_lea.vmem [#allocation1], 1
  %480 = vst [vmem:[%s479] ss:$4 sm:$0xff] %v429
  %s481 = scalar_lea.vmem [#allocation1], 2
  %482 = vst [vmem:[%s481] ss:$4 sm:$0xff] %v430
  %v483 = vld.sshfl [vmem:[#allocation1] sm:$0xff pattern:$0x73625140]
  %s484 = scalar_lea.vmem [#allocation1], 32
  %485 = vst [vmem:[%s484] ss:$4 sm:$0xff] %v431
  %s486 = scalar_lea.vmem [#allocation1], 33
  %487 = vst [vmem:[%s486] ss:$4 sm:$0xff] %v432
  %s488 = scalar_lea.vmem [#allocation1], 34
  %489 = vst [vmem:[%s488] ss:$4 sm:$0xff] %v433
  %v490 = vld.sshfl [vmem:[#allocation1 + $0x20] sm:$0xff pattern:$0x73625140]
  %v493 = vmul.f32 %v468, %v483
  %v494 = vmul.f32 %v469, %v490
  %v495 = vpack.c.bf16 %v493, %v493
  %v496 = vpack.c.bf16 %v494, %v494
  %497 = vst [vmem:[#allocation1] ss:$4 sm:$0xff] %v428
  %s498 = scalar_lea.vmem [#allocation1], 1
  %499 = vst [vmem:[%s498] ss:$4 sm:$0xff] %v429
  %s500 = scalar_lea.vmem [#allocation1], 2
  %501 = vst [vmem:[%s500] ss:$4 sm:$0xff] %v430
  %v502 = vld.sshfl [vmem:[#allocation1] sm:$0xff pattern:$0x73625140]
  %s503 = scalar_lea.vmem [#allocation1], 32
  %504 = vst [vmem:[%s503] ss:$4 sm:$0xff] %v431
  %s505 = scalar_lea.vmem [#allocation1], 33
  %506 = vst [vmem:[%s505] ss:$4 sm:$0xff] %v432
  %s507 = scalar_lea.vmem [#allocation1], 34
  %508 = vst [vmem:[%s507] ss:$4 sm:$0xff] %v433
  %v509 = vld.sshfl [vmem:[#allocation1 + $0x20] sm:$0xff pattern:$0x73625140]
  %510 = vrot.lane.b32.xlu0 %v502, 96
  %v511 = vpop.permute.xlu0 %510
  %512 = vrot.lane.b32.xlu0 %v509, 96
  %v513 = vpop.permute.xlu0 %512
  %v516 = vmul.f32 %v468, %v511
  %v517 = vmul.f32 %v469, %v513
  %v518 = vpack.c.bf16 %v516, %v516
  %v519 = vpack.c.bf16 %v517, %v517
  %520 = vst [vmem:[#allocation1] ss:$4 sm:$0xff] %v428
  %s521 = scalar_lea.vmem [#allocation1], 1
  %522 = vst [vmem:[%s521] ss:$4 sm:$0xff] %v429
  %s523 = scalar_lea.vmem [#allocation1], 2
  %524 = vst [vmem:[%s523] ss:$4 sm:$0xff] %v430
  %v525 = vld.sshfl [vmem:[#allocation1] sm:$0xff pattern:$0x73625140]
  %s526 = scalar_lea.vmem [#allocation1], 32
  %527 = vst [vmem:[%s526] ss:$4 sm:$0xff] %v431
  %s528 = scalar_lea.vmem [#allocation1], 33
  %529 = vst [vmem:[%s528] ss:$4 sm:$0xff] %v432
  %s530 = scalar_lea.vmem [#allocation1], 34
  %531 = vst [vmem:[%s530] ss:$4 sm:$0xff] %v433
  %v532 = vld.sshfl [vmem:[#allocation1 + $0x20] sm:$0xff pattern:$0x73625140]
  %533 = vrot.lane.b32.xlu0 %v525, 64
  %v534 = vpop.permute.xlu0 %533
  %535 = vrot.lane.b32.xlu0 %v532, 64
  %v536 = vpop.permute.xlu0 %535
  %v539 = vmul.f32 %v468, %v534
  %v540 = vmul.f32 %v469, %v536
  %v541 = vpack.c.bf16 %v539, %v539
  %v542 = vpack.c.bf16 %v540, %v540
  %v543 = vld [vmem:[%s3] sm:$0x1]
  %v544 = vld [vmem:[%s3 + $0x1] sm:$0x1]
  %v545 = vsub.f32 %v543, 1.0
  %v546 = vsub.f32 %v544, 1.0
  %v547 = vmul.f32 %v545, 1e+30
  %v548 = vmul.f32 %v546, 1e+30
  %v549 = vld [vmem:[%s5] sm:$0x1]
  %v550 = vld [vmem:[%s5 + $0x1] sm:$0x1]
  %v551 = vsub.f32 %v549, 1.0
  %v552 = vsub.f32 %v550, 1.0
  %v553 = vmul.f32 %v551, 1e+30
  %v554 = vmul.f32 %v552, 1e+30
  %v555 = vld [vmem:[%s16] sm:$0xf]
  %v556 = vld [vmem:[%s16 + $0x4] sm:$0xf]
  %v557 = vld [vmem:[%s16 + $0x8] sm:$0xf]
  %v558 = vld [vmem:[%s16 + $0xc] sm:$0xf]
  %v559 = vld [vmem:[%s18] sm:$0xf]
  %v560 = vld [vmem:[%s18 + $0x4] sm:$0xf]
  %v561 = vld [vmem:[%s18 + $0x8] sm:$0xf]
  %v562 = vld [vmem:[%s18 + $0xc] sm:$0xf]
  %v563 = vld [vmem:[%s17] sm:$0x1]
  %v565 = vperm.slane %v563, 0
  %v571 = vunpack.c.l.b16 %v555
  %v572 = vunpack.c.l.b16 %v556
  %v573 = vunpack.c.l.b16 %v557
  %v574 = vunpack.c.l.b16 %v558
  %v575 = vpack.c.b16 %v572, %v571
  %v576 = vpack.c.b16 %v574, %v573
  %579 = vmatpush.bf16.msra.mxu0 0
  %580 = vmatpush.bf16.msra.mxu0 0
  %581 = vmatpush.bf16.msra.mxu0 0
  %582 = vmatpush.bf16.msra.mxu0 0
  %583 = vmatpush.bf16.msra.mxu0 0
  %584 = vmatpush.bf16.msra.mxu0 0
  %585 = vmatpush.bf16.msra.mxu0 %v576
  %586 = vmatpush.bf16.msra.mxu0 %v575
  %587 = vmatmul.bf16.gmra.mxu0 %v311
  %v588 = vpop.f32.mrf.mxu0
  %v589 = vadd.f32 %v565, %v588
  %v590 = vpop.f32.mrf.mxu0
  %v591 = vadd.f32 %v565, %v590
  %592 = vdwg.mxu0
  %v593 = vld [vmem:[%s19] sm:$0x1]
  %v595 = vperm.slane %v593, 0
  %v601 = vunpack.c.l.b16 %v559
  %v602 = vunpack.c.l.b16 %v560
  %v603 = vunpack.c.l.b16 %v561
  %v604 = vunpack.c.l.b16 %v562
  %v605 = vpack.c.b16 %v602, %v601
  %v606 = vpack.c.b16 %v604, %v603
  %609 = vmatpush.bf16.msra.mxu0 0
  %610 = vmatpush.bf16.msra.mxu0 0
  %611 = vmatpush.bf16.msra.mxu0 0
  %612 = vmatpush.bf16.msra.mxu0 0
  %613 = vmatpush.bf16.msra.mxu0 0
  %614 = vmatpush.bf16.msra.mxu0 0
  %615 = vmatpush.bf16.msra.mxu0 %v606
  %616 = vmatpush.bf16.msra.mxu0 %v605
  %617 = vmatmul.bf16.gmra.mxu0 %v372
  %v618 = vpop.f32.mrf.mxu0
  %v619 = vadd.f32 %v595, %v618
  %v620 = vpop.f32.mrf.mxu0
  %v621 = vadd.f32 %v595, %v620
  %622 = vdwg.mxu0
  %vm623 = vcmask 130048
  %v625 = vsel %vm623, %v454, 0
  %v628 = vsel %vm623, %v442, 0
  %630 = vmatpush.bf16.xpose.msra.mxu0 0
  %631 = vmatpush.bf16.xpose.msra.mxu0 0
  %632 = vmatpush.bf16.xpose.msra.mxu0 0
  %633 = vmatpush.bf16.xpose.msra.mxu0 0
  %634 = vmatpush.bf16.xpose.msra.mxu0 0
  %635 = vmatpush.bf16.xpose.msra.mxu0 0
  %636 = vmatpush.bf16.xpose.msra.mxu0 0
  %637 = vmatpush.bf16.xpose.msra.mxu0 %v628
  %638 = vmatmul.bf16.gmra.mxu0 %v625
  %v639 = vpop.f32.mrf.mxu0
  %v640 = vadd.f32 0.0, %v639
  %v641 = vpop.f32.mrf.mxu0
  %642 = vdwg.mxu0
  %v644 = vsel %vm623, %v455, 0
  %v647 = vsel %vm623, %v443, 0
  %649 = vmatpush.bf16.xpose.msra.mxu0 0
  %650 = vmatpush.bf16.xpose.msra.mxu0 0
  %651 = vmatpush.bf16.xpose.msra.mxu0 0
  %652 = vmatpush.bf16.xpose.msra.mxu0 0
  %653 = vmatpush.bf16.xpose.msra.mxu0 0
  %654 = vmatpush.bf16.xpose.msra.mxu0 0
  %655 = vmatpush.bf16.xpose.msra.mxu0 0
  %656 = vmatpush.bf16.xpose.msra.mxu0 %v647
  %657 = vmatmul.bf16.gmra.mxu0 %v644
  %v658 = vpop.f32.mrf.mxu0
  %v659 = vadd.f32 0.0, %v658
  %v660 = vpop.f32.mrf.mxu0
  %661 = vdwg.mxu0
  %v662 = vmul.f32 %v640, 0.25
  %v663 = vmul.f32 %v659, 0.25
  %v666 = vperm.slane %v547, 0
  %v667 = vperm.slane %v548, 0
  %v670 = vadd.f32 %v662, %v666
  %v671 = vadd.f32 %v663, %v667
  %vm672 = vcmask 64512
  %v673 = vsel %vm672, %v670, -inf
  %674 = vmax.xlane.f32.xlu0 %v673
  %v675 = vpop.xlane.xlu0 %674
  %v676 = vsel %vm672, %v671, -inf
  %677 = vmax.xlane.f32.xlu0 %v676
  %v678 = vpop.xlane.xlu0 %677
  %v679 = vsub.f32 %v670, %v675
  %v680 = vsub.f32 %v671, %v678
  %v681 = vmul.f32 %v679, 1.442695
  %v682 = vpow.pop %v681
  %v683 = vmul.f32 %v680, 1.442695
  %v684 = vpow.pop %v683
  %v685 = vsel %vm672, %v682, 0.0
  %686 = vadd.xlane.f32.xlu0 %v685
  %v687 = vpop.xlane.xlu0 %686
  %v688 = vsel %vm672, %v684, 0.0
  %689 = vadd.xlane.f32.xlu0 %v688
  %v690 = vpop.xlane.xlu0 %689
  %v691 = vrcp.pop %v687
  %v692 = vrcp.pop %v690
  %v693 = vmul.f32 %v682, %v691
  %v694 = vmul.f32 %v684, %v692
  %v695 = vpack.c.bf16 %v693, %v693
  %v696 = vpack.c.bf16 %v694, %v694
  %v698 = vsel %vm672, %v695, 0
  %vm700 = vcmask 1043456
  %v702 = vsel %vm700, %v464, 0
  %704 = vmatpush.bf16.msra.mxu0 0
  %705 = vmatpush.bf16.msra.mxu0 0
  %706 = vmatpush.bf16.msra.mxu0 0
  %707 = vmatpush.bf16.msra.mxu0 0
  %708 = vmatpush.bf16.msra.mxu0 0
  %709 = vmatpush.bf16.msra.mxu0 0
  %710 = vmatpush.bf16.msra.mxu0 0
  %711 = vmatpush.bf16.msra.mxu0 %v702
  %712 = vmatmul.bf16.gmra.mxu0 %v698
  %v713 = vpop.f32.mrf.mxu0
  %v714 = vadd.f32 0.0, %v713
  %v715 = vpop.f32.mrf.mxu0
  %716 = vdwg.mxu0
  %v718 = vsel %vm672, %v696, 0
  %v721 = vsel %vm700, %v465, 0
  %723 = vmatpush.bf16.msra.mxu0 0
  %724 = vmatpush.bf16.msra.mxu0 0
  %725 = vmatpush.bf16.msra.mxu0 0
  %726 = vmatpush.bf16.msra.mxu0 0
  %727 = vmatpush.bf16.msra.mxu0 0
  %728 = vmatpush.bf16.msra.mxu0 0
  %729 = vmatpush.bf16.msra.mxu0 0
  %730 = vmatpush.bf16.msra.mxu0 %v721
  %731 = vmatmul.bf16.gmra.mxu0 %v718
  %v732 = vpop.f32.mrf.mxu0
  %v733 = vadd.f32 0.0, %v732
  %v734 = vpop.f32.mrf.mxu0
  %735 = vdwg.mxu0
  %v736 = vpack.c.bf16 %v733, %v714
  %v738 = vsel %vm623, %v736, 0
  %740 = vmatpush.bf16.msra.mxu0 0
  %741 = vmatpush.bf16.msra.mxu0 0
  %742 = vmatpush.bf16.msra.mxu0 0
  %743 = vmatpush.bf16.msra.mxu0 0
  %744 = vmatpush.bf16.msra.mxu0 0
  %745 = vmatpush.bf16.msra.mxu0 0
  %746 = vmatpush.bf16.msra.mxu0 0
  %747 = vmatpush.bf16.msra.mxu0 %v575
  %748 = vmatmul.bf16.gmra.mxu0 %v738
  %v749 = vpop.f32.mrf.mxu0
  %v750 = vadd.f32 0.0, %v749
  %v751 = vpop.f32.mrf.mxu0
  %v752 = vadd.f32 0.0, %v751
  %753 = vdwg.mxu0
  %v754 = vadd.f32 %v589, %v750
  %v755 = vadd.f32 %v591, %v752
  %v757 = vsel %vm623, %v518, 0
  %v760 = vsel %vm623, %v495, 0
  %762 = vmatpush.bf16.xpose.msra.mxu0 0
  %763 = vmatpush.bf16.xpose.msra.mxu0 0
  %764 = vmatpush.bf16.xpose.msra.mxu0 0
  %765 = vmatpush.bf16.xpose.msra.mxu0 0
  %766 = vmatpush.bf16.xpose.msra.mxu0 0
  %767 = vmatpush.bf16.xpose.msra.mxu0 0
  %768 = vmatpush.bf16.xpose.msra.mxu0 0
  %769 = vmatpush.bf16.xpose.msra.mxu0 %v760
  %770 = vmatmul.bf16.gmra.mxu0 %v757
  %v771 = vpop.f32.mrf.mxu0
  %v772 = vadd.f32 0.0, %v771
  %v773 = vpop.f32.mrf.mxu0
  %774 = vdwg.mxu0
  %v776 = vsel %vm623, %v519, 0
  %v779 = vsel %vm623, %v496, 0
  %781 = vmatpush.bf16.xpose.msra.mxu0 0
  %782 = vmatpush.bf16.xpose.msra.mxu0 0
  %783 = vmatpush.bf16.xpose.msra.mxu0 0
  %784 = vmatpush.bf16.xpose.msra.mxu0 0
  %785 = vmatpush.bf16.xpose.msra.mxu0 0
  %786 = vmatpush.bf16.xpose.msra.mxu0 0
  %787 = vmatpush.bf16.xpose.msra.mxu0 0
  %788 = vmatpush.bf16.xpose.msra.mxu0 %v779
  %789 = vmatmul.bf16.gmra.mxu0 %v776
  %v790 = vpop.f32.mrf.mxu0
  %v791 = vadd.f32 0.0, %v790
  %v792 = vpop.f32.mrf.mxu0
  %793 = vdwg.mxu0
  %v794 = vmul.f32 %v772, 0.25
  %v795 = vmul.f32 %v791, 0.25
  %v798 = vperm.slane %v553, 0
  %v799 = vperm.slane %v554, 0
  %v802 = vadd.f32 %v794, %v798
  %v803 = vadd.f32 %v795, %v799
  %vm804 = vcmask 46080
  %v805 = vsel %vm804, %v802, -inf
  %806 = vmax.xlane.f32.xlu0 %v805
  %v807 = vpop.xlane.xlu0 %806
  %v808 = vsel %vm804, %v803, -inf
  %809 = vmax.xlane.f32.xlu0 %v808
  %v810 = vpop.xlane.xlu0 %809
  %v811 = vsub.f32 %v802, %v807
  %v812 = vsub.f32 %v803, %v810
  %v813 = vmul.f32 %v811, 1.442695
  %v814 = vpow.pop %v813
  %v815 = vmul.f32 %v812, 1.442695
  %v816 = vpow.pop %v815
  %v817 = vsel %vm804, %v814, 0.0
  %818 = vadd.xlane.f32.xlu0 %v817
  %v819 = vpop.xlane.xlu0 %818
  %v820 = vsel %vm804, %v816, 0.0
  %821 = vadd.xlane.f32.xlu0 %v820
  %v822 = vpop.xlane.xlu0 %821
  %v823 = vrcp.pop %v819
  %v824 = vrcp.pop %v822
  %v825 = vmul.f32 %v814, %v823
  %v826 = vmul.f32 %v816, %v824
  %v827 = vpack.c.bf16 %v825, %v825
  %v828 = vpack.c.bf16 %v826, %v826
  %vm829 = vcmask 48128
  %v831 = vsel %vm829, %v827, 0
  %vm833 = vcmask 1042432
  %v835 = vsel %vm833, %v541, 0
  %837 = vmatpush.bf16.msra.mxu0 0
  %838 = vmatpush.bf16.msra.mxu0 0
  %839 = vmatpush.bf16.msra.mxu0 0
  %840 = vmatpush.bf16.msra.mxu0 0
  %841 = vmatpush.bf16.msra.mxu0 0
  %842 = vmatpush.bf16.msra.mxu0 0
  %843 = vmatpush.bf16.msra.mxu0 0
  %844 = vmatpush.bf16.msra.mxu0 %v835
  %845 = vmatmul.bf16.gmra.mxu0 %v831
  %v846 = vpop.f32.mrf.mxu0
  %v847 = vadd.f32 0.0, %v846
  %v848 = vpop.f32.mrf.mxu0
  %849 = vdwg.mxu0
  %v851 = vsel %vm829, %v828, 0
  %v854 = vsel %vm833, %v542, 0
  %856 = vmatpush.bf16.msra.mxu0 0
  %857 = vmatpush.bf16.msra.mxu0 0
  %858 = vmatpush.bf16.msra.mxu0 0
  %859 = vmatpush.bf16.msra.mxu0 0
  %860 = vmatpush.bf16.msra.mxu0 0
  %861 = vmatpush.bf16.msra.mxu0 0
  %862 = vmatpush.bf16.msra.mxu0 0
  %863 = vmatpush.bf16.msra.mxu0 %v854
  %864 = vmatmul.bf16.gmra.mxu0 %v851
  %v865 = vpop.f32.mrf.mxu0
  %v866 = vadd.f32 0.0, %v865
  %v867 = vpop.f32.mrf.mxu0
  %868 = vdwg.mxu0
  %v871 = vrot.slane %v847, 2
  %v872 = vrot.slane %v847, 4
  %v873 = vrot.slane %v866, 2
  %v874 = vrot.slane %v866, 4
  %875 = vst [vmem:[#allocation1] ss:$4 sm:$0xff] %v847
  %s876 = scalar_lea.vmem [#allocation1], 1
  %877 = vst [vmem:[%s876] ss:$4 sm:$0xff] %v871
  %s878 = scalar_lea.vmem [#allocation1], 2
  %879 = vst [vmem:[%s878] ss:$4 sm:$0xff] %v872
  %s880 = scalar_lea.vmem [#allocation1], 3
  %881 = vst [vmem:[%s880] ss:$4 sm:$0xff] %v866
  %s882 = scalar_lea.vmem [#allocation1], 32
  %883 = vst [vmem:[%s882] ss:$4 sm:$0xff] %v873
  %s884 = scalar_lea.vmem [#allocation1], 33
  %885 = vst [vmem:[%s884] ss:$4 sm:$0xff] %v874
  %v886 = vld.sshfl [vmem:[#allocation1] sm:$0xff pattern:$0x73625140]
  %v887 = vld.sshfl [vmem:[#allocation1 + $0x20] sm:$0xff pattern:$0x73625140]
  %v890 = vpack.c.bf16 %v887, %v886
  %v892 = vsel %vm623, %v890, 0
  %894 = vmatpush.bf16.msra.mxu0 0
  %895 = vmatpush.bf16.msra.mxu0 0
  %896 = vmatpush.bf16.msra.mxu0 0
  %897 = vmatpush.bf16.msra.mxu0 0
  %898 = vmatpush.bf16.msra.mxu0 0
  %899 = vmatpush.bf16.msra.mxu0 0
  %900 = vmatpush.bf16.msra.mxu0 0
  %901 = vmatpush.bf16.msra.mxu0 %v605
  %902 = vmatmul.bf16.gmra.mxu0 %v892
  %v903 = vpop.f32.mrf.mxu0
  %v904 = vadd.f32 0.0, %v903
  %v905 = vpop.f32.mrf.mxu0
  %v906 = vadd.f32 0.0, %v905
  %907 = vdwg.mxu0
  %v908 = vadd.f32 %v619, %v904
  %v909 = vadd.f32 %v621, %v906
  %v911 = vunpack.c.l.b16 %v454
  %v912 = vpack.c.b16 %v911, %v911
  %913 = vrot.lane.b32.xlu0 %v912, 112
  %v914 = vpop.permute.xlu0 %913
  %v916 = vunpack.c.l.b16 %v442
  %v917 = vpack.c.b16 %v916, %v916
  %918 = vrot.lane.b32.xlu0 %v917, 112
  %v919 = vpop.permute.xlu0 %918
  %v921 = vsel %vm623, %v914, 0
  %v924 = vsel %vm623, %v919, 0
  %926 = vmatpush.bf16.xpose.msra.mxu0 0
  %927 = vmatpush.bf16.xpose.msra.mxu0 0
  %928 = vmatpush.bf16.xpose.msra.mxu0 0
  %929 = vmatpush.bf16.xpose.msra.mxu0 0
  %930 = vmatpush.bf16.xpose.msra.mxu0 0
  %931 = vmatpush.bf16.xpose.msra.mxu0 0
  %932 = vmatpush.bf16.xpose.msra.mxu0 0
  %933 = vmatpush.bf16.xpose.msra.mxu0 %v924
  %934 = vmatmul.bf16.gmra.mxu0 %v921
  %v935 = vpop.f32.mrf.mxu0
  %v936 = vadd.f32 0.0, %v935
  %v937 = vpop.f32.mrf.mxu0
  %938 = vdwg.mxu0
  %v940 = vunpack.c.l.b16 %v455
  %v941 = vpack.c.b16 %v940, %v940
  %942 = vrot.lane.b32.xlu0 %v941, 112
  %v943 = vpop.permute.xlu0 %942
  %v945 = vunpack.c.l.b16 %v443
  %v946 = vpack.c.b16 %v945, %v945
  %947 = vrot.lane.b32.xlu0 %v946, 112
  %v948 = vpop.permute.xlu0 %947
  %v950 = vsel %vm623, %v943, 0
  %v953 = vsel %vm623, %v948, 0
  %955 = vmatpush.bf16.xpose.msra.mxu0 0
  %956 = vmatpush.bf16.xpose.msra.mxu0 0
  %957 = vmatpush.bf16.xpose.msra.mxu0 0
  %958 = vmatpush.bf16.xpose.msra.mxu0 0
  %959 = vmatpush.bf16.xpose.msra.mxu0 0
  %960 = vmatpush.bf16.xpose.msra.mxu0 0
  %961 = vmatpush.bf16.xpose.msra.mxu0 0
  %962 = vmatpush.bf16.xpose.msra.mxu0 %v953
  %963 = vmatmul.bf16.gmra.mxu0 %v950
  %v964 = vpop.f32.mrf.mxu0
  %v965 = vadd.f32 0.0, %v964
  %v966 = vpop.f32.mrf.mxu0
  %967 = vdwg.mxu0
  %v968 = vmul.f32 %v936, 0.25
  %v969 = vmul.f32 %v965, 0.25
  %v970 = vadd.f32 %v968, %v666
  %v971 = vadd.f32 %v969, %v667
  %v972 = vsel %vm672, %v970, -inf
  %973 = vmax.xlane.f32.xlu0 %v972
  %v974 = vpop.xlane.xlu0 %973
  %v975 = vsel %vm672, %v971, -inf
  %976 = vmax.xlane.f32.xlu0 %v975
  %v977 = vpop.xlane.xlu0 %976
  %v978 = vsub.f32 %v970, %v974
  %v979 = vsub.f32 %v971, %v977
  %v980 = vmul.f32 %v978, 1.442695
  %v981 = vpow.pop %v980
  %v982 = vmul.f32 %v979, 1.442695
  %v983 = vpow.pop %v982
  %v984 = vsel %vm672, %v981, 0.0
  %985 = vadd.xlane.f32.xlu0 %v984
  %v986 = vpop.xlane.xlu0 %985
  %v987 = vsel %vm672, %v983, 0.0
  %988 = vadd.xlane.f32.xlu0 %v987
  %v989 = vpop.xlane.xlu0 %988
  %v990 = vrcp.pop %v986
  %v991 = vrcp.pop %v989
  %v992 = vmul.f32 %v981, %v990
  %v993 = vmul.f32 %v983, %v991
  %v994 = vpack.c.bf16 %v992, %v992
  %v995 = vpack.c.bf16 %v993, %v993
  %v997 = vunpack.c.l.b16 %v464
  %v998 = vpack.c.b16 %v997, %v997
  %999 = vrot.lane.b32.xlu0 %v998, 112
  %v1000 = vpop.permute.xlu0 %999
  %v1002 = vsel %vm672, %v994, 0
  %v1005 = vsel %vm700, %v1000, 0
  %1007 = vmatpush.bf16.msra.mxu0 0
  %1008 = vmatpush.bf16.msra.mxu0 0
  %1009 = vmatpush.bf16.msra.mxu0 0
  %1010 = vmatpush.bf16.msra.mxu0 0
  %1011 = vmatpush.bf16.msra.mxu0 0
  %1012 = vmatpush.bf16.msra.mxu0 0
  %1013 = vmatpush.bf16.msra.mxu0 0
  %1014 = vmatpush.bf16.msra.mxu0 %v1005
  %1015 = vmatmul.bf16.gmra.mxu0 %v1002
  %v1016 = vpop.f32.mrf.mxu0
  %v1017 = vadd.f32 0.0, %v1016
  %v1018 = vpop.f32.mrf.mxu0
  %1019 = vdwg.mxu0
  %v1021 = vunpack.c.l.b16 %v465
  %v1022 = vpack.c.b16 %v1021, %v1021
  %1023 = vrot.lane.b32.xlu0 %v1022, 112
  %v1024 = vpop.permute.xlu0 %1023
  %v1026 = vsel %vm672, %v995, 0
  %v1029 = vsel %vm700, %v1024, 0
  %1031 = vmatpush.bf16.msra.mxu0 0
  %1032 = vmatpush.bf16.msra.mxu0 0
  %1033 = vmatpush.bf16.msra.mxu0 0
  %1034 = vmatpush.bf16.msra.mxu0 0
  %1035 = vmatpush.bf16.msra.mxu0 0
  %1036 = vmatpush.bf16.msra.mxu0 0
  %1037 = vmatpush.bf16.msra.mxu0 0
  %1038 = vmatpush.bf16.msra.mxu0 %v1029
  %1039 = vmatmul.bf16.gmra.mxu0 %v1026
  %v1040 = vpop.f32.mrf.mxu0
  %v1041 = vadd.f32 0.0, %v1040
  %v1042 = vpop.f32.mrf.mxu0
  %1043 = vdwg.mxu0
  %v1044 = vpack.c.bf16 %v1041, %v1017
  %v1046 = vsel %vm623, %v1044, 0
  %1048 = vmatpush.bf16.msra.mxu0 0
  %1049 = vmatpush.bf16.msra.mxu0 0
  %1050 = vmatpush.bf16.msra.mxu0 0
  %1051 = vmatpush.bf16.msra.mxu0 0
  %1052 = vmatpush.bf16.msra.mxu0 0
  %1053 = vmatpush.bf16.msra.mxu0 0
  %1054 = vmatpush.bf16.msra.mxu0 0
  %1055 = vmatpush.bf16.msra.mxu0 %v576
  %1056 = vmatmul.bf16.gmra.mxu0 %v1046
  %v1057 = vpop.f32.mrf.mxu0
  %v1058 = vadd.f32 0.0, %v1057
  %v1059 = vpop.f32.mrf.mxu0
  %v1060 = vadd.f32 0.0, %v1059
  %1061 = vdwg.mxu0
  %v1062 = vadd.f32 %v754, %v1058
  %v1063 = vadd.f32 %v755, %v1060
  %v1065 = vunpack.c.l.b16 %v518
  %v1066 = vpack.c.b16 %v1065, %v1065
  %1067 = vrot.lane.b32.xlu0 %v1066, 112
  %v1068 = vpop.permute.xlu0 %1067
  %v1070 = vunpack.c.l.b16 %v495
  %v1071 = vpack.c.b16 %v1070, %v1070
  %1072 = vrot.lane.b32.xlu0 %v1071, 112
  %v1073 = vpop.permute.xlu0 %1072
  %v1075 = vsel %vm623, %v1068, 0
  %v1078 = vsel %vm623, %v1073, 0
  %1080 = vmatpush.bf16.xpose.msra.mxu0 0
  %1081 = vmatpush.bf16.xpose.msra.mxu0 0
  %1082 = vmatpush.bf16.xpose.msra.mxu0 0
  %1083 = vmatpush.bf16.xpose.msra.mxu0 0
  %1084 = vmatpush.bf16.xpose.msra.mxu0 0
  %1085 = vmatpush.bf16.xpose.msra.mxu0 0
  %1086 = vmatpush.bf16.xpose.msra.mxu0 0
  %1087 = vmatpush.bf16.xpose.msra.mxu0 %v1078
  %1088 = vmatmul.bf16.gmra.mxu0 %v1075
  %v1089 = vpop.f32.mrf.mxu0
  %v1090 = vadd.f32 0.0, %v1089
  %v1091 = vpop.f32.mrf.mxu0
  %1092 = vdwg.mxu0
  %v1094 = vunpack.c.l.b16 %v519
  %v1095 = vpack.c.b16 %v1094, %v1094
  %1096 = vrot.lane.b32.xlu0 %v1095, 112
  %v1097 = vpop.permute.xlu0 %1096
  %v1099 = vunpack.c.l.b16 %v496
  %v1100 = vpack.c.b16 %v1099, %v1099
  %1101 = vrot.lane.b32.xlu0 %v1100, 112
  %v1102 = vpop.permute.xlu0 %1101
  %v1104 = vsel %vm623, %v1097, 0
  %v1107 = vsel %vm623, %v1102, 0
  %1109 = vmatpush.bf16.xpose.msra.mxu0 0
  %1110 = vmatpush.bf16.xpose.msra.mxu0 0
  %1111 = vmatpush.bf16.xpose.msra.mxu0 0
  %1112 = vmatpush.bf16.xpose.msra.mxu0 0
  %1113 = vmatpush.bf16.xpose.msra.mxu0 0
  %1114 = vmatpush.bf16.xpose.msra.mxu0 0
  %1115 = vmatpush.bf16.xpose.msra.mxu0 0
  %1116 = vmatpush.bf16.xpose.msra.mxu0 %v1107
  %1117 = vmatmul.bf16.gmra.mxu0 %v1104
  %v1118 = vpop.f32.mrf.mxu0
  %v1119 = vadd.f32 0.0, %v1118
  %v1120 = vpop.f32.mrf.mxu0
  %1121 = vdwg.mxu0
  %v1122 = vmul.f32 %v1090, 0.25
  %v1123 = vmul.f32 %v1119, 0.25
  %v1124 = vadd.f32 %v1122, %v798
  %v1125 = vadd.f32 %v1123, %v799
  %v1126 = vsel %vm804, %v1124, -inf
  %1127 = vmax.xlane.f32.xlu0 %v1126
  %v1128 = vpop.xlane.xlu0 %1127
  %v1129 = vsel %vm804, %v1125, -inf
  %1130 = vmax.xlane.f32.xlu0 %v1129
  %v1131 = vpop.xlane.xlu0 %1130
  %v1132 = vsub.f32 %v1124, %v1128
  %v1133 = vsub.f32 %v1125, %v1131
  %v1134 = vmul.f32 %v1132, 1.442695
  %v1135 = vpow.pop %v1134
  %v1136 = vmul.f32 %v1133, 1.442695
  %v1137 = vpow.pop %v1136
  %v1138 = vsel %vm804, %v1135, 0.0
  %1139 = vadd.xlane.f32.xlu0 %v1138
  %v1140 = vpop.xlane.xlu0 %1139
  %v1141 = vsel %vm804, %v1137, 0.0
  %1142 = vadd.xlane.f32.xlu0 %v1141
  %v1143 = vpop.xlane.xlu0 %1142
  %v1144 = vrcp.pop %v1140
  %v1145 = vrcp.pop %v1143
  %v1146 = vmul.f32 %v1135, %v1144
  %v1147 = vmul.f32 %v1137, %v1145
  %v1148 = vpack.c.bf16 %v1146, %v1146
  %v1149 = vpack.c.bf16 %v1147, %v1147
  %v1151 = vunpack.c.l.b16 %v541
  %v1152 = vpack.c.b16 %v1151, %v1151
  %1153 = vrot.lane.b32.xlu0 %v1152, 112
  %v1154 = vpop.permute.xlu0 %1153
  %v1156 = vsel %vm829, %v1148, 0
  %v1159 = vsel %vm833, %v1154, 0
  %1161 = vmatpush.bf16.msra.mxu0 0
  %1162 = vmatpush.bf16.msra.mxu0 0
  %1163 = vmatpush.bf16.msra.mxu0 0
  %1164 = vmatpush.bf16.msra.mxu0 0
  %1165 = vmatpush.bf16.msra.mxu0 0
  %1166 = vmatpush.bf16.msra.mxu0 0
  %1167 = vmatpush.bf16.msra.mxu0 0
  %1168 = vmatpush.bf16.msra.mxu0 %v1159
  %1169 = vmatmul.bf16.gmra.mxu0 %v1156
  %v1170 = vpop.f32.mrf.mxu0
  %v1171 = vadd.f32 0.0, %v1170
  %v1172 = vpop.f32.mrf.mxu0
  %1173 = vdwg.mxu0
  %v1175 = vunpack.c.l.b16 %v542
  %v1176 = vpack.c.b16 %v1175, %v1175
  %1177 = vrot.lane.b32.xlu0 %v1176, 112
  %v1178 = vpop.permute.xlu0 %1177
  %v1180 = vsel %vm829, %v1149, 0
  %v1183 = vsel %vm833, %v1178, 0
  %1185 = vmatpush.bf16.msra.mxu0 0
  %1186 = vmatpush.bf16.msra.mxu0 0
  %1187 = vmatpush.bf16.msra.mxu0 0
  %1188 = vmatpush.bf16.msra.mxu0 0
  %1189 = vmatpush.bf16.msra.mxu0 0
  %1190 = vmatpush.bf16.msra.mxu0 0
  %1191 = vmatpush.bf16.msra.mxu0 0
  %1192 = vmatpush.bf16.msra.mxu0 %v1183
  %1193 = vmatmul.bf16.gmra.mxu0 %v1180
  %v1194 = vpop.f32.mrf.mxu0
  %v1195 = vadd.f32 0.0, %v1194
  %v1196 = vpop.f32.mrf.mxu0
  %1197 = vdwg.mxu0
  %v1200 = vrot.slane %v1171, 2
  %v1201 = vrot.slane %v1171, 4
  %v1202 = vrot.slane %v1195, 2
  %v1203 = vrot.slane %v1195, 4
  %1204 = vst [vmem:[#allocation1] ss:$4 sm:$0xff] %v1171
  %s1205 = scalar_lea.vmem [#allocation1], 1
  %1206 = vst [vmem:[%s1205] ss:$4 sm:$0xff] %v1200
  %s1207 = scalar_lea.vmem [#allocation1], 2
  %1208 = vst [vmem:[%s1207] ss:$4 sm:$0xff] %v1201
  %s1209 = scalar_lea.vmem [#allocation1], 3
  %1210 = vst [vmem:[%s1209] ss:$4 sm:$0xff] %v1195
  %s1211 = scalar_lea.vmem [#allocation1], 32
  %1212 = vst [vmem:[%s1211] ss:$4 sm:$0xff] %v1202
  %s1213 = scalar_lea.vmem [#allocation1], 33
  %1214 = vst [vmem:[%s1213] ss:$4 sm:$0xff] %v1203
  %v1215 = vld.sshfl [vmem:[#allocation1] sm:$0xff pattern:$0x73625140]
  %v1216 = vld.sshfl [vmem:[#allocation1 + $0x20] sm:$0xff pattern:$0x73625140]
  %v1219 = vpack.c.bf16 %v1216, %v1215
  %v1221 = vsel %vm623, %v1219, 0
  %1223 = vmatpush.bf16.msra.mxu0 0
  %1224 = vmatpush.bf16.msra.mxu0 0
  %1225 = vmatpush.bf16.msra.mxu0 0
  %1226 = vmatpush.bf16.msra.mxu0 0
  %1227 = vmatpush.bf16.msra.mxu0 0
  %1228 = vmatpush.bf16.msra.mxu0 0
  %1229 = vmatpush.bf16.msra.mxu0 0
  %1230 = vmatpush.bf16.msra.mxu0 %v606
  %1231 = vmatmul.bf16.gmra.mxu0 %v1221
  %v1232 = vpop.f32.mrf.mxu0
  %v1233 = vadd.f32 0.0, %v1232
  %v1234 = vpop.f32.mrf.mxu0
  %v1235 = vadd.f32 0.0, %v1234
  %1236 = vdwg.mxu0
  %v1237 = vadd.f32 %v908, %v1233
  %v1238 = vadd.f32 %v909, %v1235
  %1239 = vst.msk [vmem:[%s20] sm:$0xff] %vm88, %v1062
  %1240 = vst.msk [vmem:[%s20 + $0x8] sm:$0xff] %vm88, %v1063
  %v1243 = vrot.slane %v1237, 2
  %v1244 = vrot.slane %v1237, 4
  %v1245 = vrot.slane %v1237, 6
  %v1246 = vrot.slane %v1238, 2
  %1247 = vst [vmem:[#allocation1] ss:$4 sm:$0xff] %v1237
  %s1248 = scalar_lea.vmem [#allocation1], 1
  %1249 = vst [vmem:[%s1248] ss:$4 sm:$0xff] %v1243
  %s1250 = scalar_lea.vmem [#allocation1], 2
  %1251 = vst [vmem:[%s1250] ss:$4 sm:$0xff] %v1244
  %v1252 = vld.sshfl [vmem:[#allocation1] sm:$0xff pattern:$0x73625140]
  %s1253 = scalar_lea.vmem [#allocation1], 32
  %1254 = vst [vmem:[%s1253] ss:$4 sm:$0xff] %v1245
  %s1255 = scalar_lea.vmem [#allocation1], 33
  %1256 = vst [vmem:[%s1255] ss:$4 sm:$0xff] %v1238
  %s1257 = scalar_lea.vmem [#allocation1], 34
  %1258 = vst [vmem:[%s1257] ss:$4 sm:$0xff] %v1246
  %v1259 = vld.sshfl [vmem:[#allocation1 + $0x20] sm:$0xff pattern:$0x73625140]
  %1262 = vst.msk [vmem:[%s21] sm:$0x3f] %vm125, %v1252
  %1263 = vst.msk [vmem:[%s21 + $0x8] sm:$0x3f] %vm125, %v1259
  // Predicated region
  $region82: #{multiblock_forward.10} parent=0 // pred_check
    _
  $region83: #{multiblock_forward.10} parent=0 // pred_check_branch
    %1265 = sbr.rel (0) target = $region85
  $region84: #{multiblock_forward.10} parent=0 // pred_region
    _
  $region85: #{multiblock_forward.10} parent=0 // pred_fallthru
    _
  // Predicated region
  $region86: #{multiblock_forward.10} parent=0 // pred_check
    _
  $region87: #{multiblock_forward.10} parent=0 // pred_check_branch
    %1267 = sbr.rel (0) target = $region89
  $region88: #{multiblock_forward.10} parent=0 // pred_region
    _
  $region89: #{multiblock_forward.10} parent=0 // pred_fallthru
    _
  // Predicated region
  $region90: #{multiblock_forward.10} parent=0 // pred_check
    _
  $region91: #{multiblock_forward.10} parent=0 // pred_check_branch
    %1269 = sbr.rel (0) target = $region93
  $region92: #{multiblock_forward.10} parent=0 // pred_region
    _
  $region93: #{multiblock_forward.10} parent=0 // pred_fallthru
    _
  // Predicated region
  $region94: #{multiblock_forward.10} parent=0 // pred_check
    _
  $region95: #{multiblock_forward.10} parent=0 // pred_check_branch
    %1271 = sbr.rel (0) target = $region97
  $region96: #{multiblock_forward.10} parent=0 // pred_region
    _
  $region97: #{multiblock_forward.10} parent=0 // pred_fallthru
    _

</llo_original>
